<compile_context>
chip_gen: v6e
topology: v6e:2x2x1
jax: 0.10.0
libtpu: 0.0.40
codegen_flags: <defaults>
</compile_context>

<pallas_src>
import math
import functools

import jax
import jax.numpy as jnp
from jax.experimental import pallas as pl
from jax.experimental.pallas import tpu as pltpu


# ----------------------------- Pallas kernel -------------------------------- #
def _decoder_block_kernel(bt, S, Se, num_head, dk, eps,
                          x_ref, enc_ref, dneg_ref, eneg_ref,
                          wq1, bq1, wk1, bk1, wv1, bv1, wo1, bo1, g1, be1,
                          wq2, bq2, wk2, bk2, wv2, bv2, wo2, bo2, g2, be2,
                          wf1, bf1, wf2, bf2, g3, be3,
                          out_ref):
    E = num_head * dk
    scale = 1.0 / math.sqrt(float(dk))

    # Flatten the batch tile so every projection / FFN matmul has M = bt * seq.
    x = x_ref[...].reshape(bt * S, E)
    enc = enc_ref[...].reshape(bt * Se, E)

    def linear(z, w_ref, b_ref):
        return jnp.dot(z, w_ref[...], preferred_element_type=jnp.float32) + b_ref[...]

    def mha(q_in, kv_in, sq, sk, wq, bq, wk, bk, wv, bv, wo, bo, neg_ref):
        # Big fused projections (one MXU matmul each).
        q = linear(q_in, wq, bq)            # (bt*sq, E)
        k = linear(kv_in, wk, bk)           # (bt*sk, E)
        v = linear(kv_in, wv, bv)           # (bt*sk, E)
        neg = neg_ref[...][None, :, :]      # additive mask (0 / -1e30), hoisted

        acc = jnp.zeros((bt * sq, E), jnp.float32)
        for h in range(num_head):           # static unroll over heads
            sl = slice(h * dk, (h + 1) * dk)
            qh = q[:, sl].reshape(bt, sq, dk)
            kh = k[:, sl].reshape(bt, sk, dk)
            vh = v[:, sl].reshape(bt, sk, dk)
            s = jnp.einsum('bqd,bkd->bqk', qh, kh,
                           preferred_element_type=jnp.float32) * scale + neg
            p = jax.nn.softmax(s, axis=-1)
            oh = jnp.einsum('bqk,bkd->bqd', p, vh,
                            preferred_element_type=jnp.float32)
            # Accumulate straight into the output projection — no concat.
            acc = acc + jnp.dot(oh.reshape(bt * sq, dk), wo[sl, :],
                                preferred_element_type=jnp.float32)
        return acc + bo[...]

    def layer_norm(z, g_ref, b_ref):
        # Matches torch module: unbiased std, eps added outside the sqrt.
        mean = jnp.mean(z, axis=-1, keepdims=True)
        var = jnp.sum((z - mean) ** 2, axis=-1, keepdims=True) / (z.shape[-1] - 1)
        return g_ref[...] * (z - mean) / (jnp.sqrt(var) + eps) + b_ref[...]

    a1 = mha(x, x, S, S, wq1, bq1, wk1, bk1, wv1, bv1, wo1, bo1, dneg_ref)
    x1 = layer_norm(x + a1, g1, be1)
    a2 = mha(x1, enc, S, Se, wq2, bq2, wk2, bk2, wv2, bv2, wo2, bo2, eneg_ref)
    x2 = layer_norm(x1 + a2, g2, be2)
    h = jnp.maximum(linear(x2, wf1, bf1), 0.0)     # ReLU; dropout == identity (eval)
    ff = linear(h, wf2, bf2)
    out_ref[...] = layer_norm(x2 + ff, g3, be3).reshape(bt, S, E).astype(out_ref.dtype)


# ------------------------------- Wrapper ------------------------------------ #
def _pick_batch_tile(B, S):
    """Largest divisor of B with a modest activation tile, keeping >=2 grid steps."""
    best = 1
    for bt in range(1, B + 1):
        if B % bt:
            continue
        if bt * S > 256:                    # keep activation block modest (VMEM)
            continue
        if B // bt >= 2 or B == 1:          # prefer >=2 steps (megacore on v7x)
            best = bt
    return best


def decoder_block(x, enc, params, num_head, dec_mask=None, enc_mask=None,
                  eps=1e-6, batch_tile=None):
    B, S, E = x.shape
    _, Se, _ = enc.shape
    assert E % num_head == 0
    dk = E // num_head

    # Convert masks once (wrapper-side) to additive form: 0 where attended,
    # -1e30 where masked. Avoids per-head compares and exp(-inf) NaNs.
    if dec_mask is None:
        dneg = jnp.zeros((S, S), jnp.float32)
    else:
        dneg = jnp.where(dec_mask == 0, -1e30, 0.0).astype(jnp.float32)
    if enc_mask is None:
        eneg = jnp.zeros((S, Se), jnp.float32)
    else:
        eneg = jnp.where(enc_mask == 0, -1e30, 0.0).astype(jnp.float32)

    if batch_tile is None:
        batch_tile = _pick_batch_tile(B, S)
    assert B % batch_tile == 0
    bt = batch_tile
    grid = (B // bt,)

    # Grid-constant operands: single VMEM buffer (no double-buffering).
    def const_spec(shape):
        n = len(shape)
        return pl.BlockSpec(shape, lambda b, _n=n: (0,) * _n,
                            pipeline_mode=pl.Buffered(1))

    in_specs = [
        pl.BlockSpec((bt, S, E), lambda b: (b, 0, 0)),    # x (pipelined)
        pl.BlockSpec((bt, Se, E), lambda b: (b, 0, 0)),   # encoder outputs
        const_spec((S, S)),                               # additive dec mask
        const_spec((S, Se)),                              # additive enc mask
    ] + [const_spec(p.shape) for p in params]

    # Explicit VMEM budget: single-buffered params/masks + double-buffered I/O
    # + rough working set, clamped to the 64 MiB v7x per-TC physical ceiling.
    ffn = params[20].shape[1]
    param_bytes = sum(int(p.size) * p.dtype.itemsize for p in params)
    mask_bytes = (S * S + S * Se) * 4
    io_bytes = 2 * (2 * bt * S * E + bt * Se * E) * x.dtype.itemsize
    work_bytes = bt * (8 * S * E + 2 * Se * E + 2 * S * max(S, Se) + 2 * S * ffn) * 4
    vmem_limit = int(1.25 * (param_bytes + mask_bytes + io_bytes + work_bytes))
    vmem_limit = max(32 << 20, min(vmem_limit, 64 << 20))

    kernel = functools.partial(_decoder_block_kernel, bt, S, Se, num_head, dk, eps)
    return pl.pallas_call(
        kernel,
        out_shape=jax.ShapeDtypeStruct((B, S, E), x.dtype),
        grid=grid,
        in_specs=in_specs,
        out_specs=pl.BlockSpec((bt, S, E), lambda b: (b, 0, 0)),
        compiler_params=pltpu.CompilerParams(
            dimension_semantics=("parallel",),
            vmem_limit_bytes=vmem_limit),
    )(x, enc, dneg, eneg, *params)


# --------------------------- Parameter init ---------------------------------- #
def init_params(key, num_head, emd_dim, ffn_hidden):
    keys = iter(jax.random.split(key, 16))

    def lin(fan_in, fan_out):
        kw, kb = jax.random.split(next(keys))
        bound = 1.0 / math.sqrt(fan_in)
        w = jax.random.uniform(kw, (fan_in, fan_out), jnp.float32, -bound, bound)
        b = jax.random.uniform(kb, (1, fan_out), jnp.float32, -bound, bound)
        return [w, b]

    def ln():
        return [jnp.ones((1, emd_dim), jnp.float32),
                jnp.zeros((1, emd_dim), jnp.float32)]

    params = []
    for _ in range(4):                       # attention_1: q, k, v, out
        params += lin(emd_dim, emd_dim)
    params += ln()                           # ln1
    for _ in range(4):                       # attention_2: q, k, v, out
        params += lin(emd_dim, emd_dim)
    params += ln()                           # ln2
    params += lin(emd_dim, ffn_hidden)       # ff1
    params += lin(ffn_hidden, emd_dim)       # ff2
    params += ln()                           # ln3
    return tuple(params)


# ------------------------ Pure-JAX reference (check) ------------------------- #
def reference(x, enc, params, num_head, dec_mask=None, enc_mask=None, eps=1e-6):
    (wq1, bq1, wk1, bk1, wv1, bv1, wo1, bo1, g1, be1,
     wq2, bq2, wk2, bk2, wv2, bv2, wo2, bo2, g2, be2,
     wf1, bf1, wf2, bf2, g3, be3) = params

    def linear(z, w, b):
        return z @ w + b

    def mha(q_in, kv_in, wq, bq, wk, bk, wv, bv, wo, bo, mask):
        B, Sq, E = q_in.shape
        Sk = kv_in.shape[1]
        dk = E // num_head
        q = linear(q_in, wq, bq).reshape(B, Sq, num_head, dk).transpose(0, 2, 1, 3)
        k = linear(kv_in, wk, bk).reshape(B, Sk, num_head, dk).transpose(0, 2, 1, 3)
        v = linear(kv_in, wv, bv).reshape(B, Sk, num_head, dk).transpose(0, 2, 1, 3)
        attn = (q @ jnp.swapaxes(k, -1, -2)) * (1.0 / math.sqrt(dk))
        if mask is not None:
            attn = jnp.where(mask[None, None, :, :] == 0, -jnp.inf, attn)
        p = jax.nn.softmax(attn, axis=-1)
        o = (p @ v).transpose(0, 2, 1, 3).reshape(B, Sq, E)
        return linear(o, wo, bo)

    def layer_norm(z, g, b):
        mean = z.mean(-1, keepdims=True)
        var = ((z - mean) ** 2).sum(-1, keepdims=True) / (z.shape[-1] - 1)
        return g * (z - mean) / (jnp.sqrt(var) + eps) + b

    a1 = mha(x, x, wq1, bq1, wk1, bk1, wv1, bv1, wo1, bo1, dec_mask)
    x1 = layer_norm(x + a1, g1, be1)
    a2 = mha(x1, enc, wq2, bq2, wk2, bk2, wv2, bv2, wo2, bo2, enc_mask)
    x2 = layer_norm(x1 + a2, g2, be2)
    ff = linear(jnp.maximum(linear(x2, wf1, bf1), 0.0), wf2, bf2)
    return layer_norm(x2 + ff, g3, be3)


# --------------------------------- Main -------------------------------------- #
if __name__ == "__main__":
    B, S, Se, E, H, FFN = 2, 8, 16, 32, 4, 64

    key = jax.random.PRNGKey(0)
    kx, kenc, kp = jax.random.split(key, 3)
    x = jax.random.normal(kx, (B, S, E), jnp.float32)
    enc_out = jax.random.normal(kenc, (B, Se, E), jnp.float32)
    params = init_params(kp, H, E, FFN)

    # Case 1: no masks.
    out = jax.block_until_ready(decoder_block(x, enc_out, params, H))
    ref = reference(x, enc_out, params, H)
    assert out.shape == (B, S, E)
    err1 = float(jnp.max(jnp.abs(out - ref)))
    assert jnp.allclose(out, ref, atol=2e-4, rtol=2e-4), f"unmasked max_err={err1}"

    # Case 2: causal decoder mask + padded encoder mask.
    dec_mask = jnp.tril(jnp.ones((S, S), jnp.float32))
    enc_mask = jnp.ones((S, Se), jnp.float32).at[:, Se - 4:].set(0.0)
    out_m = jax.block_until_ready(
        decoder_block(x, enc_out, params, H, dec_mask=dec_mask, enc_mask=enc_mask))
    ref_m = reference(x, enc_out, params, H, dec_mask=dec_mask, enc_mask=enc_mask)
    err2 = float(jnp.max(jnp.abs(out_m - ref_m)))
    assert jnp.allclose(out_m, ref_m, atol=2e-4, rtol=2e-4), f"masked max_err={err2}"

    print("KERNEL_OK")
</pallas_src>

<mosaic_0001>
module attributes {stable_mosaic.version = 11 : i64} {
  func.func @_decoder_block_kernel(%arg0: i32, %arg1: memref<1x8x32xf32, #tpu.memory_space<vmem>>, %arg2: memref<1x16x32xf32, #tpu.memory_space<vmem>>, %arg3: memref<8x8xf32, #tpu.memory_space<vmem>>, %arg4: memref<8x16xf32, #tpu.memory_space<vmem>>, %arg5: memref<32x32xf32, #tpu.memory_space<vmem>>, %arg6: memref<1x32xf32, #tpu.memory_space<vmem>>, %arg7: memref<32x32xf32, #tpu.memory_space<vmem>>, %arg8: memref<1x32xf32, #tpu.memory_space<vmem>>, %arg9: memref<32x32xf32, #tpu.memory_space<vmem>>, %arg10: memref<1x32xf32, #tpu.memory_space<vmem>>, %arg11: memref<32x32xf32, #tpu.memory_space<vmem>>, %arg12: memref<1x32xf32, #tpu.memory_space<vmem>>, %arg13: memref<1x32xf32, #tpu.memory_space<vmem>>, %arg14: memref<1x32xf32, #tpu.memory_space<vmem>>, %arg15: memref<32x32xf32, #tpu.memory_space<vmem>>, %arg16: memref<1x32xf32, #tpu.memory_space<vmem>>, %arg17: memref<32x32xf32, #tpu.memory_space<vmem>>, %arg18: memref<1x32xf32, #tpu.memory_space<vmem>>, %arg19: memref<32x32xf32, #tpu.memory_space<vmem>>, %arg20: memref<1x32xf32, #tpu.memory_space<vmem>>, %arg21: memref<32x32xf32, #tpu.memory_space<vmem>>, %arg22: memref<1x32xf32, #tpu.memory_space<vmem>>, %arg23: memref<1x32xf32, #tpu.memory_space<vmem>>, %arg24: memref<1x32xf32, #tpu.memory_space<vmem>>, %arg25: memref<32x64xf32, #tpu.memory_space<vmem>>, %arg26: memref<1x64xf32, #tpu.memory_space<vmem>>, %arg27: memref<64x32xf32, #tpu.memory_space<vmem>>, %arg28: memref<1x32xf32, #tpu.memory_space<vmem>>, %arg29: memref<1x32xf32, #tpu.memory_space<vmem>>, %arg30: memref<1x32xf32, #tpu.memory_space<vmem>>, %arg31: memref<1x8x32xf32, #tpu.memory_space<vmem>>) attributes {dimension_semantics = [#tpu.dimension_semantics<parallel>], iteration_bounds = array<i64: 2>, scalar_prefetch = 0 : i64, scratch_operands = 0 : i64, tpu.core_type = #tpu.core_type<tc>, window_params = [{transform_indices = @transform_0, window_bounds = array<i64: 1, 8, 32>}, {transform_indices = @transform_1, window_bounds = array<i64: 1, 16, 32>}, {pipeline_mode = #tpu.pipeline_mode<synchronous>, transform_indices = @transform_2, window_bounds = array<i64: 8, 8>}, {pipeline_mode = #tpu.pipeline_mode<synchronous>, transform_indices = @transform_3, window_bounds = array<i64: 8, 16>}, {pipeline_mode = #tpu.pipeline_mode<synchronous>, transform_indices = @transform_4, window_bounds = array<i64: 32, 32>}, {pipeline_mode = #tpu.pipeline_mode<synchronous>, transform_indices = @transform_5, window_bounds = array<i64: 1, 32>}, {pipeline_mode = #tpu.pipeline_mode<synchronous>, transform_indices = @transform_6, window_bounds = array<i64: 32, 32>}, {pipeline_mode = #tpu.pipeline_mode<synchronous>, transform_indices = @transform_7, window_bounds = array<i64: 1, 32>}, {pipeline_mode = #tpu.pipeline_mode<synchronous>, transform_indices = @transform_8, window_bounds = array<i64: 32, 32>}, {pipeline_mode = #tpu.pipeline_mode<synchronous>, transform_indices = @transform_9, window_bounds = array<i64: 1, 32>}, {pipeline_mode = #tpu.pipeline_mode<synchronous>, transform_indices = @transform_10, window_bounds = array<i64: 32, 32>}, {pipeline_mode = #tpu.pipeline_mode<synchronous>, transform_indices = @transform_11, window_bounds = array<i64: 1, 32>}, {pipeline_mode = #tpu.pipeline_mode<synchronous>, transform_indices = @transform_12, window_bounds = array<i64: 1, 32>}, {pipeline_mode = #tpu.pipeline_mode<synchronous>, transform_indices = @transform_13, window_bounds = array<i64: 1, 32>}, {pipeline_mode = #tpu.pipeline_mode<synchronous>, transform_indices = @transform_14, window_bounds = array<i64: 32, 32>}, {pipeline_mode = #tpu.pipeline_mode<synchronous>, transform_indices = @transform_15, window_bounds = array<i64: 1, 32>}, {pipeline_mode = #tpu.pipeline_mode<synchronous>, transform_indices = @transform_16, window_bounds = array<i64: 32, 32>}, {pipeline_mode = #tpu.pipeline_mode<synchronous>, transform_indices = @transform_17, window_bounds = array<i64: 1, 32>}, {pipeline_mode = #tpu.pipeline_mode<synchronous>, transform_indices = @transform_18, window_bounds = array<i64: 32, 32>}, {pipeline_mode = #tpu.pipeline_mode<synchronous>, transform_indices = @transform_19, window_bounds = array<i64: 1, 32>}, {pipeline_mode = #tpu.pipeline_mode<synchronous>, transform_indices = @transform_20, window_bounds = array<i64: 32, 32>}, {pipeline_mode = #tpu.pipeline_mode<synchronous>, transform_indices = @transform_21, window_bounds = array<i64: 1, 32>}, {pipeline_mode = #tpu.pipeline_mode<synchronous>, transform_indices = @transform_22, window_bounds = array<i64: 1, 32>}, {pipeline_mode = #tpu.pipeline_mode<synchronous>, transform_indices = @transform_23, window_bounds = array<i64: 1, 32>}, {pipeline_mode = #tpu.pipeline_mode<synchronous>, transform_indices = @transform_24, window_bounds = array<i64: 32, 64>}, {pipeline_mode = #tpu.pipeline_mode<synchronous>, transform_indices = @transform_25, window_bounds = array<i64: 1, 64>}, {pipeline_mode = #tpu.pipeline_mode<synchronous>, transform_indices = @transform_26, window_bounds = array<i64: 64, 32>}, {pipeline_mode = #tpu.pipeline_mode<synchronous>, transform_indices = @transform_27, window_bounds = array<i64: 1, 32>}, {pipeline_mode = #tpu.pipeline_mode<synchronous>, transform_indices = @transform_28, window_bounds = array<i64: 1, 32>}, {pipeline_mode = #tpu.pipeline_mode<synchronous>, transform_indices = @transform_29, window_bounds = array<i64: 1, 32>}, {transform_indices = @transform_30, window_bounds = array<i64: 1, 8, 32>}]} {
    %c0 = arith.constant 0 : index
    %c0_0 = arith.constant 0 : index
    %c0_1 = arith.constant 0 : index
    %0 = vector.load %arg1[%c0, %c0_0, %c0_1] : memref<1x8x32xf32, #tpu.memory_space<vmem>>, vector<1x8x32xf32>
    %1 = vector.shape_cast %0 : vector<1x8x32xf32> to vector<8x32xf32>
    %c0_2 = arith.constant 0 : index
    %c0_3 = arith.constant 0 : index
    %c0_4 = arith.constant 0 : index
    %2 = vector.load %arg2[%c0_2, %c0_3, %c0_4] : memref<1x16x32xf32, #tpu.memory_space<vmem>>, vector<1x16x32xf32>
    %3 = vector.shape_cast %2 : vector<1x16x32xf32> to vector<16x32xf32>
    %c0_5 = arith.constant 0 : index
    %c0_6 = arith.constant 0 : index
    %4 = vector.load %arg5[%c0_5, %c0_6] : memref<32x32xf32, #tpu.memory_space<vmem>>, vector<32x32xf32>
    %cst = arith.constant dense<0.000000e+00> : vector<8x32xf32>
    %5 = tpu.matmul %1, %4, %cst {dimension_numbers = #tpu.dot_dimension_numbers<[1], [0], [0], [1], [0, 0, 1, 1], [], []>} : vector<8x32xf32>, vector<32x32xf32>, vector<8x32xf32> -> vector<8x32xf32>
    %c0_7 = arith.constant 0 : index
    %c0_8 = arith.constant 0 : index
    %6 = vector.load %arg6[%c0_7, %c0_8] : memref<1x32xf32, #tpu.memory_space<vmem>>, vector<1x32xf32>
    %7 = vector.broadcast %6 : vector<1x32xf32> to vector<8x32xf32>
    %8 = arith.addf %5, %7 : vector<8x32xf32>
    %c0_9 = arith.constant 0 : index
    %c0_10 = arith.constant 0 : index
    %9 = vector.load %arg7[%c0_9, %c0_10] : memref<32x32xf32, #tpu.memory_space<vmem>>, vector<32x32xf32>
    %cst_11 = arith.constant dense<0.000000e+00> : vector<8x32xf32>
    %10 = tpu.matmul %1, %9, %cst_11 {dimension_numbers = #tpu.dot_dimension_numbers<[1], [0], [0], [1], [0, 0, 1, 1], [], []>} : vector<8x32xf32>, vector<32x32xf32>, vector<8x32xf32> -> vector<8x32xf32>
    %c0_12 = arith.constant 0 : index
    %c0_13 = arith.constant 0 : index
    %11 = vector.load %arg8[%c0_12, %c0_13] : memref<1x32xf32, #tpu.memory_space<vmem>>, vector<1x32xf32>
    %12 = vector.broadcast %11 : vector<1x32xf32> to vector<8x32xf32>
    %13 = arith.addf %10, %12 : vector<8x32xf32>
    %c0_14 = arith.constant 0 : index
    %c0_15 = arith.constant 0 : index
    %14 = vector.load %arg9[%c0_14, %c0_15] : memref<32x32xf32, #tpu.memory_space<vmem>>, vector<32x32xf32>
    %cst_16 = arith.constant dense<0.000000e+00> : vector<8x32xf32>
    %15 = tpu.matmul %1, %14, %cst_16 {dimension_numbers = #tpu.dot_dimension_numbers<[1], [0], [0], [1], [0, 0, 1, 1], [], []>} : vector<8x32xf32>, vector<32x32xf32>, vector<8x32xf32> -> vector<8x32xf32>
    %c0_17 = arith.constant 0 : index
    %c0_18 = arith.constant 0 : index
    %16 = vector.load %arg10[%c0_17, %c0_18] : memref<1x32xf32, #tpu.memory_space<vmem>>, vector<1x32xf32>
    %17 = vector.broadcast %16 : vector<1x32xf32> to vector<8x32xf32>
    %18 = arith.addf %15, %17 : vector<8x32xf32>
    %c0_19 = arith.constant 0 : index
    %c0_20 = arith.constant 0 : index
    %19 = vector.load %arg3[%c0_19, %c0_20] : memref<8x8xf32, #tpu.memory_space<vmem>>, vector<8x8xf32>
    %20 = vector.shape_cast %19 : vector<8x8xf32> to vector<1x8x8xf32>
    %cst_21 = arith.constant 0.000000e+00 : f32
    %21 = vector.broadcast %cst_21 : f32 to vector<8x32xf32>
    %22 = vector.extract_strided_slice %8 {offsets = [0, 0], sizes = [8, 8], strides = [1, 1]} : vector<8x32xf32> to vector<8x8xf32>
    %23 = vector.shape_cast %22 : vector<8x8xf32> to vector<1x8x8xf32>
    %24 = vector.extract_strided_slice %13 {offsets = [0, 0], sizes = [8, 8], strides = [1, 1]} : vector<8x32xf32> to vector<8x8xf32>
    %25 = vector.shape_cast %24 : vector<8x8xf32> to vector<1x8x8xf32>
    %26 = vector.extract_strided_slice %18 {offsets = [0, 0], sizes = [8, 8], strides = [1, 1]} : vector<8x32xf32> to vector<8x8xf32>
    %27 = vector.shape_cast %26 : vector<8x8xf32> to vector<1x8x8xf32>
    "tpu.trace_start"() <{level = 10 : i32, message = "bqd,bkd->bqk"}> : () -> ()
    %cst_22 = arith.constant dense<0.000000e+00> : vector<1x8x8xf32>
    %28 = tpu.matmul %23, %25, %cst_22 {dimension_numbers = #tpu.dot_dimension_numbers<[2], [2], [1], [1], [0, 0, 0, 1, 1, 1], [0], [0]>} : vector<1x8x8xf32>, vector<1x8x8xf32>, vector<1x8x8xf32> -> vector<1x8x8xf32>
    "tpu.trace_stop"() : () -> ()
    %cst_23 = arith.constant 0.353553385 : f32
    %29 = vector.broadcast %cst_23 : f32 to vector<1x8x8xf32>
    %30 = arith.mulf %28, %29 : vector<1x8x8xf32>
    %31 = arith.addf %30, %20 : vector<1x8x8xf32>
    %cst_24 = arith.constant dense<0xFF800000> : vector<1x8xf32>
    %32 = vector.multi_reduction <maximumf>, %31, %cst_24 [2] : vector<1x8x8xf32> to vector<1x8xf32>
    %cst_25 = arith.constant 0xFF800000 : f32
    %33 = vector.broadcast %cst_25 : f32 to vector<1x8xf32>
    %34 = arith.maximumf %33, %32 : vector<1x8xf32>
    %35 = vector.shape_cast %34 : vector<1x8xf32> to vector<1x8x1xf32>
    %36 = vector.broadcast %35 : vector<1x8x1xf32> to vector<1x8x8xf32>
    %37 = arith.subf %31, %36 : vector<1x8x8xf32>
    %38 = math.exp %37 : vector<1x8x8xf32>
    %cst_26 = arith.constant dense<0.000000e+00> : vector<1x8xf32>
    %39 = vector.multi_reduction <add>, %38, %cst_26 [2] : vector<1x8x8xf32> to vector<1x8xf32>
    %40 = vector.shape_cast %39 : vector<1x8xf32> to vector<1x8x1xf32>
    %41 = vector.broadcast %40 : vector<1x8x1xf32> to vector<1x8x8xf32>
    %42 = arith.divf %38, %41 : vector<1x8x8xf32>
    "tpu.trace_start"() <{level = 10 : i32, message = "bqk,bkd->bqd"}> : () -> ()
    %cst_27 = arith.constant dense<0.000000e+00> : vector<1x8x8xf32>
    %43 = tpu.matmul %42, %27, %cst_27 {dimension_numbers = #tpu.dot_dimension_numbers<[2], [1], [1], [2], [0, 0, 0, 1, 1, 2], [0], [0]>} : vector<1x8x8xf32>, vector<1x8x8xf32>, vector<1x8x8xf32> -> vector<1x8x8xf32>
    "tpu.trace_stop"() : () -> ()
    %44 = vector.shape_cast %43 : vector<1x8x8xf32> to vector<8x8xf32>
    %c0_28 = arith.constant 0 : index
    %c0_29 = arith.constant 0 : index
    %45 = vector.load %arg11[%c0_28, %c0_29] : memref<32x32xf32, #tpu.memory_space<vmem>>, vector<8x32xf32>
    %cst_30 = arith.constant dense<0.000000e+00> : vector<8x32xf32>
    %46 = tpu.matmul %44, %45, %cst_30 {dimension_numbers = #tpu.dot_dimension_numbers<[1], [0], [0], [1], [0, 0, 1, 1], [], []>} : vector<8x8xf32>, vector<8x32xf32>, vector<8x32xf32> -> vector<8x32xf32>
    %47 = arith.addf %21, %46 : vector<8x32xf32>
    %48 = vector.extract_strided_slice %8 {offsets = [0, 8], sizes = [8, 8], strides = [1, 1]} : vector<8x32xf32> to vector<8x8xf32>
    %49 = vector.shape_cast %48 : vector<8x8xf32> to vector<1x8x8xf32>
    %50 = vector.extract_strided_slice %13 {offsets = [0, 8], sizes = [8, 8], strides = [1, 1]} : vector<8x32xf32> to vector<8x8xf32>
    %51 = vector.shape_cast %50 : vector<8x8xf32> to vector<1x8x8xf32>
    %52 = vector.extract_strided_slice %18 {offsets = [0, 8], sizes = [8, 8], strides = [1, 1]} : vector<8x32xf32> to vector<8x8xf32>
    %53 = vector.shape_cast %52 : vector<8x8xf32> to vector<1x8x8xf32>
    "tpu.trace_start"() <{level = 10 : i32, message = "bqd,bkd->bqk"}> : () -> ()
    %cst_31 = arith.constant dense<0.000000e+00> : vector<1x8x8xf32>
    %54 = tpu.matmul %49, %51, %cst_31 {dimension_numbers = #tpu.dot_dimension_numbers<[2], [2], [1], [1], [0, 0, 0, 1, 1, 1], [0], [0]>} : vector<1x8x8xf32>, vector<1x8x8xf32>, vector<1x8x8xf32> -> vector<1x8x8xf32>
    "tpu.trace_stop"() : () -> ()
    %cst_32 = arith.constant 0.353553385 : f32
    %55 = vector.broadcast %cst_32 : f32 to vector<1x8x8xf32>
    %56 = arith.mulf %54, %55 : vector<1x8x8xf32>
    %57 = arith.addf %56, %20 : vector<1x8x8xf32>
    %cst_33 = arith.constant dense<0xFF800000> : vector<1x8xf32>
    %58 = vector.multi_reduction <maximumf>, %57, %cst_33 [2] : vector<1x8x8xf32> to vector<1x8xf32>
    %cst_34 = arith.constant 0xFF800000 : f32
    %59 = vector.broadcast %cst_34 : f32 to vector<1x8xf32>
    %60 = arith.maximumf %59, %58 : vector<1x8xf32>
    %61 = vector.shape_cast %60 : vector<1x8xf32> to vector<1x8x1xf32>
    %62 = vector.broadcast %61 : vector<1x8x1xf32> to vector<1x8x8xf32>
    %63 = arith.subf %57, %62 : vector<1x8x8xf32>
    %64 = math.exp %63 : vector<1x8x8xf32>
    %cst_35 = arith.constant dense<0.000000e+00> : vector<1x8xf32>
    %65 = vector.multi_reduction <add>, %64, %cst_35 [2] : vector<1x8x8xf32> to vector<1x8xf32>
    %66 = vector.shape_cast %65 : vector<1x8xf32> to vector<1x8x1xf32>
    %67 = vector.broadcast %66 : vector<1x8x1xf32> to vector<1x8x8xf32>
    %68 = arith.divf %64, %67 : vector<1x8x8xf32>
    "tpu.trace_start"() <{level = 10 : i32, message = "bqk,bkd->bqd"}> : () -> ()
    %cst_36 = arith.constant dense<0.000000e+00> : vector<1x8x8xf32>
    %69 = tpu.matmul %68, %53, %cst_36 {dimension_numbers = #tpu.dot_dimension_numbers<[2], [1], [1], [2], [0, 0, 0, 1, 1, 2], [0], [0]>} : vector<1x8x8xf32>, vector<1x8x8xf32>, vector<1x8x8xf32> -> vector<1x8x8xf32>
    "tpu.trace_stop"() : () -> ()
    %70 = vector.shape_cast %69 : vector<1x8x8xf32> to vector<8x8xf32>
    %c8 = arith.constant 8 : index
    %c0_37 = arith.constant 0 : index
    %71 = vector.load %arg11[%c8, %c0_37] : memref<32x32xf32, #tpu.memory_space<vmem>>, vector<8x32xf32>
    %cst_38 = arith.constant dense<0.000000e+00> : vector<8x32xf32>
    %72 = tpu.matmul %70, %71, %cst_38 {dimension_numbers = #tpu.dot_dimension_numbers<[1], [0], [0], [1], [0, 0, 1, 1], [], []>} : vector<8x8xf32>, vector<8x32xf32>, vector<8x32xf32> -> vector<8x32xf32>
    %73 = arith.addf %47, %72 : vector<8x32xf32>
    %74 = vector.extract_strided_slice %8 {offsets = [0, 16], sizes = [8, 8], strides = [1, 1]} : vector<8x32xf32> to vector<8x8xf32>
    %75 = vector.shape_cast %74 : vector<8x8xf32> to vector<1x8x8xf32>
    %76 = vector.extract_strided_slice %13 {offsets = [0, 16], sizes = [8, 8], strides = [1, 1]} : vector<8x32xf32> to vector<8x8xf32>
    %77 = vector.shape_cast %76 : vector<8x8xf32> to vector<1x8x8xf32>
    %78 = vector.extract_strided_slice %18 {offsets = [0, 16], sizes = [8, 8], strides = [1, 1]} : vector<8x32xf32> to vector<8x8xf32>
    %79 = vector.shape_cast %78 : vector<8x8xf32> to vector<1x8x8xf32>
    "tpu.trace_start"() <{level = 10 : i32, message = "bqd,bkd->bqk"}> : () -> ()
    %cst_39 = arith.constant dense<0.000000e+00> : vector<1x8x8xf32>
    %80 = tpu.matmul %75, %77, %cst_39 {dimension_numbers = #tpu.dot_dimension_numbers<[2], [2], [1], [1], [0, 0, 0, 1, 1, 1], [0], [0]>} : vector<1x8x8xf32>, vector<1x8x8xf32>, vector<1x8x8xf32> -> vector<1x8x8xf32>
    "tpu.trace_stop"() : () -> ()
    %cst_40 = arith.constant 0.353553385 : f32
    %81 = vector.broadcast %cst_40 : f32 to vector<1x8x8xf32>
    %82 = arith.mulf %80, %81 : vector<1x8x8xf32>
    %83 = arith.addf %82, %20 : vector<1x8x8xf32>
    %cst_41 = arith.constant dense<0xFF800000> : vector<1x8xf32>
    %84 = vector.multi_reduction <maximumf>, %83, %cst_41 [2] : vector<1x8x8xf32> to vector<1x8xf32>
    %cst_42 = arith.constant 0xFF800000 : f32
    %85 = vector.broadcast %cst_42 : f32 to vector<1x8xf32>
    %86 = arith.maximumf %85, %84 : vector<1x8xf32>
    %87 = vector.shape_cast %86 : vector<1x8xf32> to vector<1x8x1xf32>
    %88 = vector.broadcast %87 : vector<1x8x1xf32> to vector<1x8x8xf32>
    %89 = arith.subf %83, %88 : vector<1x8x8xf32>
    %90 = math.exp %89 : vector<1x8x8xf32>
    %cst_43 = arith.constant dense<0.000000e+00> : vector<1x8xf32>
    %91 = vector.multi_reduction <add>, %90, %cst_43 [2] : vector<1x8x8xf32> to vector<1x8xf32>
    %92 = vector.shape_cast %91 : vector<1x8xf32> to vector<1x8x1xf32>
    %93 = vector.broadcast %92 : vector<1x8x1xf32> to vector<1x8x8xf32>
    %94 = arith.divf %90, %93 : vector<1x8x8xf32>
    "tpu.trace_start"() <{level = 10 : i32, message = "bqk,bkd->bqd"}> : () -> ()
    %cst_44 = arith.constant dense<0.000000e+00> : vector<1x8x8xf32>
    %95 = tpu.matmul %94, %79, %cst_44 {dimension_numbers = #tpu.dot_dimension_numbers<[2], [1], [1], [2], [0, 0, 0, 1, 1, 2], [0], [0]>} : vector<1x8x8xf32>, vector<1x8x8xf32>, vector<1x8x8xf32> -> vector<1x8x8xf32>
    "tpu.trace_stop"() : () -> ()
    %96 = vector.shape_cast %95 : vector<1x8x8xf32> to vector<8x8xf32>
    %c16 = arith.constant 16 : index
    %c0_45 = arith.constant 0 : index
    %97 = vector.load %arg11[%c16, %c0_45] : memref<32x32xf32, #tpu.memory_space<vmem>>, vector<8x32xf32>
    %cst_46 = arith.constant dense<0.000000e+00> : vector<8x32xf32>
    %98 = tpu.matmul %96, %97, %cst_46 {dimension_numbers = #tpu.dot_dimension_numbers<[1], [0], [0], [1], [0, 0, 1, 1], [], []>} : vector<8x8xf32>, vector<8x32xf32>, vector<8x32xf32> -> vector<8x32xf32>
    %99 = arith.addf %73, %98 : vector<8x32xf32>
    %100 = vector.extract_strided_slice %8 {offsets = [0, 24], sizes = [8, 8], strides = [1, 1]} : vector<8x32xf32> to vector<8x8xf32>
    %101 = vector.shape_cast %100 : vector<8x8xf32> to vector<1x8x8xf32>
    %102 = vector.extract_strided_slice %13 {offsets = [0, 24], sizes = [8, 8], strides = [1, 1]} : vector<8x32xf32> to vector<8x8xf32>
    %103 = vector.shape_cast %102 : vector<8x8xf32> to vector<1x8x8xf32>
    %104 = vector.extract_strided_slice %18 {offsets = [0, 24], sizes = [8, 8], strides = [1, 1]} : vector<8x32xf32> to vector<8x8xf32>
    %105 = vector.shape_cast %104 : vector<8x8xf32> to vector<1x8x8xf32>
    "tpu.trace_start"() <{level = 10 : i32, message = "bqd,bkd->bqk"}> : () -> ()
    %cst_47 = arith.constant dense<0.000000e+00> : vector<1x8x8xf32>
    %106 = tpu.matmul %101, %103, %cst_47 {dimension_numbers = #tpu.dot_dimension_numbers<[2], [2], [1], [1], [0, 0, 0, 1, 1, 1], [0], [0]>} : vector<1x8x8xf32>, vector<1x8x8xf32>, vector<1x8x8xf32> -> vector<1x8x8xf32>
    "tpu.trace_stop"() : () -> ()
    %cst_48 = arith.constant 0.353553385 : f32
    %107 = vector.broadcast %cst_48 : f32 to vector<1x8x8xf32>
    %108 = arith.mulf %106, %107 : vector<1x8x8xf32>
    %109 = arith.addf %108, %20 : vector<1x8x8xf32>
    %cst_49 = arith.constant dense<0xFF800000> : vector<1x8xf32>
    %110 = vector.multi_reduction <maximumf>, %109, %cst_49 [2] : vector<1x8x8xf32> to vector<1x8xf32>
    %cst_50 = arith.constant 0xFF800000 : f32
    %111 = vector.broadcast %cst_50 : f32 to vector<1x8xf32>
    %112 = arith.maximumf %111, %110 : vector<1x8xf32>
    %113 = vector.shape_cast %112 : vector<1x8xf32> to vector<1x8x1xf32>
    %114 = vector.broadcast %113 : vector<1x8x1xf32> to vector<1x8x8xf32>
    %115 = arith.subf %109, %114 : vector<1x8x8xf32>
    %116 = math.exp %115 : vector<1x8x8xf32>
    %cst_51 = arith.constant dense<0.000000e+00> : vector<1x8xf32>
    %117 = vector.multi_reduction <add>, %116, %cst_51 [2] : vector<1x8x8xf32> to vector<1x8xf32>
    %118 = vector.shape_cast %117 : vector<1x8xf32> to vector<1x8x1xf32>
    %119 = vector.broadcast %118 : vector<1x8x1xf32> to vector<1x8x8xf32>
    %120 = arith.divf %116, %119 : vector<1x8x8xf32>
    "tpu.trace_start"() <{level = 10 : i32, message = "bqk,bkd->bqd"}> : () -> ()
    %cst_52 = arith.constant dense<0.000000e+00> : vector<1x8x8xf32>
    %121 = tpu.matmul %120, %105, %cst_52 {dimension_numbers = #tpu.dot_dimension_numbers<[2], [1], [1], [2], [0, 0, 0, 1, 1, 2], [0], [0]>} : vector<1x8x8xf32>, vector<1x8x8xf32>, vector<1x8x8xf32> -> vector<1x8x8xf32>
    "tpu.trace_stop"() : () -> ()
    %122 = vector.shape_cast %121 : vector<1x8x8xf32> to vector<8x8xf32>
    %c24 = arith.constant 24 : index
    %c0_53 = arith.constant 0 : index
    %123 = vector.load %arg11[%c24, %c0_53] : memref<32x32xf32, #tpu.memory_space<vmem>>, vector<8x32xf32>
    %cst_54 = arith.constant dense<0.000000e+00> : vector<8x32xf32>
    %124 = tpu.matmul %122, %123, %cst_54 {dimension_numbers = #tpu.dot_dimension_numbers<[1], [0], [0], [1], [0, 0, 1, 1], [], []>} : vector<8x8xf32>, vector<8x32xf32>, vector<8x32xf32> -> vector<8x32xf32>
    %125 = arith.addf %99, %124 : vector<8x32xf32>
    %c0_55 = arith.constant 0 : index
    %c0_56 = arith.constant 0 : index
    %126 = vector.load %arg12[%c0_55, %c0_56] : memref<1x32xf32, #tpu.memory_space<vmem>>, vector<1x32xf32>
    %127 = vector.broadcast %126 : vector<1x32xf32> to vector<8x32xf32>
    %128 = arith.addf %125, %127 : vector<8x32xf32>
    %129 = arith.addf %1, %128 : vector<8x32xf32>
    %cst_57 = arith.constant dense<0.000000e+00> : vector<8xf32>
    %130 = vector.multi_reduction <add>, %129, %cst_57 [1] : vector<8x32xf32> to vector<8xf32>
    %131 = vector.shape_cast %130 : vector<8xf32> to vector<8x1xf32>
    %cst_58 = arith.constant 3.200000e+01 : f32
    %132 = vector.broadcast %cst_58 : f32 to vector<8x1xf32>
    %133 = arith.divf %131, %132 : vector<8x1xf32>
    %134 = vector.broadcast %133 : vector<8x1xf32> to vector<8x32xf32>
    %135 = arith.subf %129, %134 : vector<8x32xf32>
    %136 = arith.mulf %135, %135 : vector<8x32xf32>
    %cst_59 = arith.constant dense<0.000000e+00> : vector<8xf32>
    %137 = vector.multi_reduction <add>, %136, %cst_59 [1] : vector<8x32xf32> to vector<8xf32>
    %138 = vector.shape_cast %137 : vector<8xf32> to vector<8x1xf32>
    %cst_60 = arith.constant 3.100000e+01 : f32
    %139 = vector.broadcast %cst_60 : f32 to vector<8x1xf32>
    %140 = arith.divf %138, %139 : vector<8x1xf32>
    %c0_61 = arith.constant 0 : index
    %c0_62 = arith.constant 0 : index
    %141 = vector.load %arg13[%c0_61, %c0_62] : memref<1x32xf32, #tpu.memory_space<vmem>>, vector<1x32xf32>
    %142 = vector.broadcast %133 : vector<8x1xf32> to vector<8x32xf32>
    %143 = arith.subf %129, %142 : vector<8x32xf32>
    %144 = vector.broadcast %141 : vector<1x32xf32> to vector<8x32xf32>
    %145 = arith.mulf %144, %143 : vector<8x32xf32>
    %146 = math.sqrt %140 : vector<8x1xf32>
    %cst_63 = arith.constant 9.99999997E-7 : f32
    %147 = vector.broadcast %cst_63 : f32 to vector<8x1xf32>
    %148 = arith.addf %146, %147 : vector<8x1xf32>
    %149 = vector.broadcast %148 : vector<8x1xf32> to vector<8x32xf32>
    %150 = arith.divf %145, %149 : vector<8x32xf32>
    %c0_64 = arith.constant 0 : index
    %c0_65 = arith.constant 0 : index
    %151 = vector.load %arg14[%c0_64, %c0_65] : memref<1x32xf32, #tpu.memory_space<vmem>>, vector<1x32xf32>
    %152 = vector.broadcast %151 : vector<1x32xf32> to vector<8x32xf32>
    %153 = arith.addf %150, %152 : vector<8x32xf32>
    %c0_66 = arith.constant 0 : index
    %c0_67 = arith.constant 0 : index
    %154 = vector.load %arg15[%c0_66, %c0_67] : memref<32x32xf32, #tpu.memory_space<vmem>>, vector<32x32xf32>
    %cst_68 = arith.constant dense<0.000000e+00> : vector<8x32xf32>
    %155 = tpu.matmul %153, %154, %cst_68 {dimension_numbers = #tpu.dot_dimension_numbers<[1], [0], [0], [1], [0, 0, 1, 1], [], []>} : vector<8x32xf32>, vector<32x32xf32>, vector<8x32xf32> -> vector<8x32xf32>
    %c0_69 = arith.constant 0 : index
    %c0_70 = arith.constant 0 : index
    %156 = vector.load %arg16[%c0_69, %c0_70] : memref<1x32xf32, #tpu.memory_space<vmem>>, vector<1x32xf32>
    %157 = vector.broadcast %156 : vector<1x32xf32> to vector<8x32xf32>
    %158 = arith.addf %155, %157 : vector<8x32xf32>
    %c0_71 = arith.constant 0 : index
    %c0_72 = arith.constant 0 : index
    %159 = vector.load %arg17[%c0_71, %c0_72] : memref<32x32xf32, #tpu.memory_space<vmem>>, vector<32x32xf32>
    %cst_73 = arith.constant dense<0.000000e+00> : vector<16x32xf32>
    %160 = tpu.matmul %3, %159, %cst_73 {dimension_numbers = #tpu.dot_dimension_numbers<[1], [0], [0], [1], [0, 0, 1, 1], [], []>} : vector<16x32xf32>, vector<32x32xf32>, vector<16x32xf32> -> vector<16x32xf32>
    %c0_74 = arith.constant 0 : index
    %c0_75 = arith.constant 0 : index
    %161 = vector.load %arg18[%c0_74, %c0_75] : memref<1x32xf32, #tpu.memory_space<vmem>>, vector<1x32xf32>
    %162 = vector.broadcast %161 : vector<1x32xf32> to vector<16x32xf32>
    %163 = arith.addf %160, %162 : vector<16x32xf32>
    %c0_76 = arith.constant 0 : index
    %c0_77 = arith.constant 0 : index
    %164 = vector.load %arg19[%c0_76, %c0_77] : memref<32x32xf32, #tpu.memory_space<vmem>>, vector<32x32xf32>
    %cst_78 = arith.constant dense<0.000000e+00> : vector<16x32xf32>
    %165 = tpu.matmul %3, %164, %cst_78 {dimension_numbers = #tpu.dot_dimension_numbers<[1], [0], [0], [1], [0, 0, 1, 1], [], []>} : vector<16x32xf32>, vector<32x32xf32>, vector<16x32xf32> -> vector<16x32xf32>
    %c0_79 = arith.constant 0 : index
    %c0_80 = arith.constant 0 : index
    %166 = vector.load %arg20[%c0_79, %c0_80] : memref<1x32xf32, #tpu.memory_space<vmem>>, vector<1x32xf32>
    %167 = vector.broadcast %166 : vector<1x32xf32> to vector<16x32xf32>
    %168 = arith.addf %165, %167 : vector<16x32xf32>
    %c0_81 = arith.constant 0 : index
    %c0_82 = arith.constant 0 : index
    %169 = vector.load %arg4[%c0_81, %c0_82] : memref<8x16xf32, #tpu.memory_space<vmem>>, vector<8x16xf32>
    %170 = vector.shape_cast %169 : vector<8x16xf32> to vector<1x8x16xf32>
    %cst_83 = arith.constant 0.000000e+00 : f32
    %171 = vector.broadcast %cst_83 : f32 to vector<8x32xf32>
    %172 = vector.extract_strided_slice %158 {offsets = [0, 0], sizes = [8, 8], strides = [1, 1]} : vector<8x32xf32> to vector<8x8xf32>
    %173 = vector.shape_cast %172 : vector<8x8xf32> to vector<1x8x8xf32>
    %174 = vector.extract_strided_slice %163 {offsets = [0, 0], sizes = [16, 8], strides = [1, 1]} : vector<16x32xf32> to vector<16x8xf32>
    %175 = vector.shape_cast %174 : vector<16x8xf32> to vector<1x16x8xf32>
    %176 = vector.extract_strided_slice %168 {offsets = [0, 0], sizes = [16, 8], strides = [1, 1]} : vector<16x32xf32> to vector<16x8xf32>
    %177 = vector.shape_cast %176 : vector<16x8xf32> to vector<1x16x8xf32>
    "tpu.trace_start"() <{level = 10 : i32, message = "bqd,bkd->bqk"}> : () -> ()
    %cst_84 = arith.constant dense<0.000000e+00> : vector<1x8x16xf32>
    %178 = tpu.matmul %173, %175, %cst_84 {dimension_numbers = #tpu.dot_dimension_numbers<[2], [2], [1], [1], [0, 0, 0, 1, 1, 1], [0], [0]>} : vector<1x8x8xf32>, vector<1x16x8xf32>, vector<1x8x16xf32> -> vector<1x8x16xf32>
    "tpu.trace_stop"() : () -> ()
    %cst_85 = arith.constant 0.353553385 : f32
    %179 = vector.broadcast %cst_85 : f32 to vector<1x8x16xf32>
    %180 = arith.mulf %178, %179 : vector<1x8x16xf32>
    %181 = arith.addf %180, %170 : vector<1x8x16xf32>
    %cst_86 = arith.constant dense<0xFF800000> : vector<1x8xf32>
    %182 = vector.multi_reduction <maximumf>, %181, %cst_86 [2] : vector<1x8x16xf32> to vector<1x8xf32>
    %cst_87 = arith.constant 0xFF800000 : f32
    %183 = vector.broadcast %cst_87 : f32 to vector<1x8xf32>
    %184 = arith.maximumf %183, %182 : vector<1x8xf32>
    %185 = vector.shape_cast %184 : vector<1x8xf32> to vector<1x8x1xf32>
    %186 = vector.broadcast %185 : vector<1x8x1xf32> to vector<1x8x16xf32>
    %187 = arith.subf %181, %186 : vector<1x8x16xf32>
    %188 = math.exp %187 : vector<1x8x16xf32>
    %cst_88 = arith.constant dense<0.000000e+00> : vector<1x8xf32>
    %189 = vector.multi_reduction <add>, %188, %cst_88 [2] : vector<1x8x16xf32> to vector<1x8xf32>
    %190 = vector.shape_cast %189 : vector<1x8xf32> to vector<1x8x1xf32>
    %191 = vector.broadcast %190 : vector<1x8x1xf32> to vector<1x8x16xf32>
    %192 = arith.divf %188, %191 : vector<1x8x16xf32>
    "tpu.trace_start"() <{level = 10 : i32, message = "bqk,bkd->bqd"}> : () -> ()
    %cst_89 = arith.constant dense<0.000000e+00> : vector<1x8x8xf32>
    %193 = tpu.matmul %192, %177, %cst_89 {dimension_numbers = #tpu.dot_dimension_numbers<[2], [1], [1], [2], [0, 0, 0, 1, 1, 2], [0], [0]>} : vector<1x8x16xf32>, vector<1x16x8xf32>, vector<1x8x8xf32> -> vector<1x8x8xf32>
    "tpu.trace_stop"() : () -> ()
    %194 = vector.shape_cast %193 : vector<1x8x8xf32> to vector<8x8xf32>
    %c0_90 = arith.constant 0 : index
    %c0_91 = arith.constant 0 : index
    %195 = vector.load %arg21[%c0_90, %c0_91] : memref<32x32xf32, #tpu.memory_space<vmem>>, vector<8x32xf32>
    %cst_92 = arith.constant dense<0.000000e+00> : vector<8x32xf32>
    %196 = tpu.matmul %194, %195, %cst_92 {dimension_numbers = #tpu.dot_dimension_numbers<[1], [0], [0], [1], [0, 0, 1, 1], [], []>} : vector<8x8xf32>, vector<8x32xf32>, vector<8x32xf32> -> vector<8x32xf32>
    %197 = arith.addf %171, %196 : vector<8x32xf32>
    %198 = vector.extract_strided_slice %158 {offsets = [0, 8], sizes = [8, 8], strides = [1, 1]} : vector<8x32xf32> to vector<8x8xf32>
    %199 = vector.shape_cast %198 : vector<8x8xf32> to vector<1x8x8xf32>
    %200 = vector.extract_strided_slice %163 {offsets = [0, 8], sizes = [16, 8], strides = [1, 1]} : vector<16x32xf32> to vector<16x8xf32>
    %201 = vector.shape_cast %200 : vector<16x8xf32> to vector<1x16x8xf32>
    %202 = vector.extract_strided_slice %168 {offsets = [0, 8], sizes = [16, 8], strides = [1, 1]} : vector<16x32xf32> to vector<16x8xf32>
    %203 = vector.shape_cast %202 : vector<16x8xf32> to vector<1x16x8xf32>
    "tpu.trace_start"() <{level = 10 : i32, message = "bqd,bkd->bqk"}> : () -> ()
    %cst_93 = arith.constant dense<0.000000e+00> : vector<1x8x16xf32>
    %204 = tpu.matmul %199, %201, %cst_93 {dimension_numbers = #tpu.dot_dimension_numbers<[2], [2], [1], [1], [0, 0, 0, 1, 1, 1], [0], [0]>} : vector<1x8x8xf32>, vector<1x16x8xf32>, vector<1x8x16xf32> -> vector<1x8x16xf32>
    "tpu.trace_stop"() : () -> ()
    %cst_94 = arith.constant 0.353553385 : f32
    %205 = vector.broadcast %cst_94 : f32 to vector<1x8x16xf32>
    %206 = arith.mulf %204, %205 : vector<1x8x16xf32>
    %207 = arith.addf %206, %170 : vector<1x8x16xf32>
    %cst_95 = arith.constant dense<0xFF800000> : vector<1x8xf32>
    %208 = vector.multi_reduction <maximumf>, %207, %cst_95 [2] : vector<1x8x16xf32> to vector<1x8xf32>
    %cst_96 = arith.constant 0xFF800000 : f32
    %209 = vector.broadcast %cst_96 : f32 to vector<1x8xf32>
    %210 = arith.maximumf %209, %208 : vector<1x8xf32>
    %211 = vector.shape_cast %210 : vector<1x8xf32> to vector<1x8x1xf32>
    %212 = vector.broadcast %211 : vector<1x8x1xf32> to vector<1x8x16xf32>
    %213 = arith.subf %207, %212 : vector<1x8x16xf32>
    %214 = math.exp %213 : vector<1x8x16xf32>
    %cst_97 = arith.constant dense<0.000000e+00> : vector<1x8xf32>
    %215 = vector.multi_reduction <add>, %214, %cst_97 [2] : vector<1x8x16xf32> to vector<1x8xf32>
    %216 = vector.shape_cast %215 : vector<1x8xf32> to vector<1x8x1xf32>
    %217 = vector.broadcast %216 : vector<1x8x1xf32> to vector<1x8x16xf32>
    %218 = arith.divf %214, %217 : vector<1x8x16xf32>
    "tpu.trace_start"() <{level = 10 : i32, message = "bqk,bkd->bqd"}> : () -> ()
    %cst_98 = arith.constant dense<0.000000e+00> : vector<1x8x8xf32>
    %219 = tpu.matmul %218, %203, %cst_98 {dimension_numbers = #tpu.dot_dimension_numbers<[2], [1], [1], [2], [0, 0, 0, 1, 1, 2], [0], [0]>} : vector<1x8x16xf32>, vector<1x16x8xf32>, vector<1x8x8xf32> -> vector<1x8x8xf32>
    "tpu.trace_stop"() : () -> ()
    %220 = vector.shape_cast %219 : vector<1x8x8xf32> to vector<8x8xf32>
    %c8_99 = arith.constant 8 : index
    %c0_100 = arith.constant 0 : index
    %221 = vector.load %arg21[%c8_99, %c0_100] : memref<32x32xf32, #tpu.memory_space<vmem>>, vector<8x32xf32>
    %cst_101 = arith.constant dense<0.000000e+00> : vector<8x32xf32>
    %222 = tpu.matmul %220, %221, %cst_101 {dimension_numbers = #tpu.dot_dimension_numbers<[1], [0], [0], [1], [0, 0, 1, 1], [], []>} : vector<8x8xf32>, vector<8x32xf32>, vector<8x32xf32> -> vector<8x32xf32>
    %223 = arith.addf %197, %222 : vector<8x32xf32>
    %224 = vector.extract_strided_slice %158 {offsets = [0, 16], sizes = [8, 8], strides = [1, 1]} : vector<8x32xf32> to vector<8x8xf32>
    %225 = vector.shape_cast %224 : vector<8x8xf32> to vector<1x8x8xf32>
    %226 = vector.extract_strided_slice %163 {offsets = [0, 16], sizes = [16, 8], strides = [1, 1]} : vector<16x32xf32> to vector<16x8xf32>
    %227 = vector.shape_cast %226 : vector<16x8xf32> to vector<1x16x8xf32>
    %228 = vector.extract_strided_slice %168 {offsets = [0, 16], sizes = [16, 8], strides = [1, 1]} : vector<16x32xf32> to vector<16x8xf32>
    %229 = vector.shape_cast %228 : vector<16x8xf32> to vector<1x16x8xf32>
    "tpu.trace_start"() <{level = 10 : i32, message = "bqd,bkd->bqk"}> : () -> ()
    %cst_102 = arith.constant dense<0.000000e+00> : vector<1x8x16xf32>
    %230 = tpu.matmul %225, %227, %cst_102 {dimension_numbers = #tpu.dot_dimension_numbers<[2], [2], [1], [1], [0, 0, 0, 1, 1, 1], [0], [0]>} : vector<1x8x8xf32>, vector<1x16x8xf32>, vector<1x8x16xf32> -> vector<1x8x16xf32>
    "tpu.trace_stop"() : () -> ()
    %cst_103 = arith.constant 0.353553385 : f32
    %231 = vector.broadcast %cst_103 : f32 to vector<1x8x16xf32>
    %232 = arith.mulf %230, %231 : vector<1x8x16xf32>
    %233 = arith.addf %232, %170 : vector<1x8x16xf32>
    %cst_104 = arith.constant dense<0xFF800000> : vector<1x8xf32>
    %234 = vector.multi_reduction <maximumf>, %233, %cst_104 [2] : vector<1x8x16xf32> to vector<1x8xf32>
    %cst_105 = arith.constant 0xFF800000 : f32
    %235 = vector.broadcast %cst_105 : f32 to vector<1x8xf32>
    %236 = arith.maximumf %235, %234 : vector<1x8xf32>
    %237 = vector.shape_cast %236 : vector<1x8xf32> to vector<1x8x1xf32>
    %238 = vector.broadcast %237 : vector<1x8x1xf32> to vector<1x8x16xf32>
    %239 = arith.subf %233, %238 : vector<1x8x16xf32>
    %240 = math.exp %239 : vector<1x8x16xf32>
    %cst_106 = arith.constant dense<0.000000e+00> : vector<1x8xf32>
    %241 = vector.multi_reduction <add>, %240, %cst_106 [2] : vector<1x8x16xf32> to vector<1x8xf32>
    %242 = vector.shape_cast %241 : vector<1x8xf32> to vector<1x8x1xf32>
    %243 = vector.broadcast %242 : vector<1x8x1xf32> to vector<1x8x16xf32>
    %244 = arith.divf %240, %243 : vector<1x8x16xf32>
    "tpu.trace_start"() <{level = 10 : i32, message = "bqk,bkd->bqd"}> : () -> ()
    %cst_107 = arith.constant dense<0.000000e+00> : vector<1x8x8xf32>
    %245 = tpu.matmul %244, %229, %cst_107 {dimension_numbers = #tpu.dot_dimension_numbers<[2], [1], [1], [2], [0, 0, 0, 1, 1, 2], [0], [0]>} : vector<1x8x16xf32>, vector<1x16x8xf32>, vector<1x8x8xf32> -> vector<1x8x8xf32>
    "tpu.trace_stop"() : () -> ()
    %246 = vector.shape_cast %245 : vector<1x8x8xf32> to vector<8x8xf32>
    %c16_108 = arith.constant 16 : index
    %c0_109 = arith.constant 0 : index
    %247 = vector.load %arg21[%c16_108, %c0_109] : memref<32x32xf32, #tpu.memory_space<vmem>>, vector<8x32xf32>
    %cst_110 = arith.constant dense<0.000000e+00> : vector<8x32xf32>
    %248 = tpu.matmul %246, %247, %cst_110 {dimension_numbers = #tpu.dot_dimension_numbers<[1], [0], [0], [1], [0, 0, 1, 1], [], []>} : vector<8x8xf32>, vector<8x32xf32>, vector<8x32xf32> -> vector<8x32xf32>
    %249 = arith.addf %223, %248 : vector<8x32xf32>
    %250 = vector.extract_strided_slice %158 {offsets = [0, 24], sizes = [8, 8], strides = [1, 1]} : vector<8x32xf32> to vector<8x8xf32>
    %251 = vector.shape_cast %250 : vector<8x8xf32> to vector<1x8x8xf32>
    %252 = vector.extract_strided_slice %163 {offsets = [0, 24], sizes = [16, 8], strides = [1, 1]} : vector<16x32xf32> to vector<16x8xf32>
    %253 = vector.shape_cast %252 : vector<16x8xf32> to vector<1x16x8xf32>
    %254 = vector.extract_strided_slice %168 {offsets = [0, 24], sizes = [16, 8], strides = [1, 1]} : vector<16x32xf32> to vector<16x8xf32>
    %255 = vector.shape_cast %254 : vector<16x8xf32> to vector<1x16x8xf32>
    "tpu.trace_start"() <{level = 10 : i32, message = "bqd,bkd->bqk"}> : () -> ()
    %cst_111 = arith.constant dense<0.000000e+00> : vector<1x8x16xf32>
    %256 = tpu.matmul %251, %253, %cst_111 {dimension_numbers = #tpu.dot_dimension_numbers<[2], [2], [1], [1], [0, 0, 0, 1, 1, 1], [0], [0]>} : vector<1x8x8xf32>, vector<1x16x8xf32>, vector<1x8x16xf32> -> vector<1x8x16xf32>
    "tpu.trace_stop"() : () -> ()
    %cst_112 = arith.constant 0.353553385 : f32
    %257 = vector.broadcast %cst_112 : f32 to vector<1x8x16xf32>
    %258 = arith.mulf %256, %257 : vector<1x8x16xf32>
    %259 = arith.addf %258, %170 : vector<1x8x16xf32>
    %cst_113 = arith.constant dense<0xFF800000> : vector<1x8xf32>
    %260 = vector.multi_reduction <maximumf>, %259, %cst_113 [2] : vector<1x8x16xf32> to vector<1x8xf32>
    %cst_114 = arith.constant 0xFF800000 : f32
    %261 = vector.broadcast %cst_114 : f32 to vector<1x8xf32>
    %262 = arith.maximumf %261, %260 : vector<1x8xf32>
    %263 = vector.shape_cast %262 : vector<1x8xf32> to vector<1x8x1xf32>
    %264 = vector.broadcast %263 : vector<1x8x1xf32> to vector<1x8x16xf32>
    %265 = arith.subf %259, %264 : vector<1x8x16xf32>
    %266 = math.exp %265 : vector<1x8x16xf32>
    %cst_115 = arith.constant dense<0.000000e+00> : vector<1x8xf32>
    %267 = vector.multi_reduction <add>, %266, %cst_115 [2] : vector<1x8x16xf32> to vector<1x8xf32>
    %268 = vector.shape_cast %267 : vector<1x8xf32> to vector<1x8x1xf32>
    %269 = vector.broadcast %268 : vector<1x8x1xf32> to vector<1x8x16xf32>
    %270 = arith.divf %266, %269 : vector<1x8x16xf32>
    "tpu.trace_start"() <{level = 10 : i32, message = "bqk,bkd->bqd"}> : () -> ()
    %cst_116 = arith.constant dense<0.000000e+00> : vector<1x8x8xf32>
    %271 = tpu.matmul %270, %255, %cst_116 {dimension_numbers = #tpu.dot_dimension_numbers<[2], [1], [1], [2], [0, 0, 0, 1, 1, 2], [0], [0]>} : vector<1x8x16xf32>, vector<1x16x8xf32>, vector<1x8x8xf32> -> vector<1x8x8xf32>
    "tpu.trace_stop"() : () -> ()
    %272 = vector.shape_cast %271 : vector<1x8x8xf32> to vector<8x8xf32>
    %c24_117 = arith.constant 24 : index
    %c0_118 = arith.constant 0 : index
    %273 = vector.load %arg21[%c24_117, %c0_118] : memref<32x32xf32, #tpu.memory_space<vmem>>, vector<8x32xf32>
    %cst_119 = arith.constant dense<0.000000e+00> : vector<8x32xf32>
    %274 = tpu.matmul %272, %273, %cst_119 {dimension_numbers = #tpu.dot_dimension_numbers<[1], [0], [0], [1], [0, 0, 1, 1], [], []>} : vector<8x8xf32>, vector<8x32xf32>, vector<8x32xf32> -> vector<8x32xf32>
    %275 = arith.addf %249, %274 : vector<8x32xf32>
    %c0_120 = arith.constant 0 : index
    %c0_121 = arith.constant 0 : index
    %276 = vector.load %arg22[%c0_120, %c0_121] : memref<1x32xf32, #tpu.memory_space<vmem>>, vector<1x32xf32>
    %277 = vector.broadcast %276 : vector<1x32xf32> to vector<8x32xf32>
    %278 = arith.addf %275, %277 : vector<8x32xf32>
    %279 = arith.addf %153, %278 : vector<8x32xf32>
    %cst_122 = arith.constant dense<0.000000e+00> : vector<8xf32>
    %280 = vector.multi_reduction <add>, %279, %cst_122 [1] : vector<8x32xf32> to vector<8xf32>
    %281 = vector.shape_cast %280 : vector<8xf32> to vector<8x1xf32>
    %cst_123 = arith.constant 3.200000e+01 : f32
    %282 = vector.broadcast %cst_123 : f32 to vector<8x1xf32>
    %283 = arith.divf %281, %282 : vector<8x1xf32>
    %284 = vector.broadcast %283 : vector<8x1xf32> to vector<8x32xf32>
    %285 = arith.subf %279, %284 : vector<8x32xf32>
    %286 = arith.mulf %285, %285 : vector<8x32xf32>
    %cst_124 = arith.constant dense<0.000000e+00> : vector<8xf32>
    %287 = vector.multi_reduction <add>, %286, %cst_124 [1] : vector<8x32xf32> to vector<8xf32>
    %288 = vector.shape_cast %287 : vector<8xf32> to vector<8x1xf32>
    %cst_125 = arith.constant 3.100000e+01 : f32
    %289 = vector.broadcast %cst_125 : f32 to vector<8x1xf32>
    %290 = arith.divf %288, %289 : vector<8x1xf32>
    %c0_126 = arith.constant 0 : index
    %c0_127 = arith.constant 0 : index
    %291 = vector.load %arg23[%c0_126, %c0_127] : memref<1x32xf32, #tpu.memory_space<vmem>>, vector<1x32xf32>
    %292 = vector.broadcast %283 : vector<8x1xf32> to vector<8x32xf32>
    %293 = arith.subf %279, %292 : vector<8x32xf32>
    %294 = vector.broadcast %291 : vector<1x32xf32> to vector<8x32xf32>
    %295 = arith.mulf %294, %293 : vector<8x32xf32>
    %296 = math.sqrt %290 : vector<8x1xf32>
    %cst_128 = arith.constant 9.99999997E-7 : f32
    %297 = vector.broadcast %cst_128 : f32 to vector<8x1xf32>
    %298 = arith.addf %296, %297 : vector<8x1xf32>
    %299 = vector.broadcast %298 : vector<8x1xf32> to vector<8x32xf32>
    %300 = arith.divf %295, %299 : vector<8x32xf32>
    %c0_129 = arith.constant 0 : index
    %c0_130 = arith.constant 0 : index
    %301 = vector.load %arg24[%c0_129, %c0_130] : memref<1x32xf32, #tpu.memory_space<vmem>>, vector<1x32xf32>
    %302 = vector.broadcast %301 : vector<1x32xf32> to vector<8x32xf32>
    %303 = arith.addf %300, %302 : vector<8x32xf32>
    %c0_131 = arith.constant 0 : index
    %c0_132 = arith.constant 0 : index
    %304 = vector.load %arg25[%c0_131, %c0_132] : memref<32x64xf32, #tpu.memory_space<vmem>>, vector<32x64xf32>
    %cst_133 = arith.constant dense<0.000000e+00> : vector<8x64xf32>
    %305 = tpu.matmul %303, %304, %cst_133 {dimension_numbers = #tpu.dot_dimension_numbers<[1], [0], [0], [1], [0, 0, 1, 1], [], []>} : vector<8x32xf32>, vector<32x64xf32>, vector<8x64xf32> -> vector<8x64xf32>
    %c0_134 = arith.constant 0 : index
    %c0_135 = arith.constant 0 : index
    %306 = vector.load %arg26[%c0_134, %c0_135] : memref<1x64xf32, #tpu.memory_space<vmem>>, vector<1x64xf32>
    %307 = vector.broadcast %306 : vector<1x64xf32> to vector<8x64xf32>
    %308 = arith.addf %305, %307 : vector<8x64xf32>
    %cst_136 = arith.constant 0.000000e+00 : f32
    %309 = vector.broadcast %cst_136 : f32 to vector<8x64xf32>
    %310 = arith.maximumf %308, %309 : vector<8x64xf32>
    %c0_137 = arith.constant 0 : index
    %c0_138 = arith.constant 0 : index
    %311 = vector.load %arg27[%c0_137, %c0_138] : memref<64x32xf32, #tpu.memory_space<vmem>>, vector<64x32xf32>
    %cst_139 = arith.constant dense<0.000000e+00> : vector<8x32xf32>
    %312 = tpu.matmul %310, %311, %cst_139 {dimension_numbers = #tpu.dot_dimension_numbers<[1], [0], [0], [1], [0, 0, 1, 1], [], []>} : vector<8x64xf32>, vector<64x32xf32>, vector<8x32xf32> -> vector<8x32xf32>
    %c0_140 = arith.constant 0 : index
    %c0_141 = arith.constant 0 : index
    %313 = vector.load %arg28[%c0_140, %c0_141] : memref<1x32xf32, #tpu.memory_space<vmem>>, vector<1x32xf32>
    %314 = vector.broadcast %313 : vector<1x32xf32> to vector<8x32xf32>
    %315 = arith.addf %312, %314 : vector<8x32xf32>
    %316 = arith.addf %303, %315 : vector<8x32xf32>
    %cst_142 = arith.constant dense<0.000000e+00> : vector<8xf32>
    %317 = vector.multi_reduction <add>, %316, %cst_142 [1] : vector<8x32xf32> to vector<8xf32>
    %318 = vector.shape_cast %317 : vector<8xf32> to vector<8x1xf32>
    %cst_143 = arith.constant 3.200000e+01 : f32
    %319 = vector.broadcast %cst_143 : f32 to vector<8x1xf32>
    %320 = arith.divf %318, %319 : vector<8x1xf32>
    %321 = vector.broadcast %320 : vector<8x1xf32> to vector<8x32xf32>
    %322 = arith.subf %316, %321 : vector<8x32xf32>
    %323 = arith.mulf %322, %322 : vector<8x32xf32>
    %cst_144 = arith.constant dense<0.000000e+00> : vector<8xf32>
    %324 = vector.multi_reduction <add>, %323, %cst_144 [1] : vector<8x32xf32> to vector<8xf32>
    %325 = vector.shape_cast %324 : vector<8xf32> to vector<8x1xf32>
    %cst_145 = arith.constant 3.100000e+01 : f32
    %326 = vector.broadcast %cst_145 : f32 to vector<8x1xf32>
    %327 = arith.divf %325, %326 : vector<8x1xf32>
    %c0_146 = arith.constant 0 : index
    %c0_147 = arith.constant 0 : index
    %328 = vector.load %arg29[%c0_146, %c0_147] : memref<1x32xf32, #tpu.memory_space<vmem>>, vector<1x32xf32>
    %329 = vector.broadcast %320 : vector<8x1xf32> to vector<8x32xf32>
    %330 = arith.subf %316, %329 : vector<8x32xf32>
    %331 = vector.broadcast %328 : vector<1x32xf32> to vector<8x32xf32>
    %332 = arith.mulf %331, %330 : vector<8x32xf32>
    %333 = math.sqrt %327 : vector<8x1xf32>
    %cst_148 = arith.constant 9.99999997E-7 : f32
    %334 = vector.broadcast %cst_148 : f32 to vector<8x1xf32>
    %335 = arith.addf %333, %334 : vector<8x1xf32>
    %336 = vector.broadcast %335 : vector<8x1xf32> to vector<8x32xf32>
    %337 = arith.divf %332, %336 : vector<8x32xf32>
    %c0_149 = arith.constant 0 : index
    %c0_150 = arith.constant 0 : index
    %338 = vector.load %arg30[%c0_149, %c0_150] : memref<1x32xf32, #tpu.memory_space<vmem>>, vector<1x32xf32>
    %339 = vector.broadcast %338 : vector<1x32xf32> to vector<8x32xf32>
    %340 = arith.addf %337, %339 : vector<8x32xf32>
    %341 = vector.shape_cast %340 : vector<8x32xf32> to vector<1x8x32xf32>
    %c0_151 = arith.constant 0 : index
    %c0_152 = arith.constant 0 : index
    %c0_153 = arith.constant 0 : index
    %342 = vector.load %arg31[%c0_151, %c0_152, %c0_153] : memref<1x8x32xf32, #tpu.memory_space<vmem>>, vector<1x8x32xf32>
    tpu.vector_store %arg31[%c0_151, %c0_152, %c0_153], %341 {strides = array<i32>} : memref<1x8x32xf32, #tpu.memory_space<vmem>>, vector<1x8x32xf32>,
    return
  }
  func.func @transform_0(%arg0: i32) -> (i32, i32, i32) {
    %c0_i32 = arith.constant 0 : i32
    %c0_i32_0 = arith.constant 0 : i32
    %c0_i32_1 = arith.constant 0 : i32
    return %arg0, %c0_i32, %c0_i32_0 : i32, i32, i32
  }
  func.func @transform_1(%arg0: i32) -> (i32, i32, i32) {
    %c0_i32 = arith.constant 0 : i32
    %c0_i32_0 = arith.constant 0 : i32
    %c0_i32_1 = arith.constant 0 : i32
    return %arg0, %c0_i32, %c0_i32_0 : i32, i32, i32
  }
  func.func @transform_2(%arg0: i32) -> (i32, i32) {
    %c0_i32 = arith.constant 0 : i32
    %c0_i32_0 = arith.constant 0 : i32
    %c0_i32_1 = arith.constant 0 : i32
    return %c0_i32, %c0_i32_0 : i32, i32
  }
  func.func @transform_3(%arg0: i32) -> (i32, i32) {
    %c0_i32 = arith.constant 0 : i32
    %c0_i32_0 = arith.constant 0 : i32
    %c0_i32_1 = arith.constant 0 : i32
    return %c0_i32, %c0_i32_0 : i32, i32
  }
  func.func @transform_4(%arg0: i32) -> (i32, i32) {
    %c0_i32 = arith.constant 0 : i32
    %c0_i32_0 = arith.constant 0 : i32
    %c0_i32_1 = arith.constant 0 : i32
    return %c0_i32, %c0_i32_0 : i32, i32
  }
  func.func @transform_5(%arg0: i32) -> (i32, i32) {
    %c0_i32 = arith.constant 0 : i32
    %c0_i32_0 = arith.constant 0 : i32
    %c0_i32_1 = arith.constant 0 : i32
    return %c0_i32, %c0_i32_0 : i32, i32
  }
  func.func @transform_6(%arg0: i32) -> (i32, i32) {
    %c0_i32 = arith.constant 0 : i32
    %c0_i32_0 = arith.constant 0 : i32
    %c0_i32_1 = arith.constant 0 : i32
    return %c0_i32, %c0_i32_0 : i32, i32
  }
  func.func @transform_7(%arg0: i32) -> (i32, i32) {
    %c0_i32 = arith.constant 0 : i32
    %c0_i32_0 = arith.constant 0 : i32
    %c0_i32_1 = arith.constant 0 : i32
    return %c0_i32, %c0_i32_0 : i32, i32
  }
  func.func @transform_8(%arg0: i32) -> (i32, i32) {
    %c0_i32 = arith.constant 0 : i32
    %c0_i32_0 = arith.constant 0 : i32
    %c0_i32_1 = arith.constant 0 : i32
    return %c0_i32, %c0_i32_0 : i32, i32
  }
  func.func @transform_9(%arg0: i32) -> (i32, i32) {
    %c0_i32 = arith.constant 0 : i32
    %c0_i32_0 = arith.constant 0 : i32
    %c0_i32_1 = arith.constant 0 : i32
    return %c0_i32, %c0_i32_0 : i32, i32
  }
  func.func @transform_10(%arg0: i32) -> (i32, i32) {
    %c0_i32 = arith.constant 0 : i32
    %c0_i32_0 = arith.constant 0 : i32
    %c0_i32_1 = arith.constant 0 : i32
    return %c0_i32, %c0_i32_0 : i32, i32
  }
  func.func @transform_11(%arg0: i32) -> (i32, i32) {
    %c0_i32 = arith.constant 0 : i32
    %c0_i32_0 = arith.constant 0 : i32
    %c0_i32_1 = arith.constant 0 : i32
    return %c0_i32, %c0_i32_0 : i32, i32
  }
  func.func @transform_12(%arg0: i32) -> (i32, i32) {
    %c0_i32 = arith.constant 0 : i32
    %c0_i32_0 = arith.constant 0 : i32
    %c0_i32_1 = arith.constant 0 : i32
    return %c0_i32, %c0_i32_0 : i32, i32
  }
  func.func @transform_13(%arg0: i32) -> (i32, i32) {
    %c0_i32 = arith.constant 0 : i32
    %c0_i32_0 = arith.constant 0 : i32
    %c0_i32_1 = arith.constant 0 : i32
    return %c0_i32, %c0_i32_0 : i32, i32
  }
  func.func @transform_14(%arg0: i32) -> (i32, i32) {
    %c0_i32 = arith.constant 0 : i32
    %c0_i32_0 = arith.constant 0 : i32
    %c0_i32_1 = arith.constant 0 : i32
    return %c0_i32, %c0_i32_0 : i32, i32
  }
  func.func @transform_15(%arg0: i32) -> (i32, i32) {
    %c0_i32 = arith.constant 0 : i32
    %c0_i32_0 = arith.constant 0 : i32
    %c0_i32_1 = arith.constant 0 : i32
    return %c0_i32, %c0_i32_0 : i32, i32
  }
  func.func @transform_16(%arg0: i32) -> (i32, i32) {
    %c0_i32 = arith.constant 0 : i32
    %c0_i32_0 = arith.constant 0 : i32
    %c0_i32_1 = arith.constant 0 : i32
    return %c0_i32, %c0_i32_0 : i32, i32
  }
  func.func @transform_17(%arg0: i32) -> (i32, i32) {
    %c0_i32 = arith.constant 0 : i32
    %c0_i32_0 = arith.constant 0 : i32
    %c0_i32_1 = arith.constant 0 : i32
    return %c0_i32, %c0_i32_0 : i32, i32
  }
  func.func @transform_18(%arg0: i32) -> (i32, i32) {
    %c0_i32 = arith.constant 0 : i32
    %c0_i32_0 = arith.constant 0 : i32
    %c0_i32_1 = arith.constant 0 : i32
    return %c0_i32, %c0_i32_0 : i32, i32
  }
  func.func @transform_19(%arg0: i32) -> (i32, i32) {
    %c0_i32 = arith.constant 0 : i32
    %c0_i32_0 = arith.constant 0 : i32
    %c0_i32_1 = arith.constant 0 : i32
    return %c0_i32, %c0_i32_0 : i32, i32
  }
  func.func @transform_20(%arg0: i32) -> (i32, i32) {
    %c0_i32 = arith.constant 0 : i32
    %c0_i32_0 = arith.constant 0 : i32
    %c0_i32_1 = arith.constant 0 : i32
    return %c0_i32, %c0_i32_0 : i32, i32
  }
  func.func @transform_21(%arg0: i32) -> (i32, i32) {
    %c0_i32 = arith.constant 0 : i32
    %c0_i32_0 = arith.constant 0 : i32
    %c0_i32_1 = arith.constant 0 : i32
    return %c0_i32, %c0_i32_0 : i32, i32
  }
  func.func @transform_22(%arg0: i32) -> (i32, i32) {
    %c0_i32 = arith.constant 0 : i32
    %c0_i32_0 = arith.constant 0 : i32
    %c0_i32_1 = arith.constant 0 : i32
    return %c0_i32, %c0_i32_0 : i32, i32
  }
  func.func @transform_23(%arg0: i32) -> (i32, i32) {
    %c0_i32 = arith.constant 0 : i32
    %c0_i32_0 = arith.constant 0 : i32
    %c0_i32_1 = arith.constant 0 : i32
    return %c0_i32, %c0_i32_0 : i32, i32
  }
  func.func @transform_24(%arg0: i32) -> (i32, i32) {
    %c0_i32 = arith.constant 0 : i32
    %c0_i32_0 = arith.constant 0 : i32
    %c0_i32_1 = arith.constant 0 : i32
    return %c0_i32, %c0_i32_0 : i32, i32
  }
  func.func @transform_25(%arg0: i32) -> (i32, i32) {
    %c0_i32 = arith.constant 0 : i32
    %c0_i32_0 = arith.constant 0 : i32
    %c0_i32_1 = arith.constant 0 : i32
    return %c0_i32, %c0_i32_0 : i32, i32
  }
  func.func @transform_26(%arg0: i32) -> (i32, i32) {
    %c0_i32 = arith.constant 0 : i32
    %c0_i32_0 = arith.constant 0 : i32
    %c0_i32_1 = arith.constant 0 : i32
    return %c0_i32, %c0_i32_0 : i32, i32
  }
  func.func @transform_27(%arg0: i32) -> (i32, i32) {
    %c0_i32 = arith.constant 0 : i32
    %c0_i32_0 = arith.constant 0 : i32
    %c0_i32_1 = arith.constant 0 : i32
    return %c0_i32, %c0_i32_0 : i32, i32
  }
  func.func @transform_28(%arg0: i32) -> (i32, i32) {
    %c0_i32 = arith.constant 0 : i32
    %c0_i32_0 = arith.constant 0 : i32
    %c0_i32_1 = arith.constant 0 : i32
    return %c0_i32, %c0_i32_0 : i32, i32
  }
  func.func @transform_29(%arg0: i32) -> (i32, i32) {
    %c0_i32 = arith.constant 0 : i32
    %c0_i32_0 = arith.constant 0 : i32
    %c0_i32_1 = arith.constant 0 : i32
    return %c0_i32, %c0_i32_0 : i32, i32
  }
  func.func @transform_30(%arg0: i32) -> (i32, i32, i32) {
    %c0_i32 = arith.constant 0 : i32
    %c0_i32_0 = arith.constant 0 : i32
    %c0_i32_1 = arith.constant 0 : i32
    return %arg0, %c0_i32, %c0_i32_0 : i32, i32, i32
  }
}

</mosaic_0001>

<llo_original>
// kernel: tpu_custom_call.1
$region0: #{tpu_custom_call.1}
  #allocation0 [shape = 'u32[]', space=smem, size = 0x4, offset = 0x4, fixed_abs, tag = 'smem constant byte address 0x4 - core index']
  #allocation1 [shape = 'u32[144,128]{1,0:T(1,128)}', space=vmem, size = 0x12000, scoped, tag = 'internal scratch']
  %s0 = inlined_call_operand.smem [shape: u32[31], index: -1, kind: input, shape index: {}]
  %s1 = sld [smem:[%s0]]
  %s2 = scalar_lea.smem %s0, 1
  %s3 = sld [smem:[%s2]]
  %s4 = scalar_lea.smem %s0, 2
  %s5 = sld [smem:[%s4]]
  %s6 = scalar_lea.smem %s0, 3
  %s7 = sld [smem:[%s6]]
  %s8 = scalar_lea.smem %s0, 4
  %s9 = sld [smem:[%s8]]
  %s10 = scalar_lea.smem %s0, 5
  %s11 = sld [smem:[%s10]]
  %s12 = scalar_lea.smem %s0, 6
  %s13 = sld [smem:[%s12]]
  %s14 = scalar_lea.smem %s0, 7
  %s15 = sld [smem:[%s14]]
  %s16 = scalar_lea.smem %s0, 8
  %s17 = sld [smem:[%s16]]
  %s18 = scalar_lea.smem %s0, 9
  %s19 = sld [smem:[%s18]]
  %s20 = scalar_lea.smem %s0, 10
  %s21 = sld [smem:[%s20]]
  %s22 = scalar_lea.smem %s0, 11
  %s23 = sld [smem:[%s22]]
  %s24 = scalar_lea.smem %s0, 12
  %s25 = sld [smem:[%s24]]
  %s26 = scalar_lea.smem %s0, 13
  %s27 = sld [smem:[%s26]]
  %s28 = scalar_lea.smem %s0, 14
  %s29 = sld [smem:[%s28]]
  %s30 = scalar_lea.smem %s0, 15
  %s31 = sld [smem:[%s30]]
  %s32 = scalar_lea.smem %s0, 16
  %s33 = sld [smem:[%s32]]
  %s34 = scalar_lea.smem %s0, 17
  %s35 = sld [smem:[%s34]]
  %s36 = scalar_lea.smem %s0, 18
  %s37 = sld [smem:[%s36]]
  %s38 = scalar_lea.smem %s0, 19
  %s39 = sld [smem:[%s38]]
  %s40 = scalar_lea.smem %s0, 20
  %s41 = sld [smem:[%s40]]
  %s42 = scalar_lea.smem %s0, 21
  %s43 = sld [smem:[%s42]]
  %s44 = scalar_lea.smem %s0, 22
  %s45 = sld [smem:[%s44]]
  %s46 = scalar_lea.smem %s0, 23
  %s47 = sld [smem:[%s46]]
  %s48 = scalar_lea.smem %s0, 24
  %s49 = sld [smem:[%s48]]
  %s50 = scalar_lea.smem %s0, 25
  %s51 = sld [smem:[%s50]]
  %s52 = scalar_lea.smem %s0, 26
  %s53 = sld [smem:[%s52]]
  %s54 = scalar_lea.smem %s0, 27
  %s55 = sld [smem:[%s54]]
  %s56 = scalar_lea.smem %s0, 28
  %s57 = sld [smem:[%s56]]
  %s58 = scalar_lea.smem %s0, 29
  %s59 = sld [smem:[%s58]]
  %s60 = scalar_lea.smem %s0, 30
  %s61 = sld [smem:[%s60]]
  %s62 = sld [smem:[#allocation0]]
  $region193: #{tpu_custom_call.1} parent=0
    _
  %s64 = ssub.s32 1, %s62
  %s65 = scalar_select 0, %s64, %s62
  $region1: #{tpu_custom_call.1} parent=0
    #allocation2 [shape = 'u8[8192]{0}', space=vmem, size = 0x2000, scoped, tag = 'input window, operand 0']
    #allocation3 [shape = 's32[2]{0}', space=sflag, size = 0x8, scoped, tag = 'scoped memory for tpu_custom_call.1']
    #allocation4 [shape = 's32[2]{0}', space=sflag, size = 0x8, scoped, tag = 'scoped memory for tpu_custom_call.1']
    #allocation5 [shape = 'u8[4096]{0}', space=vmem, size = 0x1000, scoped, tag = 'input window, operand 2, single buffered']
    #allocation6 [shape = 's32[1]{0}', space=sflag, size = 0x4, scoped, tag = 'scoped memory for tpu_custom_call.1']
    #allocation7 [shape = 'u8[4096]{0}', space=vmem, size = 0x1000, scoped, tag = 'input window, operand 3, single buffered']
    #allocation8 [shape = 'u8[16384]{0}', space=vmem, size = 0x4000, scoped, tag = 'input window, operand 8, single buffered']
    #allocation9 [shape = 's32[1]{0}', space=sflag, size = 0x4, scoped, tag = 'scoped memory for tpu_custom_call.1']
    #allocation10 [shape = 'u8[16384]{0}', space=vmem, size = 0x4000, scoped, tag = 'input window, operand 10, single buffered']
    #allocation11 [shape = 'u8[16384]{0}', space=vmem, size = 0x4000, scoped, tag = 'input window, operand 14, single buffered']
    #allocation12 [shape = 's32[1]{0}', space=sflag, size = 0x4, scoped, tag = 'scoped memory for tpu_custom_call.1']
    #allocation13 [shape = 'u8[16384]{0}', space=vmem, size = 0x4000, scoped, tag = 'input window, operand 16, single buffered']
    #allocation14 [shape = 'u8[16384]{0}', space=vmem, size = 0x4000, scoped, tag = 'input window, operand 18, single buffered']
    #allocation15 [shape = 's32[1]{0}', space=sflag, size = 0x4, scoped, tag = 'scoped memory for tpu_custom_call.1']
    #allocation16 [shape = 'u8[16384]{0}', space=vmem, size = 0x4000, scoped, tag = 'input window, operand 20, single buffered']
    #allocation17 [shape = 'u8[16384]{0}', space=vmem, size = 0x4000, scoped, tag = 'input window, operand 24, single buffered']
    #allocation18 [shape = 's32[1]{0}', space=sflag, size = 0x4, scoped, tag = 'scoped memory for tpu_custom_call.1']
    #allocation19 [shape = 'u8[8192]{0}', space=vmem, size = 0x2000, scoped, tag = 'output window, operand 0']
    %66 = vsyncpa [#allocation3], 0
    %s67 = scalar_lea.sflag [#allocation3], 1
    %68 = vsyncpa %s67, 0
    %69 = vsyncpa [#allocation6], 0
    %70 = vsyncpa [#allocation9], 0
    %71 = vsyncpa [#allocation12], 0
    %72 = vsyncpa [#allocation15], 0
    %73 = vsyncpa [#allocation18], 0
    %74 = vsyncpa [#allocation4], 0
    %s75 = scalar_lea.sflag [#allocation4], 1
    %76 = vsyncpa %s75, 0
    loop: start=0, step=1, limit=4
    $region2: #{tpu_custom_call.1} parent=1 // loop_pre_header
      _
    $region3: #{tpu_custom_call.1} parent=1 // loop_header
      %s78 = sphi 0, %s82
      %p79 = scmp.ge.s32.totalorder %s78, 4
      %s88 = sphi 0, %s90
      %s91 = sphi 0, %s88
      %s92 = sphi 0, %s91
      %s108 = sphi 0, %s92
      %s114 = sphi 0, %s116
      %s117 = sphi 0, %s114
      %s118 = sphi 0, %s117
      %s134 = sphi 0, %s118
      %s138 = sphi 0, %s138
      %s140 = sphi 0, %s138
      %s141 = sphi 0, %s140
      %s155 = sphi 0, %s141
      %s159 = sphi 0, %s159
      %s161 = sphi 0, %s159
      %s162 = sphi 0, %s161
      %s176 = sphi 0, %s162
      %s180 = sphi 0, %s180
      %s182 = sphi 0, %s180
      %s183 = sphi 0, %s182
      %s197 = sphi 0, %s183
      %s201 = sphi 0, %s201
      %s203 = sphi 0, %s201
      %s204 = sphi 0, %s203
      %s218 = sphi 0, %s204
      %s222 = sphi 0, %s222
      %s224 = sphi 0, %s222
      %s225 = sphi 0, %s224
      %s239 = sphi 0, %s225
      %s243 = sphi 0, %s243
      %s245 = sphi 0, %s243
      %s246 = sphi 0, %s245
      %s260 = sphi 0, %s246
      %s264 = sphi 0, %s264
      %s266 = sphi 0, %s264
      %s267 = sphi 0, %s266
      %s281 = sphi 0, %s267
      %s285 = sphi 0, %s285
      %s287 = sphi 0, %s285
      %s288 = sphi 0, %s287
      %s302 = sphi 0, %s288
      %s306 = sphi 0, %s306
      %s308 = sphi 0, %s306
      %s309 = sphi 0, %s308
      %s323 = sphi 0, %s309
      %s327 = sphi 0, %s327
      %s329 = sphi 0, %s327
      %s330 = sphi 0, %s329
      %s344 = sphi 0, %s330
      %s348 = sphi 0, %s348
      %s350 = sphi 0, %s348
      %s351 = sphi 0, %s350
      %s365 = sphi 0, %s351
      %s369 = sphi 0, %s369
      %s371 = sphi 0, %s369
      %s372 = sphi 0, %s371
      %s386 = sphi 0, %s372
      %s390 = sphi 0, %s390
      %s392 = sphi 0, %s390
      %s393 = sphi 0, %s392
      %s407 = sphi 0, %s393
      %s411 = sphi 0, %s411
      %s413 = sphi 0, %s411
      %s414 = sphi 0, %s413
      %s428 = sphi 0, %s414
      %s432 = sphi 0, %s432
      %s434 = sphi 0, %s432
      %s435 = sphi 0, %s434
      %s449 = sphi 0, %s435
      %s453 = sphi 0, %s453
      %s455 = sphi 0, %s453
      %s456 = sphi 0, %s455
      %s470 = sphi 0, %s456
      %s474 = sphi 0, %s474
      %s476 = sphi 0, %s474
      %s477 = sphi 0, %s476
      %s491 = sphi 0, %s477
      %s495 = sphi 0, %s495
      %s497 = sphi 0, %s495
      %s498 = sphi 0, %s497
      %s512 = sphi 0, %s498
      %s516 = sphi 0, %s516
      %s518 = sphi 0, %s516
      %s519 = sphi 0, %s518
      %s533 = sphi 0, %s519
      %s537 = sphi 0, %s537
      %s539 = sphi 0, %s537
      %s540 = sphi 0, %s539
      %s554 = sphi 0, %s540
      %s558 = sphi 0, %s558
      %s560 = sphi 0, %s558
      %s561 = sphi 0, %s560
      %s575 = sphi 0, %s561
      %s579 = sphi 0, %s579
      %s581 = sphi 0, %s579
      %s582 = sphi 0, %s581
      %s596 = sphi 0, %s582
      %s600 = sphi 0, %s600
      %s602 = sphi 0, %s600
      %s603 = sphi 0, %s602
      %s617 = sphi 0, %s603
      %s621 = sphi 0, %s621
      %s623 = sphi 0, %s621
      %s624 = sphi 0, %s623
      %s638 = sphi 0, %s624
      %s642 = sphi 0, %s642
      %s644 = sphi 0, %s642
      %s645 = sphi 0, %s644
      %s659 = sphi 0, %s645
      %s663 = sphi 0, %s663
      %s665 = sphi 0, %s663
      %s666 = sphi 0, %s665
      %s680 = sphi 0, %s666
      %s684 = sphi 0, %s684
      %s686 = sphi 0, %s684
      %s687 = sphi 0, %s686
      %s701 = sphi 0, %s687
      %s705 = sphi 0, %s705
      %s707 = sphi 0, %s705
      %s708 = sphi 0, %s707
      %s722 = sphi 0, %s708
      %s728 = sphi 0, %s730
      %s731 = sphi 0, %s728
      %s732 = sphi 0, %s731
      %s748 = sphi 0, %s732
    $region4: #{tpu_custom_call.1} parent=1 // loop_header_branch
      %81 = sbr.rel (%p79) target = $region8
    $region5: #{tpu_custom_call.1} parent=1 // loop_body
      %s83 = ssub.s32 %s78, 1
      %s84 = ssub.s32 %s78, 2
      %s85 = sadd.s32 %s78, 1
      %s86 = ssub.s32 %s78, %s85
      %p87 = scmp.eq.s32.totalorder %s86, 0
      %s89 = sadd.s32 %s88, 1
      %s90 = scalar_select %p87, %s88, %s89
      %p93 = pneg %p87
      %p94 = scmp.eq.s32.totalorder %s78, 1
      %p95 = por %p93, %p94
      %p96 = scmp.ne.s32.totalorder %s88, %s91
      %p97 = scmp.eq.s32.totalorder %s78, 0
      %p98 = por %p96, %p97
      %p99 = scmp.ne.s32.totalorder %s88, %s91
      %p100 = scmp.eq.s32.totalorder %s83, 1
      %p101 = por %p99, %p100
      %p102 = scmp.ne.s32.totalorder %s91, %s92
      %p103 = scmp.eq.s32.totalorder %s83, 0
      %p104 = por %p102, %p103
      %p105 = scmp.ne.s32.totalorder %s91, %s92
      %p106 = scmp.eq.s32.totalorder %s84, 1
      %p107 = por %p105, %p106
      %p109 = scmp.ne.s32.totalorder %s92, %s108
      %p110 = scmp.eq.s32.totalorder %s84, 0
      %p111 = por %p109, %p110
      %s112 = ssub.s32 %s78, %s85
      %p113 = scmp.eq.s32.totalorder %s112, 0
      %s115 = sadd.s32 %s114, 1
      %s116 = scalar_select %p113, %s114, %s115
      %p119 = pneg %p113
      %p120 = scmp.eq.s32.totalorder %s78, 1
      %p121 = por %p119, %p120
      %p122 = scmp.ne.s32.totalorder %s114, %s117
      %p123 = scmp.eq.s32.totalorder %s78, 0
      %p124 = por %p122, %p123
      %p125 = scmp.ne.s32.totalorder %s114, %s117
      %p126 = scmp.eq.s32.totalorder %s83, 1
      %p127 = por %p125, %p126
      %p128 = scmp.ne.s32.totalorder %s117, %s118
      %p129 = scmp.eq.s32.totalorder %s83, 0
      %p130 = por %p128, %p129
      %p131 = scmp.ne.s32.totalorder %s117, %s118
      %p132 = scmp.eq.s32.totalorder %s84, 1
      %p133 = por %p131, %p132
      %p135 = scmp.ne.s32.totalorder %s118, %s134
      %p136 = scmp.eq.s32.totalorder %s84, 0
      %p137 = por %p135, %p136
      %s139 = sadd.s32 %s138, 1
      %p142 = scmp.eq.s32.totalorder %s78, 1
      %p143 = scmp.ne.s32.totalorder %s138, %s140
      %p144 = scmp.eq.s32.totalorder %s78, 0
      %p145 = por %p143, %p144
      %p146 = scmp.ne.s32.totalorder %s138, %s140
      %p147 = scmp.eq.s32.totalorder %s83, 1
      %p148 = por %p146, %p147
      %p149 = scmp.ne.s32.totalorder %s140, %s141
      %p150 = scmp.eq.s32.totalorder %s83, 0
      %p151 = por %p149, %p150
      %p152 = scmp.ne.s32.totalorder %s140, %s141
      %p153 = scmp.eq.s32.totalorder %s84, 1
      %p154 = por %p152, %p153
      %p156 = scmp.ne.s32.totalorder %s141, %s155
      %p157 = scmp.eq.s32.totalorder %s84, 0
      %p158 = por %p156, %p157
      %s160 = sadd.s32 %s159, 1
      %p163 = scmp.eq.s32.totalorder %s78, 1
      %p164 = scmp.ne.s32.totalorder %s159, %s161
      %p165 = scmp.eq.s32.totalorder %s78, 0
      %p166 = por %p164, %p165
      %p167 = scmp.ne.s32.totalorder %s159, %s161
      %p168 = scmp.eq.s32.totalorder %s83, 1
      %p169 = por %p167, %p168
      %p170 = scmp.ne.s32.totalorder %s161, %s162
      %p171 = scmp.eq.s32.totalorder %s83, 0
      %p172 = por %p170, %p171
      %p173 = scmp.ne.s32.totalorder %s161, %s162
      %p174 = scmp.eq.s32.totalorder %s84, 1
      %p175 = por %p173, %p174
      %p177 = scmp.ne.s32.totalorder %s162, %s176
      %p178 = scmp.eq.s32.totalorder %s84, 0
      %p179 = por %p177, %p178
      %s181 = sadd.s32 %s180, 1
      %p184 = scmp.eq.s32.totalorder %s78, 1
      %p185 = scmp.ne.s32.totalorder %s180, %s182
      %p186 = scmp.eq.s32.totalorder %s78, 0
      %p187 = por %p185, %p186
      %p188 = scmp.ne.s32.totalorder %s180, %s182
      %p189 = scmp.eq.s32.totalorder %s83, 1
      %p190 = por %p188, %p189
      %p191 = scmp.ne.s32.totalorder %s182, %s183
      %p192 = scmp.eq.s32.totalorder %s83, 0
      %p193 = por %p191, %p192
      %p194 = scmp.ne.s32.totalorder %s182, %s183
      %p195 = scmp.eq.s32.totalorder %s84, 1
      %p196 = por %p194, %p195
      %p198 = scmp.ne.s32.totalorder %s183, %s197
      %p199 = scmp.eq.s32.totalorder %s84, 0
      %p200 = por %p198, %p199
      %s202 = sadd.s32 %s201, 1
      %p205 = scmp.eq.s32.totalorder %s78, 1
      %p206 = scmp.ne.s32.totalorder %s201, %s203
      %p207 = scmp.eq.s32.totalorder %s78, 0
      %p208 = por %p206, %p207
      %p209 = scmp.ne.s32.totalorder %s201, %s203
      %p210 = scmp.eq.s32.totalorder %s83, 1
      %p211 = por %p209, %p210
      %p212 = scmp.ne.s32.totalorder %s203, %s204
      %p213 = scmp.eq.s32.totalorder %s83, 0
      %p214 = por %p212, %p213
      %p215 = scmp.ne.s32.totalorder %s203, %s204
      %p216 = scmp.eq.s32.totalorder %s84, 1
      %p217 = por %p215, %p216
      %p219 = scmp.ne.s32.totalorder %s204, %s218
      %p220 = scmp.eq.s32.totalorder %s84, 0
      %p221 = por %p219, %p220
      %s223 = sadd.s32 %s222, 1
      %p226 = scmp.eq.s32.totalorder %s78, 1
      %p227 = scmp.ne.s32.totalorder %s222, %s224
      %p228 = scmp.eq.s32.totalorder %s78, 0
      %p229 = por %p227, %p228
      %p230 = scmp.ne.s32.totalorder %s222, %s224
      %p231 = scmp.eq.s32.totalorder %s83, 1
      %p232 = por %p230, %p231
      %p233 = scmp.ne.s32.totalorder %s224, %s225
      %p234 = scmp.eq.s32.totalorder %s83, 0
      %p235 = por %p233, %p234
      %p236 = scmp.ne.s32.totalorder %s224, %s225
      %p237 = scmp.eq.s32.totalorder %s84, 1
      %p238 = por %p236, %p237
      %p240 = scmp.ne.s32.totalorder %s225, %s239
      %p241 = scmp.eq.s32.totalorder %s84, 0
      %p242 = por %p240, %p241
      %s244 = sadd.s32 %s243, 1
      %p247 = scmp.eq.s32.totalorder %s78, 1
      %p248 = scmp.ne.s32.totalorder %s243, %s245
      %p249 = scmp.eq.s32.totalorder %s78, 0
      %p250 = por %p248, %p249
      %p251 = scmp.ne.s32.totalorder %s243, %s245
      %p252 = scmp.eq.s32.totalorder %s83, 1
      %p253 = por %p251, %p252
      %p254 = scmp.ne.s32.totalorder %s245, %s246
      %p255 = scmp.eq.s32.totalorder %s83, 0
      %p256 = por %p254, %p255
      %p257 = scmp.ne.s32.totalorder %s245, %s246
      %p258 = scmp.eq.s32.totalorder %s84, 1
      %p259 = por %p257, %p258
      %p261 = scmp.ne.s32.totalorder %s246, %s260
      %p262 = scmp.eq.s32.totalorder %s84, 0
      %p263 = por %p261, %p262
      %s265 = sadd.s32 %s264, 1
      %p268 = scmp.eq.s32.totalorder %s78, 1
      %p269 = scmp.ne.s32.totalorder %s264, %s266
      %p270 = scmp.eq.s32.totalorder %s78, 0
      %p271 = por %p269, %p270
      %p272 = scmp.ne.s32.totalorder %s264, %s266
      %p273 = scmp.eq.s32.totalorder %s83, 1
      %p274 = por %p272, %p273
      %p275 = scmp.ne.s32.totalorder %s266, %s267
      %p276 = scmp.eq.s32.totalorder %s83, 0
      %p277 = por %p275, %p276
      %p278 = scmp.ne.s32.totalorder %s266, %s267
      %p279 = scmp.eq.s32.totalorder %s84, 1
      %p280 = por %p278, %p279
      %p282 = scmp.ne.s32.totalorder %s267, %s281
      %p283 = scmp.eq.s32.totalorder %s84, 0
      %p284 = por %p282, %p283
      %s286 = sadd.s32 %s285, 1
      %p289 = scmp.eq.s32.totalorder %s78, 1
      %p290 = scmp.ne.s32.totalorder %s285, %s287
      %p291 = scmp.eq.s32.totalorder %s78, 0
      %p292 = por %p290, %p291
      %p293 = scmp.ne.s32.totalorder %s285, %s287
      %p294 = scmp.eq.s32.totalorder %s83, 1
      %p295 = por %p293, %p294
      %p296 = scmp.ne.s32.totalorder %s287, %s288
      %p297 = scmp.eq.s32.totalorder %s83, 0
      %p298 = por %p296, %p297
      %p299 = scmp.ne.s32.totalorder %s287, %s288
      %p300 = scmp.eq.s32.totalorder %s84, 1
      %p301 = por %p299, %p300
      %p303 = scmp.ne.s32.totalorder %s288, %s302
      %p304 = scmp.eq.s32.totalorder %s84, 0
      %p305 = por %p303, %p304
      %s307 = sadd.s32 %s306, 1
      %p310 = scmp.eq.s32.totalorder %s78, 1
      %p311 = scmp.ne.s32.totalorder %s306, %s308
      %p312 = scmp.eq.s32.totalorder %s78, 0
      %p313 = por %p311, %p312
      %p314 = scmp.ne.s32.totalorder %s306, %s308
      %p315 = scmp.eq.s32.totalorder %s83, 1
      %p316 = por %p314, %p315
      %p317 = scmp.ne.s32.totalorder %s308, %s309
      %p318 = scmp.eq.s32.totalorder %s83, 0
      %p319 = por %p317, %p318
      %p320 = scmp.ne.s32.totalorder %s308, %s309
      %p321 = scmp.eq.s32.totalorder %s84, 1
      %p322 = por %p320, %p321
      %p324 = scmp.ne.s32.totalorder %s309, %s323
      %p325 = scmp.eq.s32.totalorder %s84, 0
      %p326 = por %p324, %p325
      %s328 = sadd.s32 %s327, 1
      %p331 = scmp.eq.s32.totalorder %s78, 1
      %p332 = scmp.ne.s32.totalorder %s327, %s329
      %p333 = scmp.eq.s32.totalorder %s78, 0
      %p334 = por %p332, %p333
      %p335 = scmp.ne.s32.totalorder %s327, %s329
      %p336 = scmp.eq.s32.totalorder %s83, 1
      %p337 = por %p335, %p336
      %p338 = scmp.ne.s32.totalorder %s329, %s330
      %p339 = scmp.eq.s32.totalorder %s83, 0
      %p340 = por %p338, %p339
      %p341 = scmp.ne.s32.totalorder %s329, %s330
      %p342 = scmp.eq.s32.totalorder %s84, 1
      %p343 = por %p341, %p342
      %p345 = scmp.ne.s32.totalorder %s330, %s344
      %p346 = scmp.eq.s32.totalorder %s84, 0
      %p347 = por %p345, %p346
      %s349 = sadd.s32 %s348, 1
      %p352 = scmp.eq.s32.totalorder %s78, 1
      %p353 = scmp.ne.s32.totalorder %s348, %s350
      %p354 = scmp.eq.s32.totalorder %s78, 0
      %p355 = por %p353, %p354
      %p356 = scmp.ne.s32.totalorder %s348, %s350
      %p357 = scmp.eq.s32.totalorder %s83, 1
      %p358 = por %p356, %p357
      %p359 = scmp.ne.s32.totalorder %s350, %s351
      %p360 = scmp.eq.s32.totalorder %s83, 0
      %p361 = por %p359, %p360
      %p362 = scmp.ne.s32.totalorder %s350, %s351
      %p363 = scmp.eq.s32.totalorder %s84, 1
      %p364 = por %p362, %p363
      %p366 = scmp.ne.s32.totalorder %s351, %s365
      %p367 = scmp.eq.s32.totalorder %s84, 0
      %p368 = por %p366, %p367
      %s370 = sadd.s32 %s369, 1
      %p373 = scmp.eq.s32.totalorder %s78, 1
      %p374 = scmp.ne.s32.totalorder %s369, %s371
      %p375 = scmp.eq.s32.totalorder %s78, 0
      %p376 = por %p374, %p375
      %p377 = scmp.ne.s32.totalorder %s369, %s371
      %p378 = scmp.eq.s32.totalorder %s83, 1
      %p379 = por %p377, %p378
      %p380 = scmp.ne.s32.totalorder %s371, %s372
      %p381 = scmp.eq.s32.totalorder %s83, 0
      %p382 = por %p380, %p381
      %p383 = scmp.ne.s32.totalorder %s371, %s372
      %p384 = scmp.eq.s32.totalorder %s84, 1
      %p385 = por %p383, %p384
      %p387 = scmp.ne.s32.totalorder %s372, %s386
      %p388 = scmp.eq.s32.totalorder %s84, 0
      %p389 = por %p387, %p388
      %s391 = sadd.s32 %s390, 1
      %p394 = scmp.eq.s32.totalorder %s78, 1
      %p395 = scmp.ne.s32.totalorder %s390, %s392
      %p396 = scmp.eq.s32.totalorder %s78, 0
      %p397 = por %p395, %p396
      %p398 = scmp.ne.s32.totalorder %s390, %s392
      %p399 = scmp.eq.s32.totalorder %s83, 1
      %p400 = por %p398, %p399
      %p401 = scmp.ne.s32.totalorder %s392, %s393
      %p402 = scmp.eq.s32.totalorder %s83, 0
      %p403 = por %p401, %p402
      %p404 = scmp.ne.s32.totalorder %s392, %s393
      %p405 = scmp.eq.s32.totalorder %s84, 1
      %p406 = por %p404, %p405
      %p408 = scmp.ne.s32.totalorder %s393, %s407
      %p409 = scmp.eq.s32.totalorder %s84, 0
      %p410 = por %p408, %p409
      %s412 = sadd.s32 %s411, 1
      %p415 = scmp.eq.s32.totalorder %s78, 1
      %p416 = scmp.ne.s32.totalorder %s411, %s413
      %p417 = scmp.eq.s32.totalorder %s78, 0
      %p418 = por %p416, %p417
      %p419 = scmp.ne.s32.totalorder %s411, %s413
      %p420 = scmp.eq.s32.totalorder %s83, 1
      %p421 = por %p419, %p420
      %p422 = scmp.ne.s32.totalorder %s413, %s414
      %p423 = scmp.eq.s32.totalorder %s83, 0
      %p424 = por %p422, %p423
      %p425 = scmp.ne.s32.totalorder %s413, %s414
      %p426 = scmp.eq.s32.totalorder %s84, 1
      %p427 = por %p425, %p426
      %p429 = scmp.ne.s32.totalorder %s414, %s428
      %p430 = scmp.eq.s32.totalorder %s84, 0
      %p431 = por %p429, %p430
      %s433 = sadd.s32 %s432, 1
      %p436 = scmp.eq.s32.totalorder %s78, 1
      %p437 = scmp.ne.s32.totalorder %s432, %s434
      %p438 = scmp.eq.s32.totalorder %s78, 0
      %p439 = por %p437, %p438
      %p440 = scmp.ne.s32.totalorder %s432, %s434
      %p441 = scmp.eq.s32.totalorder %s83, 1
      %p442 = por %p440, %p441
      %p443 = scmp.ne.s32.totalorder %s434, %s435
      %p444 = scmp.eq.s32.totalorder %s83, 0
      %p445 = por %p443, %p444
      %p446 = scmp.ne.s32.totalorder %s434, %s435
      %p447 = scmp.eq.s32.totalorder %s84, 1
      %p448 = por %p446, %p447
      %p450 = scmp.ne.s32.totalorder %s435, %s449
      %p451 = scmp.eq.s32.totalorder %s84, 0
      %p452 = por %p450, %p451
      %s454 = sadd.s32 %s453, 1
      %p457 = scmp.eq.s32.totalorder %s78, 1
      %p458 = scmp.ne.s32.totalorder %s453, %s455
      %p459 = scmp.eq.s32.totalorder %s78, 0
      %p460 = por %p458, %p459
      %p461 = scmp.ne.s32.totalorder %s453, %s455
      %p462 = scmp.eq.s32.totalorder %s83, 1
      %p463 = por %p461, %p462
      %p464 = scmp.ne.s32.totalorder %s455, %s456
      %p465 = scmp.eq.s32.totalorder %s83, 0
      %p466 = por %p464, %p465
      %p467 = scmp.ne.s32.totalorder %s455, %s456
      %p468 = scmp.eq.s32.totalorder %s84, 1
      %p469 = por %p467, %p468
      %p471 = scmp.ne.s32.totalorder %s456, %s470
      %p472 = scmp.eq.s32.totalorder %s84, 0
      %p473 = por %p471, %p472
      %s475 = sadd.s32 %s474, 1
      %p478 = scmp.eq.s32.totalorder %s78, 1
      %p479 = scmp.ne.s32.totalorder %s474, %s476
      %p480 = scmp.eq.s32.totalorder %s78, 0
      %p481 = por %p479, %p480
      %p482 = scmp.ne.s32.totalorder %s474, %s476
      %p483 = scmp.eq.s32.totalorder %s83, 1
      %p484 = por %p482, %p483
      %p485 = scmp.ne.s32.totalorder %s476, %s477
      %p486 = scmp.eq.s32.totalorder %s83, 0
      %p487 = por %p485, %p486
      %p488 = scmp.ne.s32.totalorder %s476, %s477
      %p489 = scmp.eq.s32.totalorder %s84, 1
      %p490 = por %p488, %p489
      %p492 = scmp.ne.s32.totalorder %s477, %s491
      %p493 = scmp.eq.s32.totalorder %s84, 0
      %p494 = por %p492, %p493
      %s496 = sadd.s32 %s495, 1
      %p499 = scmp.eq.s32.totalorder %s78, 1
      %p500 = scmp.ne.s32.totalorder %s495, %s497
      %p501 = scmp.eq.s32.totalorder %s78, 0
      %p502 = por %p500, %p501
      %p503 = scmp.ne.s32.totalorder %s495, %s497
      %p504 = scmp.eq.s32.totalorder %s83, 1
      %p505 = por %p503, %p504
      %p506 = scmp.ne.s32.totalorder %s497, %s498
      %p507 = scmp.eq.s32.totalorder %s83, 0
      %p508 = por %p506, %p507
      %p509 = scmp.ne.s32.totalorder %s497, %s498
      %p510 = scmp.eq.s32.totalorder %s84, 1
      %p511 = por %p509, %p510
      %p513 = scmp.ne.s32.totalorder %s498, %s512
      %p514 = scmp.eq.s32.totalorder %s84, 0
      %p515 = por %p513, %p514
      %s517 = sadd.s32 %s516, 1
      %p520 = scmp.eq.s32.totalorder %s78, 1
      %p521 = scmp.ne.s32.totalorder %s516, %s518
      %p522 = scmp.eq.s32.totalorder %s78, 0
      %p523 = por %p521, %p522
      %p524 = scmp.ne.s32.totalorder %s516, %s518
      %p525 = scmp.eq.s32.totalorder %s83, 1
      %p526 = por %p524, %p525
      %p527 = scmp.ne.s32.totalorder %s518, %s519
      %p528 = scmp.eq.s32.totalorder %s83, 0
      %p529 = por %p527, %p528
      %p530 = scmp.ne.s32.totalorder %s518, %s519
      %p531 = scmp.eq.s32.totalorder %s84, 1
      %p532 = por %p530, %p531
      %p534 = scmp.ne.s32.totalorder %s519, %s533
      %p535 = scmp.eq.s32.totalorder %s84, 0
      %p536 = por %p534, %p535
      %s538 = sadd.s32 %s537, 1
      %p541 = scmp.eq.s32.totalorder %s78, 1
      %p542 = scmp.ne.s32.totalorder %s537, %s539
      %p543 = scmp.eq.s32.totalorder %s78, 0
      %p544 = por %p542, %p543
      %p545 = scmp.ne.s32.totalorder %s537, %s539
      %p546 = scmp.eq.s32.totalorder %s83, 1
      %p547 = por %p545, %p546
      %p548 = scmp.ne.s32.totalorder %s539, %s540
      %p549 = scmp.eq.s32.totalorder %s83, 0
      %p550 = por %p548, %p549
      %p551 = scmp.ne.s32.totalorder %s539, %s540
      %p552 = scmp.eq.s32.totalorder %s84, 1
      %p553 = por %p551, %p552
      %p555 = scmp.ne.s32.totalorder %s540, %s554
      %p556 = scmp.eq.s32.totalorder %s84, 0
      %p557 = por %p555, %p556
      %s559 = sadd.s32 %s558, 1
      %p562 = scmp.eq.s32.totalorder %s78, 1
      %p563 = scmp.ne.s32.totalorder %s558, %s560
      %p564 = scmp.eq.s32.totalorder %s78, 0
      %p565 = por %p563, %p564
      %p566 = scmp.ne.s32.totalorder %s558, %s560
      %p567 = scmp.eq.s32.totalorder %s83, 1
      %p568 = por %p566, %p567
      %p569 = scmp.ne.s32.totalorder %s560, %s561
      %p570 = scmp.eq.s32.totalorder %s83, 0
      %p571 = por %p569, %p570
      %p572 = scmp.ne.s32.totalorder %s560, %s561
      %p573 = scmp.eq.s32.totalorder %s84, 1
      %p574 = por %p572, %p573
      %p576 = scmp.ne.s32.totalorder %s561, %s575
      %p577 = scmp.eq.s32.totalorder %s84, 0
      %p578 = por %p576, %p577
      %s580 = sadd.s32 %s579, 1
      %p583 = scmp.eq.s32.totalorder %s78, 1
      %p584 = scmp.ne.s32.totalorder %s579, %s581
      %p585 = scmp.eq.s32.totalorder %s78, 0
      %p586 = por %p584, %p585
      %p587 = scmp.ne.s32.totalorder %s579, %s581
      %p588 = scmp.eq.s32.totalorder %s83, 1
      %p589 = por %p587, %p588
      %p590 = scmp.ne.s32.totalorder %s581, %s582
      %p591 = scmp.eq.s32.totalorder %s83, 0
      %p592 = por %p590, %p591
      %p593 = scmp.ne.s32.totalorder %s581, %s582
      %p594 = scmp.eq.s32.totalorder %s84, 1
      %p595 = por %p593, %p594
      %p597 = scmp.ne.s32.totalorder %s582, %s596
      %p598 = scmp.eq.s32.totalorder %s84, 0
      %p599 = por %p597, %p598
      %s601 = sadd.s32 %s600, 1
      %p604 = scmp.eq.s32.totalorder %s78, 1
      %p605 = scmp.ne.s32.totalorder %s600, %s602
      %p606 = scmp.eq.s32.totalorder %s78, 0
      %p607 = por %p605, %p606
      %p608 = scmp.ne.s32.totalorder %s600, %s602
      %p609 = scmp.eq.s32.totalorder %s83, 1
      %p610 = por %p608, %p609
      %p611 = scmp.ne.s32.totalorder %s602, %s603
      %p612 = scmp.eq.s32.totalorder %s83, 0
      %p613 = por %p611, %p612
      %p614 = scmp.ne.s32.totalorder %s602, %s603
      %p615 = scmp.eq.s32.totalorder %s84, 1
      %p616 = por %p614, %p615
      %p618 = scmp.ne.s32.totalorder %s603, %s617
      %p619 = scmp.eq.s32.totalorder %s84, 0
      %p620 = por %p618, %p619
      %s622 = sadd.s32 %s621, 1
      %p625 = scmp.eq.s32.totalorder %s78, 1
      %p626 = scmp.ne.s32.totalorder %s621, %s623
      %p627 = scmp.eq.s32.totalorder %s78, 0
      %p628 = por %p626, %p627
      %p629 = scmp.ne.s32.totalorder %s621, %s623
      %p630 = scmp.eq.s32.totalorder %s83, 1
      %p631 = por %p629, %p630
      %p632 = scmp.ne.s32.totalorder %s623, %s624
      %p633 = scmp.eq.s32.totalorder %s83, 0
      %p634 = por %p632, %p633
      %p635 = scmp.ne.s32.totalorder %s623, %s624
      %p636 = scmp.eq.s32.totalorder %s84, 1
      %p637 = por %p635, %p636
      %p639 = scmp.ne.s32.totalorder %s624, %s638
      %p640 = scmp.eq.s32.totalorder %s84, 0
      %p641 = por %p639, %p640
      %s643 = sadd.s32 %s642, 1
      %p646 = scmp.eq.s32.totalorder %s78, 1
      %p647 = scmp.ne.s32.totalorder %s642, %s644
      %p648 = scmp.eq.s32.totalorder %s78, 0
      %p649 = por %p647, %p648
      %p650 = scmp.ne.s32.totalorder %s642, %s644
      %p651 = scmp.eq.s32.totalorder %s83, 1
      %p652 = por %p650, %p651
      %p653 = scmp.ne.s32.totalorder %s644, %s645
      %p654 = scmp.eq.s32.totalorder %s83, 0
      %p655 = por %p653, %p654
      %p656 = scmp.ne.s32.totalorder %s644, %s645
      %p657 = scmp.eq.s32.totalorder %s84, 1
      %p658 = por %p656, %p657
      %p660 = scmp.ne.s32.totalorder %s645, %s659
      %p661 = scmp.eq.s32.totalorder %s84, 0
      %p662 = por %p660, %p661
      %s664 = sadd.s32 %s663, 1
      %p667 = scmp.eq.s32.totalorder %s78, 1
      %p668 = scmp.ne.s32.totalorder %s663, %s665
      %p669 = scmp.eq.s32.totalorder %s78, 0
      %p670 = por %p668, %p669
      %p671 = scmp.ne.s32.totalorder %s663, %s665
      %p672 = scmp.eq.s32.totalorder %s83, 1
      %p673 = por %p671, %p672
      %p674 = scmp.ne.s32.totalorder %s665, %s666
      %p675 = scmp.eq.s32.totalorder %s83, 0
      %p676 = por %p674, %p675
      %p677 = scmp.ne.s32.totalorder %s665, %s666
      %p678 = scmp.eq.s32.totalorder %s84, 1
      %p679 = por %p677, %p678
      %p681 = scmp.ne.s32.totalorder %s666, %s680
      %p682 = scmp.eq.s32.totalorder %s84, 0
      %p683 = por %p681, %p682
      %s685 = sadd.s32 %s684, 1
      %p688 = scmp.eq.s32.totalorder %s78, 1
      %p689 = scmp.ne.s32.totalorder %s684, %s686
      %p690 = scmp.eq.s32.totalorder %s78, 0
      %p691 = por %p689, %p690
      %p692 = scmp.ne.s32.totalorder %s684, %s686
      %p693 = scmp.eq.s32.totalorder %s83, 1
      %p694 = por %p692, %p693
      %p695 = scmp.ne.s32.totalorder %s686, %s687
      %p696 = scmp.eq.s32.totalorder %s83, 0
      %p697 = por %p695, %p696
      %p698 = scmp.ne.s32.totalorder %s686, %s687
      %p699 = scmp.eq.s32.totalorder %s84, 1
      %p700 = por %p698, %p699
      %p702 = scmp.ne.s32.totalorder %s687, %s701
      %p703 = scmp.eq.s32.totalorder %s84, 0
      %p704 = por %p702, %p703
      %s706 = sadd.s32 %s705, 1
      %p709 = scmp.eq.s32.totalorder %s78, 1
      %p710 = scmp.ne.s32.totalorder %s705, %s707
      %p711 = scmp.eq.s32.totalorder %s78, 0
      %p712 = por %p710, %p711
      %p713 = scmp.ne.s32.totalorder %s705, %s707
      %p714 = scmp.eq.s32.totalorder %s83, 1
      %p715 = por %p713, %p714
      %p716 = scmp.ne.s32.totalorder %s707, %s708
      %p717 = scmp.eq.s32.totalorder %s83, 0
      %p718 = por %p716, %p717
      %p719 = scmp.ne.s32.totalorder %s707, %s708
      %p720 = scmp.eq.s32.totalorder %s84, 1
      %p721 = por %p719, %p720
      %p723 = scmp.ne.s32.totalorder %s708, %s722
      %p724 = scmp.eq.s32.totalorder %s84, 0
      %p725 = por %p723, %p724
      %s726 = ssub.s32 %s78, %s85
      %p727 = scmp.eq.s32.totalorder %s726, 0
      %s729 = sadd.s32 %s728, 1
      %s730 = scalar_select %p727, %s728, %s729
      %p733 = pneg %p727
      %p734 = scmp.eq.s32.totalorder %s78, 1
      %p735 = por %p733, %p734
      %p736 = scmp.ne.s32.totalorder %s728, %s731
      %p737 = scmp.eq.s32.totalorder %s78, 0
      %p738 = por %p736, %p737
      %p739 = scmp.ne.s32.totalorder %s728, %s731
      %p740 = scmp.eq.s32.totalorder %s83, 1
      %p741 = por %p739, %p740
      %p742 = scmp.ne.s32.totalorder %s731, %s732
      %p743 = scmp.eq.s32.totalorder %s83, 0
      %p744 = por %p742, %p743
      %p745 = scmp.ne.s32.totalorder %s731, %s732
      %p746 = scmp.eq.s32.totalorder %s84, 1
      %p747 = por %p745, %p746
      %p749 = scmp.ne.s32.totalorder %s732, %s748
      %p750 = scmp.eq.s32.totalorder %s84, 0
      %p751 = por %p749, %p750
      %p752 = scmp.le.s32.totalorder 1, %s78
      %p753 = scmp.lt.s32.totalorder %s78, 3
      %p754 = pnand %p752, %p753
      %p755 = pneg %p754
      // Predicated region
      $region9: #{tpu_custom_call.1} parent=5 // pred_check
        _
      $region10: #{tpu_custom_call.1} parent=5 // pred_check_branch
        %757 = sbr.rel (%p754) target = $region12
      $region11: #{tpu_custom_call.1} parent=5 // pred_region
        %s758 = ssub.s32 %s78, 1
        // Predicated region
        $region13: #{tpu_custom_call.1} parent=11 // pred_check
          %p759 = pneg %p151
        $region14: #{tpu_custom_call.1} parent=11 // pred_check_branch
          %761 = sbr.rel (%p759) target = $region16
        $region15: #{tpu_custom_call.1} parent=11 // pred_region
          %s763 = ssub.s32 128, 128
          %764 = vsyncadd [#allocation6], %s763
          %s766 = sshll.u32 [#allocation5], 4
          %s767 = int_to_ptr.vmem [resolvable:$true] %s766
          %769 = dma.hbm_to_vmem [thread:$0]  %s5, 128, %s767, [#allocation6]
        $region16: #{tpu_custom_call.1} parent=11 // pred_fallthru
          _
        // Predicated region
        $region17: #{tpu_custom_call.1} parent=11 // pred_check
          %p770 = pneg %p172
        $region18: #{tpu_custom_call.1} parent=11 // pred_check_branch
          %772 = sbr.rel (%p770) target = $region20
        $region19: #{tpu_custom_call.1} parent=11 // pred_region
          %s774 = ssub.s32 128, 128
          %775 = vsyncadd [#allocation6], %s774
          %s777 = sshll.u32 [#allocation7], 4
          %s778 = int_to_ptr.vmem [resolvable:$true] %s777
          %780 = dma.hbm_to_vmem [thread:$0]  %s7, 128, %s778, [#allocation6]
        $region20: #{tpu_custom_call.1} parent=11 // pred_fallthru
          _
        // Predicated region
        $region21: #{tpu_custom_call.1} parent=11 // pred_check
          %p781 = pneg %p193
        $region22: #{tpu_custom_call.1} parent=11 // pred_check_branch
          %783 = sbr.rel (%p781) target = $region24
        $region23: #{tpu_custom_call.1} parent=11 // pred_region
          _
        $region24: #{tpu_custom_call.1} parent=11 // pred_fallthru
          _
        // Predicated region
        $region25: #{tpu_custom_call.1} parent=11 // pred_check
          %p784 = pneg %p214
        $region26: #{tpu_custom_call.1} parent=11 // pred_check_branch
          %786 = sbr.rel (%p784) target = $region28
        $region27: #{tpu_custom_call.1} parent=11 // pred_region
          _
        $region28: #{tpu_custom_call.1} parent=11 // pred_fallthru
          _
        // Predicated region
        $region29: #{tpu_custom_call.1} parent=11 // pred_check
          %p787 = pneg %p235
        $region30: #{tpu_custom_call.1} parent=11 // pred_check_branch
          %789 = sbr.rel (%p787) target = $region32
        $region31: #{tpu_custom_call.1} parent=11 // pred_region
          _
        $region32: #{tpu_custom_call.1} parent=11 // pred_fallthru
          _
        // Predicated region
        $region33: #{tpu_custom_call.1} parent=11 // pred_check
          %p790 = pneg %p256
        $region34: #{tpu_custom_call.1} parent=11 // pred_check_branch
          %792 = sbr.rel (%p790) target = $region36
        $region35: #{tpu_custom_call.1} parent=11 // pred_region
          _
        $region36: #{tpu_custom_call.1} parent=11 // pred_fallthru
          _
        // Predicated region
        $region37: #{tpu_custom_call.1} parent=11 // pred_check
          %p793 = pneg %p277
        $region38: #{tpu_custom_call.1} parent=11 // pred_check_branch
          %795 = sbr.rel (%p793) target = $region40
        $region39: #{tpu_custom_call.1} parent=11 // pred_region
          %s797 = ssub.s32 512, 512
          %798 = vsyncadd [#allocation9], %s797
          %s799 = sshll.u32 [#allocation8], 4
          %s800 = int_to_ptr.vmem [resolvable:$true] %s799
          %805 = dma.hbm_to_vmem [thread:$0]  %s17, 512, %s800, [#allocation9], 128, 128, 8
        $region40: #{tpu_custom_call.1} parent=11 // pred_fallthru
          _
        // Predicated region
        $region41: #{tpu_custom_call.1} parent=11 // pred_check
          %p806 = pneg %p298
        $region42: #{tpu_custom_call.1} parent=11 // pred_check_branch
          %808 = sbr.rel (%p806) target = $region44
        $region43: #{tpu_custom_call.1} parent=11 // pred_region
          _
        $region44: #{tpu_custom_call.1} parent=11 // pred_fallthru
          _
        // Predicated region
        $region45: #{tpu_custom_call.1} parent=11 // pred_check
          %p809 = pneg %p319
        $region46: #{tpu_custom_call.1} parent=11 // pred_check_branch
          %811 = sbr.rel (%p809) target = $region48
        $region47: #{tpu_custom_call.1} parent=11 // pred_region
          %s813 = ssub.s32 512, 512
          %814 = vsyncadd [#allocation9], %s813
          %s815 = sshll.u32 [#allocation10], 4
          %s816 = int_to_ptr.vmem [resolvable:$true] %s815
          %821 = dma.hbm_to_vmem [thread:$0]  %s21, 512, %s816, [#allocation9], 128, 128, 8
        $region48: #{tpu_custom_call.1} parent=11 // pred_fallthru
          _
        // Predicated region
        $region49: #{tpu_custom_call.1} parent=11 // pred_check
          %p822 = pneg %p340
        $region50: #{tpu_custom_call.1} parent=11 // pred_check_branch
          %824 = sbr.rel (%p822) target = $region52
        $region51: #{tpu_custom_call.1} parent=11 // pred_region
          _
        $region52: #{tpu_custom_call.1} parent=11 // pred_fallthru
          _
        // Predicated region
        $region53: #{tpu_custom_call.1} parent=11 // pred_check
          %p825 = pneg %p361
        $region54: #{tpu_custom_call.1} parent=11 // pred_check_branch
          %827 = sbr.rel (%p825) target = $region56
        $region55: #{tpu_custom_call.1} parent=11 // pred_region
          _
        $region56: #{tpu_custom_call.1} parent=11 // pred_fallthru
          _
        // Predicated region
        $region57: #{tpu_custom_call.1} parent=11 // pred_check
          %p828 = pneg %p382
        $region58: #{tpu_custom_call.1} parent=11 // pred_check_branch
          %830 = sbr.rel (%p828) target = $region60
        $region59: #{tpu_custom_call.1} parent=11 // pred_region
          _
        $region60: #{tpu_custom_call.1} parent=11 // pred_fallthru
          _
        // Predicated region
        $region61: #{tpu_custom_call.1} parent=11 // pred_check
          %p831 = pneg %p403
        $region62: #{tpu_custom_call.1} parent=11 // pred_check_branch
          %833 = sbr.rel (%p831) target = $region64
        $region63: #{tpu_custom_call.1} parent=11 // pred_region
          %s835 = ssub.s32 512, 512
          %836 = vsyncadd [#allocation12], %s835
          %s837 = sshll.u32 [#allocation11], 4
          %s838 = int_to_ptr.vmem [resolvable:$true] %s837
          %843 = dma.hbm_to_vmem [thread:$0]  %s29, 512, %s838, [#allocation12], 128, 128, 8
        $region64: #{tpu_custom_call.1} parent=11 // pred_fallthru
          _
        // Predicated region
        $region65: #{tpu_custom_call.1} parent=11 // pred_check
          %p844 = pneg %p424
        $region66: #{tpu_custom_call.1} parent=11 // pred_check_branch
          %846 = sbr.rel (%p844) target = $region68
        $region67: #{tpu_custom_call.1} parent=11 // pred_region
          _
        $region68: #{tpu_custom_call.1} parent=11 // pred_fallthru
          _
        // Predicated region
        $region69: #{tpu_custom_call.1} parent=11 // pred_check
          %p847 = pneg %p445
        $region70: #{tpu_custom_call.1} parent=11 // pred_check_branch
          %849 = sbr.rel (%p847) target = $region72
        $region71: #{tpu_custom_call.1} parent=11 // pred_region
          %s851 = ssub.s32 512, 512
          %852 = vsyncadd [#allocation12], %s851
          %s853 = sshll.u32 [#allocation13], 4
          %s854 = int_to_ptr.vmem [resolvable:$true] %s853
          %859 = dma.hbm_to_vmem [thread:$0]  %s33, 512, %s854, [#allocation12], 128, 128, 8
        $region72: #{tpu_custom_call.1} parent=11 // pred_fallthru
          _
        // Predicated region
        $region73: #{tpu_custom_call.1} parent=11 // pred_check
          %p860 = pneg %p466
        $region74: #{tpu_custom_call.1} parent=11 // pred_check_branch
          %862 = sbr.rel (%p860) target = $region76
        $region75: #{tpu_custom_call.1} parent=11 // pred_region
          _
        $region76: #{tpu_custom_call.1} parent=11 // pred_fallthru
          _
        // Predicated region
        $region77: #{tpu_custom_call.1} parent=11 // pred_check
          %p863 = pneg %p487
        $region78: #{tpu_custom_call.1} parent=11 // pred_check_branch
          %865 = sbr.rel (%p863) target = $region80
        $region79: #{tpu_custom_call.1} parent=11 // pred_region
          %s867 = ssub.s32 512, 512
          %868 = vsyncadd [#allocation15], %s867
          %s869 = sshll.u32 [#allocation14], 4
          %s870 = int_to_ptr.vmem [resolvable:$true] %s869
          %875 = dma.hbm_to_vmem [thread:$0]  %s37, 512, %s870, [#allocation15], 128, 128, 8
        $region80: #{tpu_custom_call.1} parent=11 // pred_fallthru
          _
        // Predicated region
        $region81: #{tpu_custom_call.1} parent=11 // pred_check
          %p876 = pneg %p508
        $region82: #{tpu_custom_call.1} parent=11 // pred_check_branch
          %878 = sbr.rel (%p876) target = $region84
        $region83: #{tpu_custom_call.1} parent=11 // pred_region
          _
        $region84: #{tpu_custom_call.1} parent=11 // pred_fallthru
          _
        // Predicated region
        $region85: #{tpu_custom_call.1} parent=11 // pred_check
          %p879 = pneg %p529
        $region86: #{tpu_custom_call.1} parent=11 // pred_check_branch
          %881 = sbr.rel (%p879) target = $region88
        $region87: #{tpu_custom_call.1} parent=11 // pred_region
          %s883 = ssub.s32 512, 512
          %884 = vsyncadd [#allocation15], %s883
          %s885 = sshll.u32 [#allocation16], 4
          %s886 = int_to_ptr.vmem [resolvable:$true] %s885
          %891 = dma.hbm_to_vmem [thread:$0]  %s41, 512, %s886, [#allocation15], 128, 128, 8
        $region88: #{tpu_custom_call.1} parent=11 // pred_fallthru
          _
        // Predicated region
        $region89: #{tpu_custom_call.1} parent=11 // pred_check
          %p892 = pneg %p550
        $region90: #{tpu_custom_call.1} parent=11 // pred_check_branch
          %894 = sbr.rel (%p892) target = $region92
        $region91: #{tpu_custom_call.1} parent=11 // pred_region
          _
        $region92: #{tpu_custom_call.1} parent=11 // pred_fallthru
          _
        // Predicated region
        $region93: #{tpu_custom_call.1} parent=11 // pred_check
          %p895 = pneg %p571
        $region94: #{tpu_custom_call.1} parent=11 // pred_check_branch
          %897 = sbr.rel (%p895) target = $region96
        $region95: #{tpu_custom_call.1} parent=11 // pred_region
          _
        $region96: #{tpu_custom_call.1} parent=11 // pred_fallthru
          _
        // Predicated region
        $region97: #{tpu_custom_call.1} parent=11 // pred_check
          %p898 = pneg %p592
        $region98: #{tpu_custom_call.1} parent=11 // pred_check_branch
          %900 = sbr.rel (%p898) target = $region100
        $region99: #{tpu_custom_call.1} parent=11 // pred_region
          _
        $region100: #{tpu_custom_call.1} parent=11 // pred_fallthru
          _
        // Predicated region
        $region101: #{tpu_custom_call.1} parent=11 // pred_check
          %p901 = pneg %p613
        $region102: #{tpu_custom_call.1} parent=11 // pred_check_branch
          %903 = sbr.rel (%p901) target = $region104
        $region103: #{tpu_custom_call.1} parent=11 // pred_region
          %s905 = ssub.s32 512, 512
          %906 = vsyncadd [#allocation18], %s905
          %s907 = sshll.u32 [#allocation17], 4
          %s908 = int_to_ptr.vmem [resolvable:$true] %s907
          %913 = dma.hbm_to_vmem [thread:$0]  %s49, 512, %s908, [#allocation18], 128, 128, 8
        $region104: #{tpu_custom_call.1} parent=11 // pred_fallthru
          _
        // Predicated region
        $region105: #{tpu_custom_call.1} parent=11 // pred_check
          %p914 = pneg %p634
        $region106: #{tpu_custom_call.1} parent=11 // pred_check_branch
          %916 = sbr.rel (%p914) target = $region108
        $region107: #{tpu_custom_call.1} parent=11 // pred_region
          _
        $region108: #{tpu_custom_call.1} parent=11 // pred_fallthru
          _
        // Predicated region
        $region109: #{tpu_custom_call.1} parent=11 // pred_check
          %p917 = pneg %p655
        $region110: #{tpu_custom_call.1} parent=11 // pred_check_branch
          %919 = sbr.rel (%p917) target = $region112
        $region111: #{tpu_custom_call.1} parent=11 // pred_region
          _
        $region112: #{tpu_custom_call.1} parent=11 // pred_fallthru
          _
        // Predicated region
        $region113: #{tpu_custom_call.1} parent=11 // pred_check
          %p920 = pneg %p676
        $region114: #{tpu_custom_call.1} parent=11 // pred_check_branch
          %922 = sbr.rel (%p920) target = $region116
        $region115: #{tpu_custom_call.1} parent=11 // pred_region
          _
        $region116: #{tpu_custom_call.1} parent=11 // pred_fallthru
          _
        // Predicated region
        $region117: #{tpu_custom_call.1} parent=11 // pred_check
          %p923 = pneg %p697
        $region118: #{tpu_custom_call.1} parent=11 // pred_check_branch
          %925 = sbr.rel (%p923) target = $region120
        $region119: #{tpu_custom_call.1} parent=11 // pred_region
          _
        $region120: #{tpu_custom_call.1} parent=11 // pred_fallthru
          _
        // Predicated region
        $region121: #{tpu_custom_call.1} parent=11 // pred_check
          %p926 = pneg %p718
        $region122: #{tpu_custom_call.1} parent=11 // pred_check_branch
          %928 = sbr.rel (%p926) target = $region124
        $region123: #{tpu_custom_call.1} parent=11 // pred_region
          _
        $region124: #{tpu_custom_call.1} parent=11 // pred_fallthru
          _
      $region12: #{tpu_custom_call.1} parent=5 // pred_fallthru
        _
      %p929 = scmp.lt.s32.totalorder %s78, 2
      // Predicated region
      $region125: #{tpu_custom_call.1} parent=5 // pred_check
        %p930 = pneg %p929
      $region126: #{tpu_custom_call.1} parent=5 // pred_check_branch
        %932 = sbr.rel (%p930) target = $region128
      $region127: #{tpu_custom_call.1} parent=5 // pred_region
        // Predicated region
        $region129: #{tpu_custom_call.1} parent=127 // pred_check
          %p933 = pneg %p98
        $region130: #{tpu_custom_call.1} parent=127 // pred_check_branch
          %935 = sbr.rel (%p933) target = $region132
        $region131: #{tpu_custom_call.1} parent=127 // pred_region
          %s936 = sand.u32 %s88, 1
          %s937 = scalar_lea.sflag [#allocation3], %s936
          %s938 = sand.u32 %s88, 1
          %s939 = smul.addr %s938, 8
          %s940 = scalar_lea.vmem [#allocation2], %s939
          %s942 = ssub.s32 128, 128
          %943 = vsyncadd %s937, %s942
          %s944 = smul.addr %s78, 128
          %s945 = scalar_lea.hbm %s1, %s944
          %s947 = sshll.u32 %s940, 4
          %s948 = int_to_ptr.vmem [resolvable:$true] %s947
          %950 = dma.hbm_to_vmem [thread:$0]  %s945, 128, %s948, %s937
        $region132: #{tpu_custom_call.1} parent=127 // pred_fallthru
          _
        // Predicated region
        $region133: #{tpu_custom_call.1} parent=127 // pred_check
          %p951 = pneg %p124
        $region134: #{tpu_custom_call.1} parent=127 // pred_check_branch
          %953 = sbr.rel (%p951) target = $region136
        $region135: #{tpu_custom_call.1} parent=127 // pred_region
          %p954 = scmp.lt.s32.totalorder %s78, 1
          %s955 = scalar_select %p954, %s78, 1
          %s956 = smul.addr %s955, 2
          %s957 = smul.addr %s956, 8
          %s958 = scalar_lea.vmem %s3, %s957
        $region136: #{tpu_custom_call.1} parent=127 // pred_fallthru
          _
      $region128: #{tpu_custom_call.1} parent=5 // pred_fallthru
        _
      %p959 = scmp.le.s32.totalorder 1, %s78
      %p960 = scmp.lt.s32.totalorder %s78, 3
      %p961 = pnand %p959, %p960
      %p962 = pneg %p961
      // Predicated region
      $region137: #{tpu_custom_call.1} parent=5 // pred_check
        _
      $region138: #{tpu_custom_call.1} parent=5 // pred_check_branch
        %964 = sbr.rel (%p961) target = $region140
      $region139: #{tpu_custom_call.1} parent=5 // pred_region
        %s965 = ssub.s32 %s78, 1
        %s966 = sand.u32 %s91, 1
        %s967 = scalar_lea.sflag [#allocation3], %s966
        %s968 = sand.u32 %s91, 1
        %s969 = smul.addr %s968, 8
        %s970 = scalar_lea.vmem [#allocation2], %s969
        // Predicated region
        $region141: #{tpu_custom_call.1} parent=139 // pred_check
          %p971 = pneg %p104
        $region142: #{tpu_custom_call.1} parent=139 // pred_check_branch
          %973 = sbr.rel (%p971) target = $region144
        $region143: #{tpu_custom_call.1} parent=139 // pred_region
          %974 = dma.done %s967, 128
        $region144: #{tpu_custom_call.1} parent=139 // pred_fallthru
          _
        // Predicated region
        $region145: #{tpu_custom_call.1} parent=139 // pred_check
          %p975 = pneg %p151
        $region146: #{tpu_custom_call.1} parent=139 // pred_check_branch
          %977 = sbr.rel (%p975) target = $region148
        $region147: #{tpu_custom_call.1} parent=139 // pred_region
          %978 = dma.done [#allocation6], 128
        $region148: #{tpu_custom_call.1} parent=139 // pred_fallthru
          _
        // Predicated region
        $region149: #{tpu_custom_call.1} parent=139 // pred_check
          %p979 = pneg %p172
        $region150: #{tpu_custom_call.1} parent=139 // pred_check_branch
          %981 = sbr.rel (%p979) target = $region152
        $region151: #{tpu_custom_call.1} parent=139 // pred_region
          %982 = dma.done [#allocation6], 128
        $region152: #{tpu_custom_call.1} parent=139 // pred_fallthru
          _
        // Predicated region
        $region153: #{tpu_custom_call.1} parent=139 // pred_check
          %p983 = pneg %p277
        $region154: #{tpu_custom_call.1} parent=139 // pred_check_branch
          %985 = sbr.rel (%p983) target = $region156
        $region155: #{tpu_custom_call.1} parent=139 // pred_region
          %986 = dma.done [#allocation9], 512
        $region156: #{tpu_custom_call.1} parent=139 // pred_fallthru
          _
        // Predicated region
        $region157: #{tpu_custom_call.1} parent=139 // pred_check
          %p987 = pneg %p319
        $region158: #{tpu_custom_call.1} parent=139 // pred_check_branch
          %989 = sbr.rel (%p987) target = $region160
        $region159: #{tpu_custom_call.1} parent=139 // pred_region
          %990 = dma.done [#allocation9], 512
        $region160: #{tpu_custom_call.1} parent=139 // pred_fallthru
          _
        // Predicated region
        $region161: #{tpu_custom_call.1} parent=139 // pred_check
          %p991 = pneg %p403
        $region162: #{tpu_custom_call.1} parent=139 // pred_check_branch
          %993 = sbr.rel (%p991) target = $region164
        $region163: #{tpu_custom_call.1} parent=139 // pred_region
          %994 = dma.done [#allocation12], 512
        $region164: #{tpu_custom_call.1} parent=139 // pred_fallthru
          _
        // Predicated region
        $region165: #{tpu_custom_call.1} parent=139 // pred_check
          %p995 = pneg %p445
        $region166: #{tpu_custom_call.1} parent=139 // pred_check_branch
          %997 = sbr.rel (%p995) target = $region168
        $region167: #{tpu_custom_call.1} parent=139 // pred_region
          %998 = dma.done [#allocation12], 512
        $region168: #{tpu_custom_call.1} parent=139 // pred_fallthru
          _
        // Predicated region
        $region169: #{tpu_custom_call.1} parent=139 // pred_check
          %p999 = pneg %p487
        $region170: #{tpu_custom_call.1} parent=139 // pred_check_branch
          %1001 = sbr.rel (%p999) target = $region172
        $region171: #{tpu_custom_call.1} parent=139 // pred_region
          %1002 = dma.done [#allocation15], 512
        $region172: #{tpu_custom_call.1} parent=139 // pred_fallthru
          _
        // Predicated region
        $region173: #{tpu_custom_call.1} parent=139 // pred_check
          %p1003 = pneg %p529
        $region174: #{tpu_custom_call.1} parent=139 // pred_check_branch
          %1005 = sbr.rel (%p1003) target = $region176
        $region175: #{tpu_custom_call.1} parent=139 // pred_region
          %1006 = dma.done [#allocation15], 512
        $region176: #{tpu_custom_call.1} parent=139 // pred_fallthru
          _
        // Predicated region
        $region177: #{tpu_custom_call.1} parent=139 // pred_check
          %p1007 = pneg %p613
        $region178: #{tpu_custom_call.1} parent=139 // pred_check_branch
          %1009 = sbr.rel (%p1007) target = $region180
        $region179: #{tpu_custom_call.1} parent=139 // pred_region
          %1010 = dma.done [#allocation18], 512
        $region180: #{tpu_custom_call.1} parent=139 // pred_fallthru
          _
        %s1011 = sand.u32 %s91, 1
        %s1012 = scalar_lea.sflag [#allocation3], %s1011
        %s1013 = sand.u32 %s91, 1
        %s1014 = smul.addr %s1013, 8
        %s1015 = scalar_lea.vmem [#allocation2], %s1014
        %p1016 = pneg %p104
        %p1017 = pneg %p101
        %p1018 = scmp.lt.s32.totalorder %s83, 1
        %s1019 = scalar_select %p1018, %s83, 1
        %s1020 = smul.addr %s1019, 2
        %s1021 = smul.addr %s1020, 8
        %s1022 = scalar_lea.vmem %s3, %s1021
        %p1023 = pneg %p130
        %p1024 = pneg %p127
        %p1025 = pneg %p151
        %p1026 = pneg %p148
        %p1027 = pneg %p172
        %p1028 = pneg %p169
        %p1029 = pneg %p193
        %p1030 = pneg %p190
        %p1031 = pneg %p214
        %p1032 = pneg %p211
        %p1033 = pneg %p235
        %p1034 = pneg %p232
        %p1035 = pneg %p256
        %p1036 = pneg %p253
        %p1037 = pneg %p277
        %p1038 = pneg %p274
        %p1039 = pneg %p298
        %p1040 = pneg %p295
        %p1041 = pneg %p319
        %p1042 = pneg %p316
        %p1043 = pneg %p340
        %p1044 = pneg %p337
        %p1045 = pneg %p361
        %p1046 = pneg %p358
        %p1047 = pneg %p382
        %p1048 = pneg %p379
        %p1049 = pneg %p403
        %p1050 = pneg %p400
        %p1051 = pneg %p424
        %p1052 = pneg %p421
        %p1053 = pneg %p445
        %p1054 = pneg %p442
        %p1055 = pneg %p466
        %p1056 = pneg %p463
        %p1057 = pneg %p487
        %p1058 = pneg %p484
        %p1059 = pneg %p508
        %p1060 = pneg %p505
        %p1061 = pneg %p529
        %p1062 = pneg %p526
        %p1063 = pneg %p550
        %p1064 = pneg %p547
        %p1065 = pneg %p571
        %p1066 = pneg %p568
        %p1067 = pneg %p592
        %p1068 = pneg %p589
        %p1069 = pneg %p613
        %p1070 = pneg %p610
        %p1071 = pneg %p634
        %p1072 = pneg %p631
        %p1073 = pneg %p655
        %p1074 = pneg %p652
        %p1075 = pneg %p676
        %p1076 = pneg %p673
        %p1077 = pneg %p697
        %p1078 = pneg %p694
        %p1079 = pneg %p718
        %p1080 = pneg %p715
        %p1081 = pneg %p744
        %p1082 = pneg %p741
        %s1083 = sand.u32 %s731, 1
        %s1084 = scalar_lea.sflag [#allocation4], %s1083
        %s1085 = sand.u32 %s731, 1
        %s1086 = smul.addr %s1085, 8
        %s1087 = scalar_lea.vmem [#allocation19], %s1086
        %p1088 = scmp.lt.s32.totalorder %s83, 1
        %s1089 = scalar_select %p1088, %s83, 1
        %s1090 = smul.addr %s1089, 2
        %s1091 = smul.addr %s1090, 8
        %s1092 = scalar_lea.vmem %s3, %s1091
        %v1093 = vld [vmem:[%s970] sm:$0xff]
        %v1094 = vld [vmem:[%s1092] sm:$0xff]
        %v1095 = vld [vmem:[%s1092 + $0x8] sm:$0xff]
        %v1096 = vld [vmem:[%s9] sm:$0xff]
        %v1097 = vld [vmem:[%s9 + $0x8] sm:$0xff]
        %v1098 = vld [vmem:[%s9 + $0x10] sm:$0xff]
        %v1099 = vld [vmem:[%s9 + $0x18] sm:$0xff]
        %v1100 = vld [vmem:[%s11] sm:$0x1]
        %v1102 = vlaneseq
        %v1103 = vshrl.u32 %v1102, 7
        %v1104 = vsub.s32 0, %v1103
        %v1105 = vrot.slane %v1100, %v1104
        %vm1107 = vcmask 261120
        %v1109 = vsel %vm1107, %v1093, 0
        %1111 = vmatprep.subr.mxu0 0.0
        %1112 = vmatpush1.msra.mxu0 0.0
        %1113 = vmatprep.subr.mxu0 0.0
        %1114 = vmatpush1.msra.mxu0 0.0
        %1115 = vmatprep.subr.mxu0 0.0
        %1116 = vmatpush1.msra.mxu0 0.0
        %1117 = vmatprep.subr.mxu0 0.0
        %1118 = vmatpush1.msra.mxu0 0.0
        %1119 = vmatprep.subr.mxu0 0.0
        %1120 = vmatpush1.msra.mxu0 0.0
        %1121 = vmatprep.subr.mxu0 0.0
        %1122 = vmatpush1.msra.mxu0 0.0
        %1123 = vmatprep.subr.mxu0 0.0
        %1124 = vmatpush1.msra.mxu0 0.0
        %1125 = vmatprep.subr.mxu0 0.0
        %1126 = vmatpush1.msra.mxu0 0.0
        %1127 = vmatprep.subr.mxu0 0.0
        %1128 = vmatpush1.msra.mxu0 0.0
        %1129 = vmatprep.subr.mxu0 0.0
        %1130 = vmatpush1.msra.mxu0 0.0
        %1131 = vmatprep.subr.mxu0 0.0
        %1132 = vmatpush1.msra.mxu0 0.0
        %1133 = vmatprep.subr.mxu0 0.0
        %1134 = vmatpush1.msra.mxu0 0.0
        %1135 = vmatprep.subr.mxu0 0.0
        %1136 = vmatpush1.msra.mxu0 %v1099
        %1137 = vmatprep.subr.mxu0 0.0
        %1138 = vmatpush1.msra.mxu0 %v1098
        %1139 = vmatprep.subr.mxu0 0.0
        %1140 = vmatpush1.msra.mxu0 %v1097
        %1141 = vmatprep.subr.mxu0 0.0
        %1142 = vmatpush1.msra.mxu0 %v1096
        %1143 = vmatprep.subr.mxu0 0.0
        %1144 = vmatpush2.msra.mxu0 0.0
        %1145 = vmatprep.subr.mxu0 0.0
        %1146 = vmatpush2.msra.mxu0 0.0
        %1147 = vmatprep.subr.mxu0 0.0
        %1148 = vmatpush2.msra.mxu0 0.0
        %1149 = vmatprep.subr.mxu0 0.0
        %1150 = vmatpush2.msra.mxu0 0.0
        %1151 = vmatprep.subr.mxu0 0.0
        %1152 = vmatpush2.msra.mxu0 0.0
        %1153 = vmatprep.subr.mxu0 0.0
        %1154 = vmatpush2.msra.mxu0 0.0
        %1155 = vmatprep.subr.mxu0 0.0
        %1156 = vmatpush2.msra.mxu0 0.0
        %1157 = vmatprep.subr.mxu0 0.0
        %1158 = vmatpush2.msra.mxu0 0.0
        %1159 = vmatprep.subr.mxu0 0.0
        %1160 = vmatpush2.msra.mxu0 0.0
        %1161 = vmatprep.subr.mxu0 0.0
        %1162 = vmatpush2.msra.mxu0 0.0
        %1163 = vmatprep.subr.mxu0 0.0
        %1164 = vmatpush2.msra.mxu0 0.0
        %1165 = vmatprep.subr.mxu0 0.0
        %1166 = vmatpush2.msra.mxu0 0.0
        %1167 = vmatprep.subr.mxu0 0.0
        %1168 = vmatpush2.msra.mxu0 0.0
        %1169 = vmatprep.subr.mxu0 0.0
        %1170 = vmatpush2.msra.mxu0 0.0
        %1171 = vmatprep.subr.mxu0 0.0
        %1172 = vmatpush2.msra.mxu0 0.0
        %1173 = vmatprep.subr.mxu0 0.0
        %1174 = vmatpush2.msra.mxu0 0.0
        %1175 = vmatprep.mubr.f32.mxu0 0.0
        %1176 = vmatmul.mubr.f32.gmra.mxu0 %v1109
        %v1177 = vpop.f32.mrf.mxu0
        %v1178 = vadd.f32 %v1105, %v1177
        %v1179 = vpop.f32.mrf.mxu0
        %1180 = vdwg.mxu0
        %v1181 = vld [vmem:[%s13] sm:$0xff]
        %v1182 = vld [vmem:[%s13 + $0x8] sm:$0xff]
        %v1183 = vld [vmem:[%s13 + $0x10] sm:$0xff]
        %v1184 = vld [vmem:[%s13 + $0x18] sm:$0xff]
        %v1185 = vld [vmem:[%s15] sm:$0x1]
        %v1187 = vlaneseq
        %v1188 = vshrl.u32 %v1187, 7
        %v1189 = vsub.s32 0, %v1188
        %v1190 = vrot.slane %v1185, %v1189
        %1192 = vmatprep.subr.mxu0 0.0
        %1193 = vmatpush1.msra.mxu0 0.0
        %1194 = vmatprep.subr.mxu0 0.0
        %1195 = vmatpush1.msra.mxu0 0.0
        %1196 = vmatprep.subr.mxu0 0.0
        %1197 = vmatpush1.msra.mxu0 0.0
        %1198 = vmatprep.subr.mxu0 0.0
        %1199 = vmatpush1.msra.mxu0 0.0
        %1200 = vmatprep.subr.mxu0 0.0
        %1201 = vmatpush1.msra.mxu0 0.0
        %1202 = vmatprep.subr.mxu0 0.0
        %1203 = vmatpush1.msra.mxu0 0.0
        %1204 = vmatprep.subr.mxu0 0.0
        %1205 = vmatpush1.msra.mxu0 0.0
        %1206 = vmatprep.subr.mxu0 0.0
        %1207 = vmatpush1.msra.mxu0 0.0
        %1208 = vmatprep.subr.mxu0 0.0
        %1209 = vmatpush1.msra.mxu0 0.0
        %1210 = vmatprep.subr.mxu0 0.0
        %1211 = vmatpush1.msra.mxu0 0.0
        %1212 = vmatprep.subr.mxu0 0.0
        %1213 = vmatpush1.msra.mxu0 0.0
        %1214 = vmatprep.subr.mxu0 0.0
        %1215 = vmatpush1.msra.mxu0 0.0
        %1216 = vmatprep.subr.mxu0 0.0
        %1217 = vmatpush1.msra.mxu0 %v1184
        %1218 = vmatprep.subr.mxu0 0.0
        %1219 = vmatpush1.msra.mxu0 %v1183
        %1220 = vmatprep.subr.mxu0 0.0
        %1221 = vmatpush1.msra.mxu0 %v1182
        %1222 = vmatprep.subr.mxu0 0.0
        %1223 = vmatpush1.msra.mxu0 %v1181
        %1224 = vmatprep.subr.mxu0 0.0
        %1225 = vmatpush2.msra.mxu0 0.0
        %1226 = vmatprep.subr.mxu0 0.0
        %1227 = vmatpush2.msra.mxu0 0.0
        %1228 = vmatprep.subr.mxu0 0.0
        %1229 = vmatpush2.msra.mxu0 0.0
        %1230 = vmatprep.subr.mxu0 0.0
        %1231 = vmatpush2.msra.mxu0 0.0
        %1232 = vmatprep.subr.mxu0 0.0
        %1233 = vmatpush2.msra.mxu0 0.0
        %1234 = vmatprep.subr.mxu0 0.0
        %1235 = vmatpush2.msra.mxu0 0.0
        %1236 = vmatprep.subr.mxu0 0.0
        %1237 = vmatpush2.msra.mxu0 0.0
        %1238 = vmatprep.subr.mxu0 0.0
        %1239 = vmatpush2.msra.mxu0 0.0
        %1240 = vmatprep.subr.mxu0 0.0
        %1241 = vmatpush2.msra.mxu0 0.0
        %1242 = vmatprep.subr.mxu0 0.0
        %1243 = vmatpush2.msra.mxu0 0.0
        %1244 = vmatprep.subr.mxu0 0.0
        %1245 = vmatpush2.msra.mxu0 0.0
        %1246 = vmatprep.subr.mxu0 0.0
        %1247 = vmatpush2.msra.mxu0 0.0
        %1248 = vmatprep.subr.mxu0 0.0
        %1249 = vmatpush2.msra.mxu0 0.0
        %1250 = vmatprep.subr.mxu0 0.0
        %1251 = vmatpush2.msra.mxu0 0.0
        %1252 = vmatprep.subr.mxu0 0.0
        %1253 = vmatpush2.msra.mxu0 0.0
        %1254 = vmatprep.subr.mxu0 0.0
        %1255 = vmatpush2.msra.mxu0 0.0
        %1256 = vmatprep.mubr.f32.mxu0 0.0
        %1257 = vmatmul.mubr.f32.gmra.mxu0 %v1109
        %v1258 = vpop.f32.mrf.mxu0
        %v1259 = vadd.f32 %v1190, %v1258
        %v1260 = vpop.f32.mrf.mxu0
        %1261 = vdwg.mxu0
        %v1262 = vld [vmem:[#allocation8] sm:$0xff]
        %v1263 = vld [vmem:[#allocation8 + $0x8] sm:$0xff]
        %v1264 = vld [vmem:[#allocation8 + $0x10] sm:$0xff]
        %v1265 = vld [vmem:[#allocation8 + $0x18] sm:$0xff]
        %v1266 = vld [vmem:[%s19] sm:$0x1]
        %v1268 = vlaneseq
        %v1269 = vshrl.u32 %v1268, 7
        %v1270 = vsub.s32 0, %v1269
        %v1271 = vrot.slane %v1266, %v1270
        %1273 = vmatprep.subr.mxu0 0.0
        %1274 = vmatpush1.msra.mxu0 0.0
        %1275 = vmatprep.subr.mxu0 0.0
        %1276 = vmatpush1.msra.mxu0 0.0
        %1277 = vmatprep.subr.mxu0 0.0
        %1278 = vmatpush1.msra.mxu0 0.0
        %1279 = vmatprep.subr.mxu0 0.0
        %1280 = vmatpush1.msra.mxu0 0.0
        %1281 = vmatprep.subr.mxu0 0.0
        %1282 = vmatpush1.msra.mxu0 0.0
        %1283 = vmatprep.subr.mxu0 0.0
        %1284 = vmatpush1.msra.mxu0 0.0
        %1285 = vmatprep.subr.mxu0 0.0
        %1286 = vmatpush1.msra.mxu0 0.0
        %1287 = vmatprep.subr.mxu0 0.0
        %1288 = vmatpush1.msra.mxu0 0.0
        %1289 = vmatprep.subr.mxu0 0.0
        %1290 = vmatpush1.msra.mxu0 0.0
        %1291 = vmatprep.subr.mxu0 0.0
        %1292 = vmatpush1.msra.mxu0 0.0
        %1293 = vmatprep.subr.mxu0 0.0
        %1294 = vmatpush1.msra.mxu0 0.0
        %1295 = vmatprep.subr.mxu0 0.0
        %1296 = vmatpush1.msra.mxu0 0.0
        %1297 = vmatprep.subr.mxu0 0.0
        %1298 = vmatpush1.msra.mxu0 %v1265
        %1299 = vmatprep.subr.mxu0 0.0
        %1300 = vmatpush1.msra.mxu0 %v1264
        %1301 = vmatprep.subr.mxu0 0.0
        %1302 = vmatpush1.msra.mxu0 %v1263
        %1303 = vmatprep.subr.mxu0 0.0
        %1304 = vmatpush1.msra.mxu0 %v1262
        %1305 = vmatprep.subr.mxu0 0.0
        %1306 = vmatpush2.msra.mxu0 0.0
        %1307 = vmatprep.subr.mxu0 0.0
        %1308 = vmatpush2.msra.mxu0 0.0
        %1309 = vmatprep.subr.mxu0 0.0
        %1310 = vmatpush2.msra.mxu0 0.0
        %1311 = vmatprep.subr.mxu0 0.0
        %1312 = vmatpush2.msra.mxu0 0.0
        %1313 = vmatprep.subr.mxu0 0.0
        %1314 = vmatpush2.msra.mxu0 0.0
        %1315 = vmatprep.subr.mxu0 0.0
        %1316 = vmatpush2.msra.mxu0 0.0
        %1317 = vmatprep.subr.mxu0 0.0
        %1318 = vmatpush2.msra.mxu0 0.0
        %1319 = vmatprep.subr.mxu0 0.0
        %1320 = vmatpush2.msra.mxu0 0.0
        %1321 = vmatprep.subr.mxu0 0.0
        %1322 = vmatpush2.msra.mxu0 0.0
        %1323 = vmatprep.subr.mxu0 0.0
        %1324 = vmatpush2.msra.mxu0 0.0
        %1325 = vmatprep.subr.mxu0 0.0
        %1326 = vmatpush2.msra.mxu0 0.0
        %1327 = vmatprep.subr.mxu0 0.0
        %1328 = vmatpush2.msra.mxu0 0.0
        %1329 = vmatprep.subr.mxu0 0.0
        %1330 = vmatpush2.msra.mxu0 0.0
        %1331 = vmatprep.subr.mxu0 0.0
        %1332 = vmatpush2.msra.mxu0 0.0
        %1333 = vmatprep.subr.mxu0 0.0
        %1334 = vmatpush2.msra.mxu0 0.0
        %1335 = vmatprep.subr.mxu0 0.0
        %1336 = vmatpush2.msra.mxu0 0.0
        %1337 = vmatprep.mubr.f32.mxu0 0.0
        %1338 = vmatmul.mubr.f32.gmra.mxu0 %v1109
        %v1339 = vpop.f32.mrf.mxu0
        %v1340 = vadd.f32 %v1271, %v1339
        %v1341 = vpop.f32.mrf.mxu0
        %1342 = vdwg.mxu0
        %v1343 = vld [vmem:[#allocation5] sm:$0xff]
        %vm1344 = vcmask 64512
        %v1346 = vsel %vm1344, %v1178, 0
        %v1349 = vsel %vm1344, %v1259, 0
        %1351 = vmatprep.subr.mxu0 0.0
        %1352 = vmatpush1.xpose.msra.mxu0 0.0
        %1353 = vmatprep.subr.mxu0 0.0
        %1354 = vmatpush1.xpose.msra.mxu0 0.0
        %1355 = vmatprep.subr.mxu0 0.0
        %1356 = vmatpush1.xpose.msra.mxu0 0.0
        %1357 = vmatprep.subr.mxu0 0.0
        %1358 = vmatpush1.xpose.msra.mxu0 0.0
        %1359 = vmatprep.subr.mxu0 0.0
        %1360 = vmatpush1.xpose.msra.mxu0 0.0
        %1361 = vmatprep.subr.mxu0 0.0
        %1362 = vmatpush1.xpose.msra.mxu0 0.0
        %1363 = vmatprep.subr.mxu0 0.0
        %1364 = vmatpush1.xpose.msra.mxu0 0.0
        %1365 = vmatprep.subr.mxu0 0.0
        %1366 = vmatpush1.xpose.msra.mxu0 0.0
        %1367 = vmatprep.subr.mxu0 0.0
        %1368 = vmatpush1.xpose.msra.mxu0 0.0
        %1369 = vmatprep.subr.mxu0 0.0
        %1370 = vmatpush1.xpose.msra.mxu0 0.0
        %1371 = vmatprep.subr.mxu0 0.0
        %1372 = vmatpush1.xpose.msra.mxu0 0.0
        %1373 = vmatprep.subr.mxu0 0.0
        %1374 = vmatpush1.xpose.msra.mxu0 0.0
        %1375 = vmatprep.subr.mxu0 0.0
        %1376 = vmatpush1.xpose.msra.mxu0 0.0
        %1377 = vmatprep.subr.mxu0 0.0
        %1378 = vmatpush1.xpose.msra.mxu0 0.0
        %1379 = vmatprep.subr.mxu0 0.0
        %1380 = vmatpush1.xpose.msra.mxu0 0.0
        %1381 = vmatprep.subr.mxu0 0.0
        %1382 = vmatpush1.xpose.msra.mxu0 %v1349
        %1383 = vmatprep.subr.mxu0 0.0
        %1384 = vmatpush2.xpose.msra.mxu0 0.0
        %1385 = vmatprep.subr.mxu0 0.0
        %1386 = vmatpush2.xpose.msra.mxu0 0.0
        %1387 = vmatprep.subr.mxu0 0.0
        %1388 = vmatpush2.xpose.msra.mxu0 0.0
        %1389 = vmatprep.subr.mxu0 0.0
        %1390 = vmatpush2.xpose.msra.mxu0 0.0
        %1391 = vmatprep.subr.mxu0 0.0
        %1392 = vmatpush2.xpose.msra.mxu0 0.0
        %1393 = vmatprep.subr.mxu0 0.0
        %1394 = vmatpush2.xpose.msra.mxu0 0.0
        %1395 = vmatprep.subr.mxu0 0.0
        %1396 = vmatpush2.xpose.msra.mxu0 0.0
        %1397 = vmatprep.subr.mxu0 0.0
        %1398 = vmatpush2.xpose.msra.mxu0 0.0
        %1399 = vmatprep.subr.mxu0 0.0
        %1400 = vmatpush2.xpose.msra.mxu0 0.0
        %1401 = vmatprep.subr.mxu0 0.0
        %1402 = vmatpush2.xpose.msra.mxu0 0.0
        %1403 = vmatprep.subr.mxu0 0.0
        %1404 = vmatpush2.xpose.msra.mxu0 0.0
        %1405 = vmatprep.subr.mxu0 0.0
        %1406 = vmatpush2.xpose.msra.mxu0 0.0
        %1407 = vmatprep.subr.mxu0 0.0
        %1408 = vmatpush2.xpose.msra.mxu0 0.0
        %1409 = vmatprep.subr.mxu0 0.0
        %1410 = vmatpush2.xpose.msra.mxu0 0.0
        %1411 = vmatprep.subr.mxu0 0.0
        %1412 = vmatpush2.xpose.msra.mxu0 0.0
        %1413 = vmatprep.subr.mxu0 0.0
        %1414 = vmatpush2.xpose.msra.mxu0 0.0
        %1415 = vmatprep.mubr.f32.mxu0 0.0
        %1416 = vmatmul.mubr.f32.gmra.mxu0 %v1346
        %v1417 = vpop.f32.mrf.mxu0
        %v1418 = vadd.f32 0.0, %v1417
        %v1419 = vpop.f32.mrf.mxu0
        %1420 = vdwg.mxu0
        %v1421 = vmul.f32 %v1418, 0.35355338
        %v1422 = vadd.f32 %v1421, %v1343
        %v1423 = vsel %vm1344, %v1422, -inf
        %1424 = vmax.xlane.f32.xlu0 %v1423
        %v1425 = vpop.xlane.xlu0 %1424
        %v1426 = vsub.f32 %v1422, %v1425
        %v1427 = vmul.f32 %v1426, 1.442695
        %v1428 = vpow.pop %v1427
        %v1429 = vsel %vm1344, %v1428, 0.0
        %1430 = vadd.xlane.f32.xlu0 %v1429
        %v1431 = vpop.xlane.xlu0 %1430
        %v1432 = vrcp.pop %v1431
        %v1433 = vmul.f32 %v1428, %v1432
        %v1435 = vsel %vm1344, %v1433, 0
        %1437 = vmatprep.subr.mxu0 0.0
        %1438 = vmatpush1.msra.mxu0 0.0
        %1439 = vmatprep.subr.mxu0 0.0
        %1440 = vmatpush1.msra.mxu0 0.0
        %1441 = vmatprep.subr.mxu0 0.0
        %1442 = vmatpush1.msra.mxu0 0.0
        %1443 = vmatprep.subr.mxu0 0.0
        %1444 = vmatpush1.msra.mxu0 0.0
        %1445 = vmatprep.subr.mxu0 0.0
        %1446 = vmatpush1.msra.mxu0 0.0
        %1447 = vmatprep.subr.mxu0 0.0
        %1448 = vmatpush1.msra.mxu0 0.0
        %1449 = vmatprep.subr.mxu0 0.0
        %1450 = vmatpush1.msra.mxu0 0.0
        %1451 = vmatprep.subr.mxu0 0.0
        %1452 = vmatpush1.msra.mxu0 0.0
        %1453 = vmatprep.subr.mxu0 0.0
        %1454 = vmatpush1.msra.mxu0 0.0
        %1455 = vmatprep.subr.mxu0 0.0
        %1456 = vmatpush1.msra.mxu0 0.0
        %1457 = vmatprep.subr.mxu0 0.0
        %1458 = vmatpush1.msra.mxu0 0.0
        %1459 = vmatprep.subr.mxu0 0.0
        %1460 = vmatpush1.msra.mxu0 0.0
        %1461 = vmatprep.subr.mxu0 0.0
        %1462 = vmatpush1.msra.mxu0 0.0
        %1463 = vmatprep.subr.mxu0 0.0
        %1464 = vmatpush1.msra.mxu0 0.0
        %1465 = vmatprep.subr.mxu0 0.0
        %1466 = vmatpush1.msra.mxu0 0.0
        %1467 = vmatprep.subr.mxu0 0.0
        %1468 = vmatpush1.msra.mxu0 %v1340
        %1469 = vmatprep.subr.mxu0 0.0
        %1470 = vmatpush2.msra.mxu0 0.0
        %1471 = vmatprep.subr.mxu0 0.0
        %1472 = vmatpush2.msra.mxu0 0.0
        %1473 = vmatprep.subr.mxu0 0.0
        %1474 = vmatpush2.msra.mxu0 0.0
        %1475 = vmatprep.subr.mxu0 0.0
        %1476 = vmatpush2.msra.mxu0 0.0
        %1477 = vmatprep.subr.mxu0 0.0
        %1478 = vmatpush2.msra.mxu0 0.0
        %1479 = vmatprep.subr.mxu0 0.0
        %1480 = vmatpush2.msra.mxu0 0.0
        %1481 = vmatprep.subr.mxu0 0.0
        %1482 = vmatpush2.msra.mxu0 0.0
        %1483 = vmatprep.subr.mxu0 0.0
        %1484 = vmatpush2.msra.mxu0 0.0
        %1485 = vmatprep.subr.mxu0 0.0
        %1486 = vmatpush2.msra.mxu0 0.0
        %1487 = vmatprep.subr.mxu0 0.0
        %1488 = vmatpush2.msra.mxu0 0.0
        %1489 = vmatprep.subr.mxu0 0.0
        %1490 = vmatpush2.msra.mxu0 0.0
        %1491 = vmatprep.subr.mxu0 0.0
        %1492 = vmatpush2.msra.mxu0 0.0
        %1493 = vmatprep.subr.mxu0 0.0
        %1494 = vmatpush2.msra.mxu0 0.0
        %1495 = vmatprep.subr.mxu0 0.0
        %1496 = vmatpush2.msra.mxu0 0.0
        %1497 = vmatprep.subr.mxu0 0.0
        %1498 = vmatpush2.msra.mxu0 0.0
        %1499 = vmatprep.subr.mxu0 0.0
        %1500 = vmatpush2.msra.mxu0 0.0
        %1501 = vmatprep.mubr.f32.mxu0 0.0
        %1502 = vmatmul.mubr.f32.gmra.mxu0 %v1435
        %v1503 = vpop.f32.mrf.mxu0
        %v1504 = vadd.f32 0.0, %v1503
        %v1505 = vpop.f32.mrf.mxu0
        %1506 = vdwg.mxu0
        %v1507 = vld [vmem:[#allocation10] sm:$0xff]
        %1508 = vrot.lane.b32.xlu0 %v1178, 120
        %v1509 = vpop.permute.xlu0 %1508
        %1510 = vrot.lane.b32.xlu0 %v1259, 120
        %v1511 = vpop.permute.xlu0 %1510
        %v1512 = vsel %vm1344, %v1509, 0
        %v1514 = vsel %vm1344, %v1511, 0
        %1516 = vmatprep.subr.mxu0 0.0
        %1517 = vmatpush1.xpose.msra.mxu0 0.0
        %1518 = vmatprep.subr.mxu0 0.0
        %1519 = vmatpush1.xpose.msra.mxu0 0.0
        %1520 = vmatprep.subr.mxu0 0.0
        %1521 = vmatpush1.xpose.msra.mxu0 0.0
        %1522 = vmatprep.subr.mxu0 0.0
        %1523 = vmatpush1.xpose.msra.mxu0 0.0
        %1524 = vmatprep.subr.mxu0 0.0
        %1525 = vmatpush1.xpose.msra.mxu0 0.0
        %1526 = vmatprep.subr.mxu0 0.0
        %1527 = vmatpush1.xpose.msra.mxu0 0.0
        %1528 = vmatprep.subr.mxu0 0.0
        %1529 = vmatpush1.xpose.msra.mxu0 0.0
        %1530 = vmatprep.subr.mxu0 0.0
        %1531 = vmatpush1.xpose.msra.mxu0 0.0
        %1532 = vmatprep.subr.mxu0 0.0
        %1533 = vmatpush1.xpose.msra.mxu0 0.0
        %1534 = vmatprep.subr.mxu0 0.0
        %1535 = vmatpush1.xpose.msra.mxu0 0.0
        %1536 = vmatprep.subr.mxu0 0.0
        %1537 = vmatpush1.xpose.msra.mxu0 0.0
        %1538 = vmatprep.subr.mxu0 0.0
        %1539 = vmatpush1.xpose.msra.mxu0 0.0
        %1540 = vmatprep.subr.mxu0 0.0
        %1541 = vmatpush1.xpose.msra.mxu0 0.0
        %1542 = vmatprep.subr.mxu0 0.0
        %1543 = vmatpush1.xpose.msra.mxu0 0.0
        %1544 = vmatprep.subr.mxu0 0.0
        %1545 = vmatpush1.xpose.msra.mxu0 0.0
        %1546 = vmatprep.subr.mxu0 0.0
        %1547 = vmatpush1.xpose.msra.mxu0 %v1514
        %1548 = vmatprep.subr.mxu0 0.0
        %1549 = vmatpush2.xpose.msra.mxu0 0.0
        %1550 = vmatprep.subr.mxu0 0.0
        %1551 = vmatpush2.xpose.msra.mxu0 0.0
        %1552 = vmatprep.subr.mxu0 0.0
        %1553 = vmatpush2.xpose.msra.mxu0 0.0
        %1554 = vmatprep.subr.mxu0 0.0
        %1555 = vmatpush2.xpose.msra.mxu0 0.0
        %1556 = vmatprep.subr.mxu0 0.0
        %1557 = vmatpush2.xpose.msra.mxu0 0.0
        %1558 = vmatprep.subr.mxu0 0.0
        %1559 = vmatpush2.xpose.msra.mxu0 0.0
        %1560 = vmatprep.subr.mxu0 0.0
        %1561 = vmatpush2.xpose.msra.mxu0 0.0
        %1562 = vmatprep.subr.mxu0 0.0
        %1563 = vmatpush2.xpose.msra.mxu0 0.0
        %1564 = vmatprep.subr.mxu0 0.0
        %1565 = vmatpush2.xpose.msra.mxu0 0.0
        %1566 = vmatprep.subr.mxu0 0.0
        %1567 = vmatpush2.xpose.msra.mxu0 0.0
        %1568 = vmatprep.subr.mxu0 0.0
        %1569 = vmatpush2.xpose.msra.mxu0 0.0
        %1570 = vmatprep.subr.mxu0 0.0
        %1571 = vmatpush2.xpose.msra.mxu0 0.0
        %1572 = vmatprep.subr.mxu0 0.0
        %1573 = vmatpush2.xpose.msra.mxu0 0.0
        %1574 = vmatprep.subr.mxu0 0.0
        %1575 = vmatpush2.xpose.msra.mxu0 0.0
        %1576 = vmatprep.subr.mxu0 0.0
        %1577 = vmatpush2.xpose.msra.mxu0 0.0
        %1578 = vmatprep.subr.mxu0 0.0
        %1579 = vmatpush2.xpose.msra.mxu0 0.0
        %1580 = vmatprep.mubr.f32.mxu0 0.0
        %1581 = vmatmul.mubr.f32.gmra.mxu0 %v1512
        %v1582 = vpop.f32.mrf.mxu0
        %v1583 = vadd.f32 0.0, %v1582
        %v1584 = vpop.f32.mrf.mxu0
        %1585 = vdwg.mxu0
        %v1586 = vmul.f32 %v1583, 0.35355338
        %v1587 = vadd.f32 %v1586, %v1343
        %v1588 = vsel %vm1344, %v1587, -inf
        %1589 = vmax.xlane.f32.xlu0 %v1588
        %v1590 = vpop.xlane.xlu0 %1589
        %v1591 = vsub.f32 %v1587, %v1590
        %v1592 = vmul.f32 %v1591, 1.442695
        %v1593 = vpow.pop %v1592
        %v1594 = vsel %vm1344, %v1593, 0.0
        %1595 = vadd.xlane.f32.xlu0 %v1594
        %v1596 = vpop.xlane.xlu0 %1595
        %v1597 = vrcp.pop %v1596
        %v1598 = vmul.f32 %v1593, %v1597
        %1600 = vrot.lane.b32.xlu0 %v1340, 120
        %v1601 = vpop.permute.xlu0 %1600
        %v1604 = vsel %vm1344, %v1598, 0
        %1606 = vmatprep.subr.mxu0 0.0
        %1607 = vmatpush1.msra.mxu0 0.0
        %1608 = vmatprep.subr.mxu0 0.0
        %1609 = vmatpush1.msra.mxu0 0.0
        %1610 = vmatprep.subr.mxu0 0.0
        %1611 = vmatpush1.msra.mxu0 0.0
        %1612 = vmatprep.subr.mxu0 0.0
        %1613 = vmatpush1.msra.mxu0 0.0
        %1614 = vmatprep.subr.mxu0 0.0
        %1615 = vmatpush1.msra.mxu0 0.0
        %1616 = vmatprep.subr.mxu0 0.0
        %1617 = vmatpush1.msra.mxu0 0.0
        %1618 = vmatprep.subr.mxu0 0.0
        %1619 = vmatpush1.msra.mxu0 0.0
        %1620 = vmatprep.subr.mxu0 0.0
        %1621 = vmatpush1.msra.mxu0 0.0
        %1622 = vmatprep.subr.mxu0 0.0
        %1623 = vmatpush1.msra.mxu0 0.0
        %1624 = vmatprep.subr.mxu0 0.0
        %1625 = vmatpush1.msra.mxu0 0.0
        %1626 = vmatprep.subr.mxu0 0.0
        %1627 = vmatpush1.msra.mxu0 0.0
        %1628 = vmatprep.subr.mxu0 0.0
        %1629 = vmatpush1.msra.mxu0 0.0
        %1630 = vmatprep.subr.mxu0 0.0
        %1631 = vmatpush1.msra.mxu0 0.0
        %1632 = vmatprep.subr.mxu0 0.0
        %1633 = vmatpush1.msra.mxu0 0.0
        %1634 = vmatprep.subr.mxu0 0.0
        %1635 = vmatpush1.msra.mxu0 0.0
        %1636 = vmatprep.subr.mxu0 0.0
        %1637 = vmatpush1.msra.mxu0 %v1601
        %1638 = vmatprep.subr.mxu0 0.0
        %1639 = vmatpush2.msra.mxu0 0.0
        %1640 = vmatprep.subr.mxu0 0.0
        %1641 = vmatpush2.msra.mxu0 0.0
        %1642 = vmatprep.subr.mxu0 0.0
        %1643 = vmatpush2.msra.mxu0 0.0
        %1644 = vmatprep.subr.mxu0 0.0
        %1645 = vmatpush2.msra.mxu0 0.0
        %1646 = vmatprep.subr.mxu0 0.0
        %1647 = vmatpush2.msra.mxu0 0.0
        %1648 = vmatprep.subr.mxu0 0.0
        %1649 = vmatpush2.msra.mxu0 0.0
        %1650 = vmatprep.subr.mxu0 0.0
        %1651 = vmatpush2.msra.mxu0 0.0
        %1652 = vmatprep.subr.mxu0 0.0
        %1653 = vmatpush2.msra.mxu0 0.0
        %1654 = vmatprep.subr.mxu0 0.0
        %1655 = vmatpush2.msra.mxu0 0.0
        %1656 = vmatprep.subr.mxu0 0.0
        %1657 = vmatpush2.msra.mxu0 0.0
        %1658 = vmatprep.subr.mxu0 0.0
        %1659 = vmatpush2.msra.mxu0 0.0
        %1660 = vmatprep.subr.mxu0 0.0
        %1661 = vmatpush2.msra.mxu0 0.0
        %1662 = vmatprep.subr.mxu0 0.0
        %1663 = vmatpush2.msra.mxu0 0.0
        %1664 = vmatprep.subr.mxu0 0.0
        %1665 = vmatpush2.msra.mxu0 0.0
        %1666 = vmatprep.subr.mxu0 0.0
        %1667 = vmatpush2.msra.mxu0 0.0
        %1668 = vmatprep.subr.mxu0 0.0
        %1669 = vmatpush2.msra.mxu0 0.0
        %1670 = vmatprep.mubr.f32.mxu0 0.0
        %1671 = vmatmul.mubr.f32.gmra.mxu0 %v1604
        %v1672 = vpop.f32.mrf.mxu0
        %v1673 = vadd.f32 0.0, %v1672
        %v1674 = vpop.f32.mrf.mxu0
        %1675 = vdwg.mxu0
        %v1676 = vld [vmem:[#allocation10 + $0x8] sm:$0xff]
        %v1678 = vsel %vm1344, %v1673, 0
        %1680 = vmatprep.subr.mxu0 0.0
        %1681 = vmatpush1.msra.mxu0 0.0
        %1682 = vmatprep.subr.mxu0 0.0
        %1683 = vmatpush1.msra.mxu0 0.0
        %1684 = vmatprep.subr.mxu0 0.0
        %1685 = vmatpush1.msra.mxu0 0.0
        %1686 = vmatprep.subr.mxu0 0.0
        %1687 = vmatpush1.msra.mxu0 0.0
        %1688 = vmatprep.subr.mxu0 0.0
        %1689 = vmatpush1.msra.mxu0 0.0
        %1690 = vmatprep.subr.mxu0 0.0
        %1691 = vmatpush1.msra.mxu0 0.0
        %1692 = vmatprep.subr.mxu0 0.0
        %1693 = vmatpush1.msra.mxu0 0.0
        %1694 = vmatprep.subr.mxu0 0.0
        %1695 = vmatpush1.msra.mxu0 0.0
        %1696 = vmatprep.subr.mxu0 0.0
        %1697 = vmatpush1.msra.mxu0 0.0
        %1698 = vmatprep.subr.mxu0 0.0
        %1699 = vmatpush1.msra.mxu0 0.0
        %1700 = vmatprep.subr.mxu0 0.0
        %1701 = vmatpush1.msra.mxu0 0.0
        %1702 = vmatprep.subr.mxu0 0.0
        %1703 = vmatpush1.msra.mxu0 0.0
        %1704 = vmatprep.subr.mxu0 0.0
        %1705 = vmatpush1.msra.mxu0 0.0
        %1706 = vmatprep.subr.mxu0 0.0
        %1707 = vmatpush1.msra.mxu0 0.0
        %1708 = vmatprep.subr.mxu0 0.0
        %1709 = vmatpush1.msra.mxu0 0.0
        %1710 = vmatprep.subr.mxu0 0.0
        %1711 = vmatpush1.msra.mxu0 %v1676
        %1712 = vmatprep.subr.mxu0 0.0
        %1713 = vmatpush2.msra.mxu0 0.0
        %1714 = vmatprep.subr.mxu0 0.0
        %1715 = vmatpush2.msra.mxu0 0.0
        %1716 = vmatprep.subr.mxu0 0.0
        %1717 = vmatpush2.msra.mxu0 0.0
        %1718 = vmatprep.subr.mxu0 0.0
        %1719 = vmatpush2.msra.mxu0 0.0
        %1720 = vmatprep.subr.mxu0 0.0
        %1721 = vmatpush2.msra.mxu0 0.0
        %1722 = vmatprep.subr.mxu0 0.0
        %1723 = vmatpush2.msra.mxu0 0.0
        %1724 = vmatprep.subr.mxu0 0.0
        %1725 = vmatpush2.msra.mxu0 0.0
        %1726 = vmatprep.subr.mxu0 0.0
        %1727 = vmatpush2.msra.mxu0 0.0
        %1728 = vmatprep.subr.mxu0 0.0
        %1729 = vmatpush2.msra.mxu0 0.0
        %1730 = vmatprep.subr.mxu0 0.0
        %1731 = vmatpush2.msra.mxu0 0.0
        %1732 = vmatprep.subr.mxu0 0.0
        %1733 = vmatpush2.msra.mxu0 0.0
        %1734 = vmatprep.subr.mxu0 0.0
        %1735 = vmatpush2.msra.mxu0 0.0
        %1736 = vmatprep.subr.mxu0 0.0
        %1737 = vmatpush2.msra.mxu0 0.0
        %1738 = vmatprep.subr.mxu0 0.0
        %1739 = vmatpush2.msra.mxu0 0.0
        %1740 = vmatprep.subr.mxu0 0.0
        %1741 = vmatpush2.msra.mxu0 0.0
        %1742 = vmatprep.subr.mxu0 0.0
        %1743 = vmatpush2.msra.mxu0 0.0
        %1744 = vmatprep.mubr.f32.mxu0 0.0
        %1745 = vmatmul.mubr.f32.gmra.mxu0 %v1678
        %v1746 = vpop.f32.mrf.mxu0
        %v1747 = vadd.f32 0.0, %v1746
        %v1748 = vpop.f32.mrf.mxu0
        %1749 = vdwg.mxu0
        %v1751 = vsel %vm1344, %v1504, 0
        %1753 = vmatprep.subr.mxu0 0.0
        %1754 = vmatpush1.msra.mxu0 0.0
        %1755 = vmatprep.subr.mxu0 0.0
        %1756 = vmatpush1.msra.mxu0 0.0
        %1757 = vmatprep.subr.mxu0 0.0
        %1758 = vmatpush1.msra.mxu0 0.0
        %1759 = vmatprep.subr.mxu0 0.0
        %1760 = vmatpush1.msra.mxu0 0.0
        %1761 = vmatprep.subr.mxu0 0.0
        %1762 = vmatpush1.msra.mxu0 0.0
        %1763 = vmatprep.subr.mxu0 0.0
        %1764 = vmatpush1.msra.mxu0 0.0
        %1765 = vmatprep.subr.mxu0 0.0
        %1766 = vmatpush1.msra.mxu0 0.0
        %1767 = vmatprep.subr.mxu0 0.0
        %1768 = vmatpush1.msra.mxu0 0.0
        %1769 = vmatprep.subr.mxu0 0.0
        %1770 = vmatpush1.msra.mxu0 0.0
        %1771 = vmatprep.subr.mxu0 0.0
        %1772 = vmatpush1.msra.mxu0 0.0
        %1773 = vmatprep.subr.mxu0 0.0
        %1774 = vmatpush1.msra.mxu0 0.0
        %1775 = vmatprep.subr.mxu0 0.0
        %1776 = vmatpush1.msra.mxu0 0.0
        %1777 = vmatprep.subr.mxu0 0.0
        %1778 = vmatpush1.msra.mxu0 0.0
        %1779 = vmatprep.subr.mxu0 0.0
        %1780 = vmatpush1.msra.mxu0 0.0
        %1781 = vmatprep.subr.mxu0 0.0
        %1782 = vmatpush1.msra.mxu0 0.0
        %1783 = vmatprep.subr.mxu0 0.0
        %1784 = vmatpush1.msra.mxu0 %v1507
        %1785 = vmatprep.subr.mxu0 0.0
        %1786 = vmatpush2.msra.mxu0 0.0
        %1787 = vmatprep.subr.mxu0 0.0
        %1788 = vmatpush2.msra.mxu0 0.0
        %1789 = vmatprep.subr.mxu0 0.0
        %1790 = vmatpush2.msra.mxu0 0.0
        %1791 = vmatprep.subr.mxu0 0.0
        %1792 = vmatpush2.msra.mxu0 0.0
        %1793 = vmatprep.subr.mxu0 0.0
        %1794 = vmatpush2.msra.mxu0 0.0
        %1795 = vmatprep.subr.mxu0 0.0
        %1796 = vmatpush2.msra.mxu0 0.0
        %1797 = vmatprep.subr.mxu0 0.0
        %1798 = vmatpush2.msra.mxu0 0.0
        %1799 = vmatprep.subr.mxu0 0.0
        %1800 = vmatpush2.msra.mxu0 0.0
        %1801 = vmatprep.subr.mxu0 0.0
        %1802 = vmatpush2.msra.mxu0 0.0
        %1803 = vmatprep.subr.mxu0 0.0
        %1804 = vmatpush2.msra.mxu0 0.0
        %1805 = vmatprep.subr.mxu0 0.0
        %1806 = vmatpush2.msra.mxu0 0.0
        %1807 = vmatprep.subr.mxu0 0.0
        %1808 = vmatpush2.msra.mxu0 0.0
        %1809 = vmatprep.subr.mxu0 0.0
        %1810 = vmatpush2.msra.mxu0 0.0
        %1811 = vmatprep.subr.mxu0 0.0
        %1812 = vmatpush2.msra.mxu0 0.0
        %1813 = vmatprep.subr.mxu0 0.0
        %1814 = vmatpush2.msra.mxu0 0.0
        %1815 = vmatprep.subr.mxu0 0.0
        %1816 = vmatpush2.msra.mxu0 0.0
        %1817 = vmatprep.mubr.f32.mxu0 0.0
        %1818 = vmatmul.mubr.f32.gmra.mxu0 %v1751
        %v1819 = vpop.f32.mrf.mxu0
        %v1820 = vadd.f32 %v1747, %v1819
        %v1821 = vpop.f32.mrf.mxu0
        %1822 = vdwg.mxu0
        %1823 = vrot.lane.b32.xlu0 %v1178, 112
        %v1824 = vpop.permute.xlu0 %1823
        %1825 = vrot.lane.b32.xlu0 %v1259, 112
        %v1826 = vpop.permute.xlu0 %1825
        %v1827 = vsel %vm1344, %v1824, 0
        %v1829 = vsel %vm1344, %v1826, 0
        %1831 = vmatprep.subr.mxu0 0.0
        %1832 = vmatpush1.xpose.msra.mxu0 0.0
        %1833 = vmatprep.subr.mxu0 0.0
        %1834 = vmatpush1.xpose.msra.mxu0 0.0
        %1835 = vmatprep.subr.mxu0 0.0
        %1836 = vmatpush1.xpose.msra.mxu0 0.0
        %1837 = vmatprep.subr.mxu0 0.0
        %1838 = vmatpush1.xpose.msra.mxu0 0.0
        %1839 = vmatprep.subr.mxu0 0.0
        %1840 = vmatpush1.xpose.msra.mxu0 0.0
        %1841 = vmatprep.subr.mxu0 0.0
        %1842 = vmatpush1.xpose.msra.mxu0 0.0
        %1843 = vmatprep.subr.mxu0 0.0
        %1844 = vmatpush1.xpose.msra.mxu0 0.0
        %1845 = vmatprep.subr.mxu0 0.0
        %1846 = vmatpush1.xpose.msra.mxu0 0.0
        %1847 = vmatprep.subr.mxu0 0.0
        %1848 = vmatpush1.xpose.msra.mxu0 0.0
        %1849 = vmatprep.subr.mxu0 0.0
        %1850 = vmatpush1.xpose.msra.mxu0 0.0
        %1851 = vmatprep.subr.mxu0 0.0
        %1852 = vmatpush1.xpose.msra.mxu0 0.0
        %1853 = vmatprep.subr.mxu0 0.0
        %1854 = vmatpush1.xpose.msra.mxu0 0.0
        %1855 = vmatprep.subr.mxu0 0.0
        %1856 = vmatpush1.xpose.msra.mxu0 0.0
        %1857 = vmatprep.subr.mxu0 0.0
        %1858 = vmatpush1.xpose.msra.mxu0 0.0
        %1859 = vmatprep.subr.mxu0 0.0
        %1860 = vmatpush1.xpose.msra.mxu0 0.0
        %1861 = vmatprep.subr.mxu0 0.0
        %1862 = vmatpush1.xpose.msra.mxu0 %v1829
        %1863 = vmatprep.subr.mxu0 0.0
        %1864 = vmatpush2.xpose.msra.mxu0 0.0
        %1865 = vmatprep.subr.mxu0 0.0
        %1866 = vmatpush2.xpose.msra.mxu0 0.0
        %1867 = vmatprep.subr.mxu0 0.0
        %1868 = vmatpush2.xpose.msra.mxu0 0.0
        %1869 = vmatprep.subr.mxu0 0.0
        %1870 = vmatpush2.xpose.msra.mxu0 0.0
        %1871 = vmatprep.subr.mxu0 0.0
        %1872 = vmatpush2.xpose.msra.mxu0 0.0
        %1873 = vmatprep.subr.mxu0 0.0
        %1874 = vmatpush2.xpose.msra.mxu0 0.0
        %1875 = vmatprep.subr.mxu0 0.0
        %1876 = vmatpush2.xpose.msra.mxu0 0.0
        %1877 = vmatprep.subr.mxu0 0.0
        %1878 = vmatpush2.xpose.msra.mxu0 0.0
        %1879 = vmatprep.subr.mxu0 0.0
        %1880 = vmatpush2.xpose.msra.mxu0 0.0
        %1881 = vmatprep.subr.mxu0 0.0
        %1882 = vmatpush2.xpose.msra.mxu0 0.0
        %1883 = vmatprep.subr.mxu0 0.0
        %1884 = vmatpush2.xpose.msra.mxu0 0.0
        %1885 = vmatprep.subr.mxu0 0.0
        %1886 = vmatpush2.xpose.msra.mxu0 0.0
        %1887 = vmatprep.subr.mxu0 0.0
        %1888 = vmatpush2.xpose.msra.mxu0 0.0
        %1889 = vmatprep.subr.mxu0 0.0
        %1890 = vmatpush2.xpose.msra.mxu0 0.0
        %1891 = vmatprep.subr.mxu0 0.0
        %1892 = vmatpush2.xpose.msra.mxu0 0.0
        %1893 = vmatprep.subr.mxu0 0.0
        %1894 = vmatpush2.xpose.msra.mxu0 0.0
        %1895 = vmatprep.mubr.f32.mxu0 0.0
        %1896 = vmatmul.mubr.f32.gmra.mxu0 %v1827
        %v1897 = vpop.f32.mrf.mxu0
        %v1898 = vadd.f32 0.0, %v1897
        %v1899 = vpop.f32.mrf.mxu0
        %1900 = vdwg.mxu0
        %v1901 = vmul.f32 %v1898, 0.35355338
        %v1902 = vadd.f32 %v1901, %v1343
        %v1903 = vsel %vm1344, %v1902, -inf
        %1904 = vmax.xlane.f32.xlu0 %v1903
        %v1905 = vpop.xlane.xlu0 %1904
        %v1906 = vsub.f32 %v1902, %v1905
        %v1907 = vmul.f32 %v1906, 1.442695
        %v1908 = vpow.pop %v1907
        %v1909 = vsel %vm1344, %v1908, 0.0
        %1910 = vadd.xlane.f32.xlu0 %v1909
        %v1911 = vpop.xlane.xlu0 %1910
        %v1912 = vrcp.pop %v1911
        %v1913 = vmul.f32 %v1908, %v1912
        %1914 = vrot.lane.b32.xlu0 %v1340, 112
        %v1915 = vpop.permute.xlu0 %1914
        %v1918 = vsel %vm1344, %v1913, 0
        %1920 = vmatprep.subr.mxu0 0.0
        %1921 = vmatpush1.msra.mxu0 0.0
        %1922 = vmatprep.subr.mxu0 0.0
        %1923 = vmatpush1.msra.mxu0 0.0
        %1924 = vmatprep.subr.mxu0 0.0
        %1925 = vmatpush1.msra.mxu0 0.0
        %1926 = vmatprep.subr.mxu0 0.0
        %1927 = vmatpush1.msra.mxu0 0.0
        %1928 = vmatprep.subr.mxu0 0.0
        %1929 = vmatpush1.msra.mxu0 0.0
        %1930 = vmatprep.subr.mxu0 0.0
        %1931 = vmatpush1.msra.mxu0 0.0
        %1932 = vmatprep.subr.mxu0 0.0
        %1933 = vmatpush1.msra.mxu0 0.0
        %1934 = vmatprep.subr.mxu0 0.0
        %1935 = vmatpush1.msra.mxu0 0.0
        %1936 = vmatprep.subr.mxu0 0.0
        %1937 = vmatpush1.msra.mxu0 0.0
        %1938 = vmatprep.subr.mxu0 0.0
        %1939 = vmatpush1.msra.mxu0 0.0
        %1940 = vmatprep.subr.mxu0 0.0
        %1941 = vmatpush1.msra.mxu0 0.0
        %1942 = vmatprep.subr.mxu0 0.0
        %1943 = vmatpush1.msra.mxu0 0.0
        %1944 = vmatprep.subr.mxu0 0.0
        %1945 = vmatpush1.msra.mxu0 0.0
        %1946 = vmatprep.subr.mxu0 0.0
        %1947 = vmatpush1.msra.mxu0 0.0
        %1948 = vmatprep.subr.mxu0 0.0
        %1949 = vmatpush1.msra.mxu0 0.0
        %1950 = vmatprep.subr.mxu0 0.0
        %1951 = vmatpush1.msra.mxu0 %v1915
        %1952 = vmatprep.subr.mxu0 0.0
        %1953 = vmatpush2.msra.mxu0 0.0
        %1954 = vmatprep.subr.mxu0 0.0
        %1955 = vmatpush2.msra.mxu0 0.0
        %1956 = vmatprep.subr.mxu0 0.0
        %1957 = vmatpush2.msra.mxu0 0.0
        %1958 = vmatprep.subr.mxu0 0.0
        %1959 = vmatpush2.msra.mxu0 0.0
        %1960 = vmatprep.subr.mxu0 0.0
        %1961 = vmatpush2.msra.mxu0 0.0
        %1962 = vmatprep.subr.mxu0 0.0
        %1963 = vmatpush2.msra.mxu0 0.0
        %1964 = vmatprep.subr.mxu0 0.0
        %1965 = vmatpush2.msra.mxu0 0.0
        %1966 = vmatprep.subr.mxu0 0.0
        %1967 = vmatpush2.msra.mxu0 0.0
        %1968 = vmatprep.subr.mxu0 0.0
        %1969 = vmatpush2.msra.mxu0 0.0
        %1970 = vmatprep.subr.mxu0 0.0
        %1971 = vmatpush2.msra.mxu0 0.0
        %1972 = vmatprep.subr.mxu0 0.0
        %1973 = vmatpush2.msra.mxu0 0.0
        %1974 = vmatprep.subr.mxu0 0.0
        %1975 = vmatpush2.msra.mxu0 0.0
        %1976 = vmatprep.subr.mxu0 0.0
        %1977 = vmatpush2.msra.mxu0 0.0
        %1978 = vmatprep.subr.mxu0 0.0
        %1979 = vmatpush2.msra.mxu0 0.0
        %1980 = vmatprep.subr.mxu0 0.0
        %1981 = vmatpush2.msra.mxu0 0.0
        %1982 = vmatprep.subr.mxu0 0.0
        %1983 = vmatpush2.msra.mxu0 0.0
        %1984 = vmatprep.mubr.f32.mxu0 0.0
        %1985 = vmatmul.mubr.f32.gmra.mxu0 %v1918
        %v1986 = vpop.f32.mrf.mxu0
        %v1987 = vadd.f32 0.0, %v1986
        %v1988 = vpop.f32.mrf.mxu0
        %1989 = vdwg.mxu0
        %v1990 = vld [vmem:[#allocation10 + $0x10] sm:$0xff]
        %v1992 = vsel %vm1344, %v1987, 0
        %1994 = vmatprep.subr.mxu0 0.0
        %1995 = vmatpush1.msra.mxu0 0.0
        %1996 = vmatprep.subr.mxu0 0.0
        %1997 = vmatpush1.msra.mxu0 0.0
        %1998 = vmatprep.subr.mxu0 0.0
        %1999 = vmatpush1.msra.mxu0 0.0
        %2000 = vmatprep.subr.mxu0 0.0
        %2001 = vmatpush1.msra.mxu0 0.0
        %2002 = vmatprep.subr.mxu0 0.0
        %2003 = vmatpush1.msra.mxu0 0.0
        %2004 = vmatprep.subr.mxu0 0.0
        %2005 = vmatpush1.msra.mxu0 0.0
        %2006 = vmatprep.subr.mxu0 0.0
        %2007 = vmatpush1.msra.mxu0 0.0
        %2008 = vmatprep.subr.mxu0 0.0
        %2009 = vmatpush1.msra.mxu0 0.0
        %2010 = vmatprep.subr.mxu0 0.0
        %2011 = vmatpush1.msra.mxu0 0.0
        %2012 = vmatprep.subr.mxu0 0.0
        %2013 = vmatpush1.msra.mxu0 0.0
        %2014 = vmatprep.subr.mxu0 0.0
        %2015 = vmatpush1.msra.mxu0 0.0
        %2016 = vmatprep.subr.mxu0 0.0
        %2017 = vmatpush1.msra.mxu0 0.0
        %2018 = vmatprep.subr.mxu0 0.0
        %2019 = vmatpush1.msra.mxu0 0.0
        %2020 = vmatprep.subr.mxu0 0.0
        %2021 = vmatpush1.msra.mxu0 0.0
        %2022 = vmatprep.subr.mxu0 0.0
        %2023 = vmatpush1.msra.mxu0 0.0
        %2024 = vmatprep.subr.mxu0 0.0
        %2025 = vmatpush1.msra.mxu0 %v1990
        %2026 = vmatprep.subr.mxu0 0.0
        %2027 = vmatpush2.msra.mxu0 0.0
        %2028 = vmatprep.subr.mxu0 0.0
        %2029 = vmatpush2.msra.mxu0 0.0
        %2030 = vmatprep.subr.mxu0 0.0
        %2031 = vmatpush2.msra.mxu0 0.0
        %2032 = vmatprep.subr.mxu0 0.0
        %2033 = vmatpush2.msra.mxu0 0.0
        %2034 = vmatprep.subr.mxu0 0.0
        %2035 = vmatpush2.msra.mxu0 0.0
        %2036 = vmatprep.subr.mxu0 0.0
        %2037 = vmatpush2.msra.mxu0 0.0
        %2038 = vmatprep.subr.mxu0 0.0
        %2039 = vmatpush2.msra.mxu0 0.0
        %2040 = vmatprep.subr.mxu0 0.0
        %2041 = vmatpush2.msra.mxu0 0.0
        %2042 = vmatprep.subr.mxu0 0.0
        %2043 = vmatpush2.msra.mxu0 0.0
        %2044 = vmatprep.subr.mxu0 0.0
        %2045 = vmatpush2.msra.mxu0 0.0
        %2046 = vmatprep.subr.mxu0 0.0
        %2047 = vmatpush2.msra.mxu0 0.0
        %2048 = vmatprep.subr.mxu0 0.0
        %2049 = vmatpush2.msra.mxu0 0.0
        %2050 = vmatprep.subr.mxu0 0.0
        %2051 = vmatpush2.msra.mxu0 0.0
        %2052 = vmatprep.subr.mxu0 0.0
        %2053 = vmatpush2.msra.mxu0 0.0
        %2054 = vmatprep.subr.mxu0 0.0
        %2055 = vmatpush2.msra.mxu0 0.0
        %2056 = vmatprep.subr.mxu0 0.0
        %2057 = vmatpush2.msra.mxu0 0.0
        %2058 = vmatprep.mubr.f32.mxu0 0.0
        %2059 = vmatmul.mubr.f32.gmra.mxu0 %v1992
        %v2060 = vpop.f32.mrf.mxu0
        %v2061 = vadd.f32 0.0, %v2060
        %v2062 = vpop.f32.mrf.mxu0
        %2063 = vdwg.mxu0
        %v2064 = vadd.f32 %v1820, %v2061
        %2065 = vrot.lane.b32.xlu0 %v1178, 104
        %v2066 = vpop.permute.xlu0 %2065
        %2067 = vrot.lane.b32.xlu0 %v1259, 104
        %v2068 = vpop.permute.xlu0 %2067
        %v2069 = vsel %vm1344, %v2066, 0
        %v2071 = vsel %vm1344, %v2068, 0
        %2073 = vmatprep.subr.mxu0 0.0
        %2074 = vmatpush1.xpose.msra.mxu0 0.0
        %2075 = vmatprep.subr.mxu0 0.0
        %2076 = vmatpush1.xpose.msra.mxu0 0.0
        %2077 = vmatprep.subr.mxu0 0.0
        %2078 = vmatpush1.xpose.msra.mxu0 0.0
        %2079 = vmatprep.subr.mxu0 0.0
        %2080 = vmatpush1.xpose.msra.mxu0 0.0
        %2081 = vmatprep.subr.mxu0 0.0
        %2082 = vmatpush1.xpose.msra.mxu0 0.0
        %2083 = vmatprep.subr.mxu0 0.0
        %2084 = vmatpush1.xpose.msra.mxu0 0.0
        %2085 = vmatprep.subr.mxu0 0.0
        %2086 = vmatpush1.xpose.msra.mxu0 0.0
        %2087 = vmatprep.subr.mxu0 0.0
        %2088 = vmatpush1.xpose.msra.mxu0 0.0
        %2089 = vmatprep.subr.mxu0 0.0
        %2090 = vmatpush1.xpose.msra.mxu0 0.0
        %2091 = vmatprep.subr.mxu0 0.0
        %2092 = vmatpush1.xpose.msra.mxu0 0.0
        %2093 = vmatprep.subr.mxu0 0.0
        %2094 = vmatpush1.xpose.msra.mxu0 0.0
        %2095 = vmatprep.subr.mxu0 0.0
        %2096 = vmatpush1.xpose.msra.mxu0 0.0
        %2097 = vmatprep.subr.mxu0 0.0
        %2098 = vmatpush1.xpose.msra.mxu0 0.0
        %2099 = vmatprep.subr.mxu0 0.0
        %2100 = vmatpush1.xpose.msra.mxu0 0.0
        %2101 = vmatprep.subr.mxu0 0.0
        %2102 = vmatpush1.xpose.msra.mxu0 0.0
        %2103 = vmatprep.subr.mxu0 0.0
        %2104 = vmatpush1.xpose.msra.mxu0 %v2071
        %2105 = vmatprep.subr.mxu0 0.0
        %2106 = vmatpush2.xpose.msra.mxu0 0.0
        %2107 = vmatprep.subr.mxu0 0.0
        %2108 = vmatpush2.xpose.msra.mxu0 0.0
        %2109 = vmatprep.subr.mxu0 0.0
        %2110 = vmatpush2.xpose.msra.mxu0 0.0
        %2111 = vmatprep.subr.mxu0 0.0
        %2112 = vmatpush2.xpose.msra.mxu0 0.0
        %2113 = vmatprep.subr.mxu0 0.0
        %2114 = vmatpush2.xpose.msra.mxu0 0.0
        %2115 = vmatprep.subr.mxu0 0.0
        %2116 = vmatpush2.xpose.msra.mxu0 0.0
        %2117 = vmatprep.subr.mxu0 0.0
        %2118 = vmatpush2.xpose.msra.mxu0 0.0
        %2119 = vmatprep.subr.mxu0 0.0
        %2120 = vmatpush2.xpose.msra.mxu0 0.0
        %2121 = vmatprep.subr.mxu0 0.0
        %2122 = vmatpush2.xpose.msra.mxu0 0.0
        %2123 = vmatprep.subr.mxu0 0.0
        %2124 = vmatpush2.xpose.msra.mxu0 0.0
        %2125 = vmatprep.subr.mxu0 0.0
        %2126 = vmatpush2.xpose.msra.mxu0 0.0
        %2127 = vmatprep.subr.mxu0 0.0
        %2128 = vmatpush2.xpose.msra.mxu0 0.0
        %2129 = vmatprep.subr.mxu0 0.0
        %2130 = vmatpush2.xpose.msra.mxu0 0.0
        %2131 = vmatprep.subr.mxu0 0.0
        %2132 = vmatpush2.xpose.msra.mxu0 0.0
        %2133 = vmatprep.subr.mxu0 0.0
        %2134 = vmatpush2.xpose.msra.mxu0 0.0
        %2135 = vmatprep.subr.mxu0 0.0
        %2136 = vmatpush2.xpose.msra.mxu0 0.0
        %2137 = vmatprep.mubr.f32.mxu0 0.0
        %2138 = vmatmul.mubr.f32.gmra.mxu0 %v2069
        %v2139 = vpop.f32.mrf.mxu0
        %v2140 = vadd.f32 0.0, %v2139
        %v2141 = vpop.f32.mrf.mxu0
        %2142 = vdwg.mxu0
        %v2143 = vmul.f32 %v2140, 0.35355338
        %v2144 = vadd.f32 %v2143, %v1343
        %v2145 = vsel %vm1344, %v2144, -inf
        %2146 = vmax.xlane.f32.xlu0 %v2145
        %v2147 = vpop.xlane.xlu0 %2146
        %v2148 = vsub.f32 %v2144, %v2147
        %v2149 = vmul.f32 %v2148, 1.442695
        %v2150 = vpow.pop %v2149
        %v2151 = vsel %vm1344, %v2150, 0.0
        %2152 = vadd.xlane.f32.xlu0 %v2151
        %v2153 = vpop.xlane.xlu0 %2152
        %v2154 = vrcp.pop %v2153
        %v2155 = vmul.f32 %v2150, %v2154
        %2156 = vrot.lane.b32.xlu0 %v1340, 104
        %v2157 = vpop.permute.xlu0 %2156
        %v2160 = vsel %vm1344, %v2155, 0
        %2162 = vmatprep.subr.mxu0 0.0
        %2163 = vmatpush1.msra.mxu0 0.0
        %2164 = vmatprep.subr.mxu0 0.0
        %2165 = vmatpush1.msra.mxu0 0.0
        %2166 = vmatprep.subr.mxu0 0.0
        %2167 = vmatpush1.msra.mxu0 0.0
        %2168 = vmatprep.subr.mxu0 0.0
        %2169 = vmatpush1.msra.mxu0 0.0
        %2170 = vmatprep.subr.mxu0 0.0
        %2171 = vmatpush1.msra.mxu0 0.0
        %2172 = vmatprep.subr.mxu0 0.0
        %2173 = vmatpush1.msra.mxu0 0.0
        %2174 = vmatprep.subr.mxu0 0.0
        %2175 = vmatpush1.msra.mxu0 0.0
        %2176 = vmatprep.subr.mxu0 0.0
        %2177 = vmatpush1.msra.mxu0 0.0
        %2178 = vmatprep.subr.mxu0 0.0
        %2179 = vmatpush1.msra.mxu0 0.0
        %2180 = vmatprep.subr.mxu0 0.0
        %2181 = vmatpush1.msra.mxu0 0.0
        %2182 = vmatprep.subr.mxu0 0.0
        %2183 = vmatpush1.msra.mxu0 0.0
        %2184 = vmatprep.subr.mxu0 0.0
        %2185 = vmatpush1.msra.mxu0 0.0
        %2186 = vmatprep.subr.mxu0 0.0
        %2187 = vmatpush1.msra.mxu0 0.0
        %2188 = vmatprep.subr.mxu0 0.0
        %2189 = vmatpush1.msra.mxu0 0.0
        %2190 = vmatprep.subr.mxu0 0.0
        %2191 = vmatpush1.msra.mxu0 0.0
        %2192 = vmatprep.subr.mxu0 0.0
        %2193 = vmatpush1.msra.mxu0 %v2157
        %2194 = vmatprep.subr.mxu0 0.0
        %2195 = vmatpush2.msra.mxu0 0.0
        %2196 = vmatprep.subr.mxu0 0.0
        %2197 = vmatpush2.msra.mxu0 0.0
        %2198 = vmatprep.subr.mxu0 0.0
        %2199 = vmatpush2.msra.mxu0 0.0
        %2200 = vmatprep.subr.mxu0 0.0
        %2201 = vmatpush2.msra.mxu0 0.0
        %2202 = vmatprep.subr.mxu0 0.0
        %2203 = vmatpush2.msra.mxu0 0.0
        %2204 = vmatprep.subr.mxu0 0.0
        %2205 = vmatpush2.msra.mxu0 0.0
        %2206 = vmatprep.subr.mxu0 0.0
        %2207 = vmatpush2.msra.mxu0 0.0
        %2208 = vmatprep.subr.mxu0 0.0
        %2209 = vmatpush2.msra.mxu0 0.0
        %2210 = vmatprep.subr.mxu0 0.0
        %2211 = vmatpush2.msra.mxu0 0.0
        %2212 = vmatprep.subr.mxu0 0.0
        %2213 = vmatpush2.msra.mxu0 0.0
        %2214 = vmatprep.subr.mxu0 0.0
        %2215 = vmatpush2.msra.mxu0 0.0
        %2216 = vmatprep.subr.mxu0 0.0
        %2217 = vmatpush2.msra.mxu0 0.0
        %2218 = vmatprep.subr.mxu0 0.0
        %2219 = vmatpush2.msra.mxu0 0.0
        %2220 = vmatprep.subr.mxu0 0.0
        %2221 = vmatpush2.msra.mxu0 0.0
        %2222 = vmatprep.subr.mxu0 0.0
        %2223 = vmatpush2.msra.mxu0 0.0
        %2224 = vmatprep.subr.mxu0 0.0
        %2225 = vmatpush2.msra.mxu0 0.0
        %2226 = vmatprep.mubr.f32.mxu0 0.0
        %2227 = vmatmul.mubr.f32.gmra.mxu0 %v2160
        %v2228 = vpop.f32.mrf.mxu0
        %v2229 = vadd.f32 0.0, %v2228
        %v2230 = vpop.f32.mrf.mxu0
        %2231 = vdwg.mxu0
        %v2232 = vld [vmem:[#allocation10 + $0x18] sm:$0xff]
        %v2234 = vsel %vm1344, %v2229, 0
        %2236 = vmatprep.subr.mxu0 0.0
        %2237 = vmatpush1.msra.mxu0 0.0
        %2238 = vmatprep.subr.mxu0 0.0
        %2239 = vmatpush1.msra.mxu0 0.0
        %2240 = vmatprep.subr.mxu0 0.0
        %2241 = vmatpush1.msra.mxu0 0.0
        %2242 = vmatprep.subr.mxu0 0.0
        %2243 = vmatpush1.msra.mxu0 0.0
        %2244 = vmatprep.subr.mxu0 0.0
        %2245 = vmatpush1.msra.mxu0 0.0
        %2246 = vmatprep.subr.mxu0 0.0
        %2247 = vmatpush1.msra.mxu0 0.0
        %2248 = vmatprep.subr.mxu0 0.0
        %2249 = vmatpush1.msra.mxu0 0.0
        %2250 = vmatprep.subr.mxu0 0.0
        %2251 = vmatpush1.msra.mxu0 0.0
        %2252 = vmatprep.subr.mxu0 0.0
        %2253 = vmatpush1.msra.mxu0 0.0
        %2254 = vmatprep.subr.mxu0 0.0
        %2255 = vmatpush1.msra.mxu0 0.0
        %2256 = vmatprep.subr.mxu0 0.0
        %2257 = vmatpush1.msra.mxu0 0.0
        %2258 = vmatprep.subr.mxu0 0.0
        %2259 = vmatpush1.msra.mxu0 0.0
        %2260 = vmatprep.subr.mxu0 0.0
        %2261 = vmatpush1.msra.mxu0 0.0
        %2262 = vmatprep.subr.mxu0 0.0
        %2263 = vmatpush1.msra.mxu0 0.0
        %2264 = vmatprep.subr.mxu0 0.0
        %2265 = vmatpush1.msra.mxu0 0.0
        %2266 = vmatprep.subr.mxu0 0.0
        %2267 = vmatpush1.msra.mxu0 %v2232
        %2268 = vmatprep.subr.mxu0 0.0
        %2269 = vmatpush2.msra.mxu0 0.0
        %2270 = vmatprep.subr.mxu0 0.0
        %2271 = vmatpush2.msra.mxu0 0.0
        %2272 = vmatprep.subr.mxu0 0.0
        %2273 = vmatpush2.msra.mxu0 0.0
        %2274 = vmatprep.subr.mxu0 0.0
        %2275 = vmatpush2.msra.mxu0 0.0
        %2276 = vmatprep.subr.mxu0 0.0
        %2277 = vmatpush2.msra.mxu0 0.0
        %2278 = vmatprep.subr.mxu0 0.0
        %2279 = vmatpush2.msra.mxu0 0.0
        %2280 = vmatprep.subr.mxu0 0.0
        %2281 = vmatpush2.msra.mxu0 0.0
        %2282 = vmatprep.subr.mxu0 0.0
        %2283 = vmatpush2.msra.mxu0 0.0
        %2284 = vmatprep.subr.mxu0 0.0
        %2285 = vmatpush2.msra.mxu0 0.0
        %2286 = vmatprep.subr.mxu0 0.0
        %2287 = vmatpush2.msra.mxu0 0.0
        %2288 = vmatprep.subr.mxu0 0.0
        %2289 = vmatpush2.msra.mxu0 0.0
        %2290 = vmatprep.subr.mxu0 0.0
        %2291 = vmatpush2.msra.mxu0 0.0
        %2292 = vmatprep.subr.mxu0 0.0
        %2293 = vmatpush2.msra.mxu0 0.0
        %2294 = vmatprep.subr.mxu0 0.0
        %2295 = vmatpush2.msra.mxu0 0.0
        %2296 = vmatprep.subr.mxu0 0.0
        %2297 = vmatpush2.msra.mxu0 0.0
        %2298 = vmatprep.subr.mxu0 0.0
        %2299 = vmatpush2.msra.mxu0 0.0
        %2300 = vmatprep.mubr.f32.mxu0 0.0
        %2301 = vmatmul.mubr.f32.gmra.mxu0 %v2234
        %v2302 = vpop.f32.mrf.mxu0
        %v2303 = vadd.f32 0.0, %v2302
        %v2304 = vpop.f32.mrf.mxu0
        %2305 = vdwg.mxu0
        %v2306 = vadd.f32 %v2064, %v2303
        %v2307 = vld [vmem:[%s23] sm:$0x1]
        %v2309 = vlaneseq
        %v2310 = vshrl.u32 %v2309, 7
        %v2311 = vsub.s32 0, %v2310
        %v2312 = vrot.slane %v2307, %v2311
        %v2314 = vadd.f32 %v2306, %v2312
        %v2315 = vadd.f32 %v1093, %v2314
        %v2316 = vsel %vm1107, %v2315, 0.0
        %2317 = vadd.xlane.f32.xlu0 %v2316
        %v2318 = vpop.xlane.xlu0 %2317
        %v2319 = vrcp.pop 32.0
        %v2320 = vmul.f32 %v2318, %v2319
        %v2321 = vsub.f32 %v2315, %v2320
        %v2322 = vmul.f32 %v2321, %v2321
        %v2323 = vsel %vm1107, %v2322, 0.0
        %2324 = vadd.xlane.f32.xlu0 %v2323
        %v2325 = vpop.xlane.xlu0 %2324
        %v2326 = vrcp.pop 31.0
        %v2327 = vmul.f32 %v2325, %v2326
        %v2328 = vld [vmem:[%s25] sm:$0x1]
        %v2330 = vlaneseq
        %v2331 = vshrl.u32 %v2330, 7
        %v2332 = vsub.s32 0, %v2331
        %v2333 = vrot.slane %v2328, %v2332
        %v2335 = vmul.f32 %v2333, %v2321
        %v2336 = vrsqrt.pop %v2327
        %v2337 = vmul.f32 %v2327, %v2336
        %vm2338 = vcmp.eq.f32.partialorder %v2327, inf
        %v2339 = vsel %vm2338, %v2327, %v2337
        %vm2340 = vcmp.eq.f32.partialorder %v2327, 0.0
        %v2341 = vand.u32 %v2327, 2147483648
        %v2342 = vsel %vm2340, %v2341, %v2339
        %v2343 = vadd.f32 %v2342, 1e-06
        %v2344 = vrcp.pop %v2343
        %v2345 = vmul.f32 %v2335, %v2344
        %v2346 = vld [vmem:[%s27] sm:$0x1]
        %v2348 = vlaneseq
        %v2349 = vshrl.u32 %v2348, 7
        %v2350 = vsub.s32 0, %v2349
        %v2351 = vrot.slane %v2346, %v2350
        %v2353 = vadd.f32 %v2345, %v2351
        %v2354 = vld [vmem:[#allocation11] sm:$0xff]
        %v2355 = vld [vmem:[#allocation11 + $0x8] sm:$0xff]
        %v2356 = vld [vmem:[#allocation11 + $0x10] sm:$0xff]
        %v2357 = vld [vmem:[#allocation11 + $0x18] sm:$0xff]
        %v2358 = vld [vmem:[%s31] sm:$0x1]
        %v2360 = vlaneseq
        %v2361 = vshrl.u32 %v2360, 7
        %v2362 = vsub.s32 0, %v2361
        %v2363 = vrot.slane %v2358, %v2362
        %v2366 = vsel %vm1107, %v2353, 0
        %2368 = vmatprep.subr.mxu0 0.0
        %2369 = vmatpush1.msra.mxu0 0.0
        %2370 = vmatprep.subr.mxu0 0.0
        %2371 = vmatpush1.msra.mxu0 0.0
        %2372 = vmatprep.subr.mxu0 0.0
        %2373 = vmatpush1.msra.mxu0 0.0
        %2374 = vmatprep.subr.mxu0 0.0
        %2375 = vmatpush1.msra.mxu0 0.0
        %2376 = vmatprep.subr.mxu0 0.0
        %2377 = vmatpush1.msra.mxu0 0.0
        %2378 = vmatprep.subr.mxu0 0.0
        %2379 = vmatpush1.msra.mxu0 0.0
        %2380 = vmatprep.subr.mxu0 0.0
        %2381 = vmatpush1.msra.mxu0 0.0
        %2382 = vmatprep.subr.mxu0 0.0
        %2383 = vmatpush1.msra.mxu0 0.0
        %2384 = vmatprep.subr.mxu0 0.0
        %2385 = vmatpush1.msra.mxu0 0.0
        %2386 = vmatprep.subr.mxu0 0.0
        %2387 = vmatpush1.msra.mxu0 0.0
        %2388 = vmatprep.subr.mxu0 0.0
        %2389 = vmatpush1.msra.mxu0 0.0
        %2390 = vmatprep.subr.mxu0 0.0
        %2391 = vmatpush1.msra.mxu0 0.0
        %2392 = vmatprep.subr.mxu0 0.0
        %2393 = vmatpush1.msra.mxu0 %v2357
        %2394 = vmatprep.subr.mxu0 0.0
        %2395 = vmatpush1.msra.mxu0 %v2356
        %2396 = vmatprep.subr.mxu0 0.0
        %2397 = vmatpush1.msra.mxu0 %v2355
        %2398 = vmatprep.subr.mxu0 0.0
        %2399 = vmatpush1.msra.mxu0 %v2354
        %2400 = vmatprep.subr.mxu0 0.0
        %2401 = vmatpush2.msra.mxu0 0.0
        %2402 = vmatprep.subr.mxu0 0.0
        %2403 = vmatpush2.msra.mxu0 0.0
        %2404 = vmatprep.subr.mxu0 0.0
        %2405 = vmatpush2.msra.mxu0 0.0
        %2406 = vmatprep.subr.mxu0 0.0
        %2407 = vmatpush2.msra.mxu0 0.0
        %2408 = vmatprep.subr.mxu0 0.0
        %2409 = vmatpush2.msra.mxu0 0.0
        %2410 = vmatprep.subr.mxu0 0.0
        %2411 = vmatpush2.msra.mxu0 0.0
        %2412 = vmatprep.subr.mxu0 0.0
        %2413 = vmatpush2.msra.mxu0 0.0
        %2414 = vmatprep.subr.mxu0 0.0
        %2415 = vmatpush2.msra.mxu0 0.0
        %2416 = vmatprep.subr.mxu0 0.0
        %2417 = vmatpush2.msra.mxu0 0.0
        %2418 = vmatprep.subr.mxu0 0.0
        %2419 = vmatpush2.msra.mxu0 0.0
        %2420 = vmatprep.subr.mxu0 0.0
        %2421 = vmatpush2.msra.mxu0 0.0
        %2422 = vmatprep.subr.mxu0 0.0
        %2423 = vmatpush2.msra.mxu0 0.0
        %2424 = vmatprep.subr.mxu0 0.0
        %2425 = vmatpush2.msra.mxu0 0.0
        %2426 = vmatprep.subr.mxu0 0.0
        %2427 = vmatpush2.msra.mxu0 0.0
        %2428 = vmatprep.subr.mxu0 0.0
        %2429 = vmatpush2.msra.mxu0 0.0
        %2430 = vmatprep.subr.mxu0 0.0
        %2431 = vmatpush2.msra.mxu0 0.0
        %2432 = vmatprep.mubr.f32.mxu0 0.0
        %2433 = vmatmul.mubr.f32.gmra.mxu0 %v2366
        %v2434 = vpop.f32.mrf.mxu0
        %v2435 = vadd.f32 %v2363, %v2434
        %v2436 = vpop.f32.mrf.mxu0
        %2437 = vdwg.mxu0
        %v2438 = vld [vmem:[#allocation13] sm:$0xff]
        %v2439 = vld [vmem:[#allocation13 + $0x8] sm:$0xff]
        %v2440 = vld [vmem:[#allocation13 + $0x10] sm:$0xff]
        %v2441 = vld [vmem:[#allocation13 + $0x18] sm:$0xff]
        %v2442 = vld [vmem:[%s35] sm:$0x1]
        %v2444 = vlaneseq
        %v2445 = vshrl.u32 %v2444, 7
        %v2446 = vsub.s32 0, %v2445
        %v2447 = vrot.slane %v2442, %v2446
        %v2450 = vsel %vm1107, %v1094, 0
        %v2453 = vsel %vm1107, %v1095, 0
        %2455 = vmatprep.subr.mxu0 0.0
        %2456 = vmatpush1.msra.mxu0 0.0
        %2457 = vmatprep.subr.mxu0 0.0
        %2458 = vmatpush1.msra.mxu0 0.0
        %2459 = vmatprep.subr.mxu0 0.0
        %2460 = vmatpush1.msra.mxu0 0.0
        %2461 = vmatprep.subr.mxu0 0.0
        %2462 = vmatpush1.msra.mxu0 0.0
        %2463 = vmatprep.subr.mxu0 0.0
        %2464 = vmatpush1.msra.mxu0 0.0
        %2465 = vmatprep.subr.mxu0 0.0
        %2466 = vmatpush1.msra.mxu0 0.0
        %2467 = vmatprep.subr.mxu0 0.0
        %2468 = vmatpush1.msra.mxu0 0.0
        %2469 = vmatprep.subr.mxu0 0.0
        %2470 = vmatpush1.msra.mxu0 0.0
        %2471 = vmatprep.subr.mxu0 0.0
        %2472 = vmatpush1.msra.mxu0 0.0
        %2473 = vmatprep.subr.mxu0 0.0
        %2474 = vmatpush1.msra.mxu0 0.0
        %2475 = vmatprep.subr.mxu0 0.0
        %2476 = vmatpush1.msra.mxu0 0.0
        %2477 = vmatprep.subr.mxu0 0.0
        %2478 = vmatpush1.msra.mxu0 0.0
        %2479 = vmatprep.subr.mxu0 0.0
        %2480 = vmatpush1.msra.mxu0 %v2441
        %2481 = vmatprep.subr.mxu0 0.0
        %2482 = vmatpush1.msra.mxu0 %v2440
        %2483 = vmatprep.subr.mxu0 0.0
        %2484 = vmatpush1.msra.mxu0 %v2439
        %2485 = vmatprep.subr.mxu0 0.0
        %2486 = vmatpush1.msra.mxu0 %v2438
        %2487 = vmatprep.subr.mxu0 0.0
        %2488 = vmatpush2.msra.mxu0 0.0
        %2489 = vmatprep.subr.mxu0 0.0
        %2490 = vmatpush2.msra.mxu0 0.0
        %2491 = vmatprep.subr.mxu0 0.0
        %2492 = vmatpush2.msra.mxu0 0.0
        %2493 = vmatprep.subr.mxu0 0.0
        %2494 = vmatpush2.msra.mxu0 0.0
        %2495 = vmatprep.subr.mxu0 0.0
        %2496 = vmatpush2.msra.mxu0 0.0
        %2497 = vmatprep.subr.mxu0 0.0
        %2498 = vmatpush2.msra.mxu0 0.0
        %2499 = vmatprep.subr.mxu0 0.0
        %2500 = vmatpush2.msra.mxu0 0.0
        %2501 = vmatprep.subr.mxu0 0.0
        %2502 = vmatpush2.msra.mxu0 0.0
        %2503 = vmatprep.subr.mxu0 0.0
        %2504 = vmatpush2.msra.mxu0 0.0
        %2505 = vmatprep.subr.mxu0 0.0
        %2506 = vmatpush2.msra.mxu0 0.0
        %2507 = vmatprep.subr.mxu0 0.0
        %2508 = vmatpush2.msra.mxu0 0.0
        %2509 = vmatprep.subr.mxu0 0.0
        %2510 = vmatpush2.msra.mxu0 0.0
        %2511 = vmatprep.subr.mxu0 0.0
        %2512 = vmatpush2.msra.mxu0 0.0
        %2513 = vmatprep.subr.mxu0 0.0
        %2514 = vmatpush2.msra.mxu0 0.0
        %2515 = vmatprep.subr.mxu0 0.0
        %2516 = vmatpush2.msra.mxu0 0.0
        %2517 = vmatprep.subr.mxu0 0.0
        %2518 = vmatpush2.msra.mxu0 0.0
        %2519 = vmatprep.mubr.f32.mxu0 0.0
        %2520 = vmatmul.mubr.f32.gmra.mxu0 %v2450
        %v2521 = vpop.f32.mrf.mxu0
        %v2522 = vadd.f32 %v2447, %v2521
        %v2523 = vpop.f32.mrf.mxu0
        %2524 = vmatprep.mubr.f32.mxu0 0.0
        %2525 = vmatmul.mubr.f32.gmra.mxu0 %v2453
        %v2526 = vpop.f32.mrf.mxu0
        %v2527 = vadd.f32 %v2447, %v2526
        %v2528 = vpop.f32.mrf.mxu0
        %2529 = vdwg.mxu0
        %v2530 = vld [vmem:[#allocation14] sm:$0xff]
        %v2531 = vld [vmem:[#allocation14 + $0x8] sm:$0xff]
        %v2532 = vld [vmem:[#allocation14 + $0x10] sm:$0xff]
        %v2533 = vld [vmem:[#allocation14 + $0x18] sm:$0xff]
        %v2534 = vld [vmem:[%s39] sm:$0x1]
        %v2536 = vlaneseq
        %v2537 = vshrl.u32 %v2536, 7
        %v2538 = vsub.s32 0, %v2537
        %v2539 = vrot.slane %v2534, %v2538
        %2541 = vmatprep.subr.mxu0 0.0
        %2542 = vmatpush1.msra.mxu0 0.0
        %2543 = vmatprep.subr.mxu0 0.0
        %2544 = vmatpush1.msra.mxu0 0.0
        %2545 = vmatprep.subr.mxu0 0.0
        %2546 = vmatpush1.msra.mxu0 0.0
        %2547 = vmatprep.subr.mxu0 0.0
        %2548 = vmatpush1.msra.mxu0 0.0
        %2549 = vmatprep.subr.mxu0 0.0
        %2550 = vmatpush1.msra.mxu0 0.0
        %2551 = vmatprep.subr.mxu0 0.0
        %2552 = vmatpush1.msra.mxu0 0.0
        %2553 = vmatprep.subr.mxu0 0.0
        %2554 = vmatpush1.msra.mxu0 0.0
        %2555 = vmatprep.subr.mxu0 0.0
        %2556 = vmatpush1.msra.mxu0 0.0
        %2557 = vmatprep.subr.mxu0 0.0
        %2558 = vmatpush1.msra.mxu0 0.0
        %2559 = vmatprep.subr.mxu0 0.0
        %2560 = vmatpush1.msra.mxu0 0.0
        %2561 = vmatprep.subr.mxu0 0.0
        %2562 = vmatpush1.msra.mxu0 0.0
        %2563 = vmatprep.subr.mxu0 0.0
        %2564 = vmatpush1.msra.mxu0 0.0
        %2565 = vmatprep.subr.mxu0 0.0
        %2566 = vmatpush1.msra.mxu0 %v2533
        %2567 = vmatprep.subr.mxu0 0.0
        %2568 = vmatpush1.msra.mxu0 %v2532
        %2569 = vmatprep.subr.mxu0 0.0
        %2570 = vmatpush1.msra.mxu0 %v2531
        %2571 = vmatprep.subr.mxu0 0.0
        %2572 = vmatpush1.msra.mxu0 %v2530
        %2573 = vmatprep.subr.mxu0 0.0
        %2574 = vmatpush2.msra.mxu0 0.0
        %2575 = vmatprep.subr.mxu0 0.0
        %2576 = vmatpush2.msra.mxu0 0.0
        %2577 = vmatprep.subr.mxu0 0.0
        %2578 = vmatpush2.msra.mxu0 0.0
        %2579 = vmatprep.subr.mxu0 0.0
        %2580 = vmatpush2.msra.mxu0 0.0
        %2581 = vmatprep.subr.mxu0 0.0
        %2582 = vmatpush2.msra.mxu0 0.0
        %2583 = vmatprep.subr.mxu0 0.0
        %2584 = vmatpush2.msra.mxu0 0.0
        %2585 = vmatprep.subr.mxu0 0.0
        %2586 = vmatpush2.msra.mxu0 0.0
        %2587 = vmatprep.subr.mxu0 0.0
        %2588 = vmatpush2.msra.mxu0 0.0
        %2589 = vmatprep.subr.mxu0 0.0
        %2590 = vmatpush2.msra.mxu0 0.0
        %2591 = vmatprep.subr.mxu0 0.0
        %2592 = vmatpush2.msra.mxu0 0.0
        %2593 = vmatprep.subr.mxu0 0.0
        %2594 = vmatpush2.msra.mxu0 0.0
        %2595 = vmatprep.subr.mxu0 0.0
        %2596 = vmatpush2.msra.mxu0 0.0
        %2597 = vmatprep.subr.mxu0 0.0
        %2598 = vmatpush2.msra.mxu0 0.0
        %2599 = vmatprep.subr.mxu0 0.0
        %2600 = vmatpush2.msra.mxu0 0.0
        %2601 = vmatprep.subr.mxu0 0.0
        %2602 = vmatpush2.msra.mxu0 0.0
        %2603 = vmatprep.subr.mxu0 0.0
        %2604 = vmatpush2.msra.mxu0 0.0
        %2605 = vmatprep.mubr.f32.mxu0 0.0
        %2606 = vmatmul.mubr.f32.gmra.mxu0 %v2450
        %v2607 = vpop.f32.mrf.mxu0
        %v2608 = vadd.f32 %v2539, %v2607
        %v2609 = vpop.f32.mrf.mxu0
        %2610 = vmatprep.mubr.f32.mxu0 0.0
        %2611 = vmatmul.mubr.f32.gmra.mxu0 %v2453
        %v2612 = vpop.f32.mrf.mxu0
        %v2613 = vadd.f32 %v2539, %v2612
        %v2614 = vpop.f32.mrf.mxu0
        %2615 = vdwg.mxu0
        %v2616 = vld [vmem:[#allocation7] sm:$0xff]
        %v2618 = vsel %vm1344, %v2435, 0
        %v2621 = vsel %vm1344, %v2522, 0
        %v2624 = vsel %vm1344, %v2527, 0
        %2626 = vmatprep.subr.mxu0 0.0
        %2627 = vmatpush1.xpose.msra.mxu0 0.0
        %2628 = vmatprep.subr.mxu0 0.0
        %2629 = vmatpush1.xpose.msra.mxu0 0.0
        %2630 = vmatprep.subr.mxu0 0.0
        %2631 = vmatpush1.xpose.msra.mxu0 0.0
        %2632 = vmatprep.subr.mxu0 0.0
        %2633 = vmatpush1.xpose.msra.mxu0 0.0
        %2634 = vmatprep.subr.mxu0 0.0
        %2635 = vmatpush1.xpose.msra.mxu0 0.0
        %2636 = vmatprep.subr.mxu0 0.0
        %2637 = vmatpush1.xpose.msra.mxu0 0.0
        %2638 = vmatprep.subr.mxu0 0.0
        %2639 = vmatpush1.xpose.msra.mxu0 0.0
        %2640 = vmatprep.subr.mxu0 0.0
        %2641 = vmatpush1.xpose.msra.mxu0 0.0
        %2642 = vmatprep.subr.mxu0 0.0
        %2643 = vmatpush1.xpose.msra.mxu0 0.0
        %2644 = vmatprep.subr.mxu0 0.0
        %2645 = vmatpush1.xpose.msra.mxu0 0.0
        %2646 = vmatprep.subr.mxu0 0.0
        %2647 = vmatpush1.xpose.msra.mxu0 0.0
        %2648 = vmatprep.subr.mxu0 0.0
        %2649 = vmatpush1.xpose.msra.mxu0 0.0
        %2650 = vmatprep.subr.mxu0 0.0
        %2651 = vmatpush1.xpose.msra.mxu0 0.0
        %2652 = vmatprep.subr.mxu0 0.0
        %2653 = vmatpush1.xpose.msra.mxu0 0.0
        %2654 = vmatprep.subr.mxu0 0.0
        %2655 = vmatpush1.xpose.msra.mxu0 %v2624
        %2656 = vmatprep.subr.mxu0 0.0
        %2657 = vmatpush1.xpose.msra.mxu0 %v2621
        %2658 = vmatprep.subr.mxu0 0.0
        %2659 = vmatpush2.xpose.msra.mxu0 0.0
        %2660 = vmatprep.subr.mxu0 0.0
        %2661 = vmatpush2.xpose.msra.mxu0 0.0
        %2662 = vmatprep.subr.mxu0 0.0
        %2663 = vmatpush2.xpose.msra.mxu0 0.0
        %2664 = vmatprep.subr.mxu0 0.0
        %2665 = vmatpush2.xpose.msra.mxu0 0.0
        %2666 = vmatprep.subr.mxu0 0.0
        %2667 = vmatpush2.xpose.msra.mxu0 0.0
        %2668 = vmatprep.subr.mxu0 0.0
        %2669 = vmatpush2.xpose.msra.mxu0 0.0
        %2670 = vmatprep.subr.mxu0 0.0
        %2671 = vmatpush2.xpose.msra.mxu0 0.0
        %2672 = vmatprep.subr.mxu0 0.0
        %2673 = vmatpush2.xpose.msra.mxu0 0.0
        %2674 = vmatprep.subr.mxu0 0.0
        %2675 = vmatpush2.xpose.msra.mxu0 0.0
        %2676 = vmatprep.subr.mxu0 0.0
        %2677 = vmatpush2.xpose.msra.mxu0 0.0
        %2678 = vmatprep.subr.mxu0 0.0
        %2679 = vmatpush2.xpose.msra.mxu0 0.0
        %2680 = vmatprep.subr.mxu0 0.0
        %2681 = vmatpush2.xpose.msra.mxu0 0.0
        %2682 = vmatprep.subr.mxu0 0.0
        %2683 = vmatpush2.xpose.msra.mxu0 0.0
        %2684 = vmatprep.subr.mxu0 0.0
        %2685 = vmatpush2.xpose.msra.mxu0 0.0
        %2686 = vmatprep.subr.mxu0 0.0
        %2687 = vmatpush2.xpose.msra.mxu0 0.0
        %2688 = vmatprep.subr.mxu0 0.0
        %2689 = vmatpush2.xpose.msra.mxu0 0.0
        %2690 = vmatprep.mubr.f32.mxu0 0.0
        %2691 = vmatmul.mubr.f32.gmra.mxu0 %v2618
        %v2692 = vpop.f32.mrf.mxu0
        %v2693 = vadd.f32 0.0, %v2692
        %v2694 = vpop.f32.mrf.mxu0
        %2695 = vdwg.mxu0
        %v2696 = vmul.f32 %v2693, 0.35355338
        %v2697 = vadd.f32 %v2696, %v2616
        %vm2698 = vcmask 130048
        %v2699 = vsel %vm2698, %v2697, -inf
        %2700 = vmax.xlane.f32.xlu0 %v2699
        %v2701 = vpop.xlane.xlu0 %2700
        %v2702 = vsub.f32 %v2697, %v2701
        %v2703 = vmul.f32 %v2702, 1.442695
        %v2704 = vpow.pop %v2703
        %v2705 = vsel %vm2698, %v2704, 0.0
        %2706 = vadd.xlane.f32.xlu0 %v2705
        %v2707 = vpop.xlane.xlu0 %2706
        %v2708 = vrcp.pop %v2707
        %v2709 = vmul.f32 %v2704, %v2708
        %v2711 = vsel %vm2698, %v2709, 0
        %2713 = vmatprep.subr.mxu0 0.0
        %2714 = vmatpush1.msra.mxu0 0.0
        %2715 = vmatprep.subr.mxu0 0.0
        %2716 = vmatpush1.msra.mxu0 0.0
        %2717 = vmatprep.subr.mxu0 0.0
        %2718 = vmatpush1.msra.mxu0 0.0
        %2719 = vmatprep.subr.mxu0 0.0
        %2720 = vmatpush1.msra.mxu0 0.0
        %2721 = vmatprep.subr.mxu0 0.0
        %2722 = vmatpush1.msra.mxu0 0.0
        %2723 = vmatprep.subr.mxu0 0.0
        %2724 = vmatpush1.msra.mxu0 0.0
        %2725 = vmatprep.subr.mxu0 0.0
        %2726 = vmatpush1.msra.mxu0 0.0
        %2727 = vmatprep.subr.mxu0 0.0
        %2728 = vmatpush1.msra.mxu0 0.0
        %2729 = vmatprep.subr.mxu0 0.0
        %2730 = vmatpush1.msra.mxu0 0.0
        %2731 = vmatprep.subr.mxu0 0.0
        %2732 = vmatpush1.msra.mxu0 0.0
        %2733 = vmatprep.subr.mxu0 0.0
        %2734 = vmatpush1.msra.mxu0 0.0
        %2735 = vmatprep.subr.mxu0 0.0
        %2736 = vmatpush1.msra.mxu0 0.0
        %2737 = vmatprep.subr.mxu0 0.0
        %2738 = vmatpush1.msra.mxu0 0.0
        %2739 = vmatprep.subr.mxu0 0.0
        %2740 = vmatpush1.msra.mxu0 0.0
        %2741 = vmatprep.subr.mxu0 0.0
        %2742 = vmatpush1.msra.mxu0 %v2613
        %2743 = vmatprep.subr.mxu0 0.0
        %2744 = vmatpush1.msra.mxu0 %v2608
        %2745 = vmatprep.subr.mxu0 0.0
        %2746 = vmatpush2.msra.mxu0 0.0
        %2747 = vmatprep.subr.mxu0 0.0
        %2748 = vmatpush2.msra.mxu0 0.0
        %2749 = vmatprep.subr.mxu0 0.0
        %2750 = vmatpush2.msra.mxu0 0.0
        %2751 = vmatprep.subr.mxu0 0.0
        %2752 = vmatpush2.msra.mxu0 0.0
        %2753 = vmatprep.subr.mxu0 0.0
        %2754 = vmatpush2.msra.mxu0 0.0
        %2755 = vmatprep.subr.mxu0 0.0
        %2756 = vmatpush2.msra.mxu0 0.0
        %2757 = vmatprep.subr.mxu0 0.0
        %2758 = vmatpush2.msra.mxu0 0.0
        %2759 = vmatprep.subr.mxu0 0.0
        %2760 = vmatpush2.msra.mxu0 0.0
        %2761 = vmatprep.subr.mxu0 0.0
        %2762 = vmatpush2.msra.mxu0 0.0
        %2763 = vmatprep.subr.mxu0 0.0
        %2764 = vmatpush2.msra.mxu0 0.0
        %2765 = vmatprep.subr.mxu0 0.0
        %2766 = vmatpush2.msra.mxu0 0.0
        %2767 = vmatprep.subr.mxu0 0.0
        %2768 = vmatpush2.msra.mxu0 0.0
        %2769 = vmatprep.subr.mxu0 0.0
        %2770 = vmatpush2.msra.mxu0 0.0
        %2771 = vmatprep.subr.mxu0 0.0
        %2772 = vmatpush2.msra.mxu0 0.0
        %2773 = vmatprep.subr.mxu0 0.0
        %2774 = vmatpush2.msra.mxu0 0.0
        %2775 = vmatprep.subr.mxu0 0.0
        %2776 = vmatpush2.msra.mxu0 0.0
        %2777 = vmatprep.mubr.f32.mxu0 0.0
        %2778 = vmatmul.mubr.f32.gmra.mxu0 %v2711
        %v2779 = vpop.f32.mrf.mxu0
        %v2780 = vadd.f32 0.0, %v2779
        %v2781 = vpop.f32.mrf.mxu0
        %2782 = vdwg.mxu0
        %v2783 = vld [vmem:[#allocation16] sm:$0xff]
        %2784 = vrot.lane.b32.xlu0 %v2435, 120
        %v2785 = vpop.permute.xlu0 %2784
        %2786 = vrot.lane.b32.xlu0 %v2522, 120
        %v2787 = vpop.permute.xlu0 %2786
        %2788 = vrot.lane.b32.xlu0 %v2527, 120
        %v2789 = vpop.permute.xlu0 %2788
        %v2790 = vsel %vm1344, %v2785, 0
        %v2792 = vsel %vm1344, %v2787, 0
        %v2794 = vsel %vm1344, %v2789, 0
        %2796 = vmatprep.subr.mxu0 0.0
        %2797 = vmatpush1.xpose.msra.mxu0 0.0
        %2798 = vmatprep.subr.mxu0 0.0
        %2799 = vmatpush1.xpose.msra.mxu0 0.0
        %2800 = vmatprep.subr.mxu0 0.0
        %2801 = vmatpush1.xpose.msra.mxu0 0.0
        %2802 = vmatprep.subr.mxu0 0.0
        %2803 = vmatpush1.xpose.msra.mxu0 0.0
        %2804 = vmatprep.subr.mxu0 0.0
        %2805 = vmatpush1.xpose.msra.mxu0 0.0
        %2806 = vmatprep.subr.mxu0 0.0
        %2807 = vmatpush1.xpose.msra.mxu0 0.0
        %2808 = vmatprep.subr.mxu0 0.0
        %2809 = vmatpush1.xpose.msra.mxu0 0.0
        %2810 = vmatprep.subr.mxu0 0.0
        %2811 = vmatpush1.xpose.msra.mxu0 0.0
        %2812 = vmatprep.subr.mxu0 0.0
        %2813 = vmatpush1.xpose.msra.mxu0 0.0
        %2814 = vmatprep.subr.mxu0 0.0
        %2815 = vmatpush1.xpose.msra.mxu0 0.0
        %2816 = vmatprep.subr.mxu0 0.0
        %2817 = vmatpush1.xpose.msra.mxu0 0.0
        %2818 = vmatprep.subr.mxu0 0.0
        %2819 = vmatpush1.xpose.msra.mxu0 0.0
        %2820 = vmatprep.subr.mxu0 0.0
        %2821 = vmatpush1.xpose.msra.mxu0 0.0
        %2822 = vmatprep.subr.mxu0 0.0
        %2823 = vmatpush1.xpose.msra.mxu0 0.0
        %2824 = vmatprep.subr.mxu0 0.0
        %2825 = vmatpush1.xpose.msra.mxu0 %v2794
        %2826 = vmatprep.subr.mxu0 0.0
        %2827 = vmatpush1.xpose.msra.mxu0 %v2792
        %2828 = vmatprep.subr.mxu0 0.0
        %2829 = vmatpush2.xpose.msra.mxu0 0.0
        %2830 = vmatprep.subr.mxu0 0.0
        %2831 = vmatpush2.xpose.msra.mxu0 0.0
        %2832 = vmatprep.subr.mxu0 0.0
        %2833 = vmatpush2.xpose.msra.mxu0 0.0
        %2834 = vmatprep.subr.mxu0 0.0
        %2835 = vmatpush2.xpose.msra.mxu0 0.0
        %2836 = vmatprep.subr.mxu0 0.0
        %2837 = vmatpush2.xpose.msra.mxu0 0.0
        %2838 = vmatprep.subr.mxu0 0.0
        %2839 = vmatpush2.xpose.msra.mxu0 0.0
        %2840 = vmatprep.subr.mxu0 0.0
        %2841 = vmatpush2.xpose.msra.mxu0 0.0
        %2842 = vmatprep.subr.mxu0 0.0
        %2843 = vmatpush2.xpose.msra.mxu0 0.0
        %2844 = vmatprep.subr.mxu0 0.0
        %2845 = vmatpush2.xpose.msra.mxu0 0.0
        %2846 = vmatprep.subr.mxu0 0.0
        %2847 = vmatpush2.xpose.msra.mxu0 0.0
        %2848 = vmatprep.subr.mxu0 0.0
        %2849 = vmatpush2.xpose.msra.mxu0 0.0
        %2850 = vmatprep.subr.mxu0 0.0
        %2851 = vmatpush2.xpose.msra.mxu0 0.0
        %2852 = vmatprep.subr.mxu0 0.0
        %2853 = vmatpush2.xpose.msra.mxu0 0.0
        %2854 = vmatprep.subr.mxu0 0.0
        %2855 = vmatpush2.xpose.msra.mxu0 0.0
        %2856 = vmatprep.subr.mxu0 0.0
        %2857 = vmatpush2.xpose.msra.mxu0 0.0
        %2858 = vmatprep.subr.mxu0 0.0
        %2859 = vmatpush2.xpose.msra.mxu0 0.0
        %2860 = vmatprep.mubr.f32.mxu0 0.0
        %2861 = vmatmul.mubr.f32.gmra.mxu0 %v2790
        %v2862 = vpop.f32.mrf.mxu0
        %v2863 = vadd.f32 0.0, %v2862
        %v2864 = vpop.f32.mrf.mxu0
        %2865 = vdwg.mxu0
        %v2866 = vmul.f32 %v2863, 0.35355338
        %v2867 = vadd.f32 %v2866, %v2616
        %v2868 = vsel %vm2698, %v2867, -inf
        %2869 = vmax.xlane.f32.xlu0 %v2868
        %v2870 = vpop.xlane.xlu0 %2869
        %v2871 = vsub.f32 %v2867, %v2870
        %v2872 = vmul.f32 %v2871, 1.442695
        %v2873 = vpow.pop %v2872
        %v2874 = vsel %vm2698, %v2873, 0.0
        %2875 = vadd.xlane.f32.xlu0 %v2874
        %v2876 = vpop.xlane.xlu0 %2875
        %v2877 = vrcp.pop %v2876
        %v2878 = vmul.f32 %v2873, %v2877
        %2881 = vrot.lane.b32.xlu0 %v2608, 120
        %v2882 = vpop.permute.xlu0 %2881
        %2883 = vrot.lane.b32.xlu0 %v2613, 120
        %v2884 = vpop.permute.xlu0 %2883
        %v2888 = vsel %vm2698, %v2878, 0
        %2890 = vmatprep.subr.mxu0 0.0
        %2891 = vmatpush1.msra.mxu0 0.0
        %2892 = vmatprep.subr.mxu0 0.0
        %2893 = vmatpush1.msra.mxu0 0.0
        %2894 = vmatprep.subr.mxu0 0.0
        %2895 = vmatpush1.msra.mxu0 0.0
        %2896 = vmatprep.subr.mxu0 0.0
        %2897 = vmatpush1.msra.mxu0 0.0
        %2898 = vmatprep.subr.mxu0 0.0
        %2899 = vmatpush1.msra.mxu0 0.0
        %2900 = vmatprep.subr.mxu0 0.0
        %2901 = vmatpush1.msra.mxu0 0.0
        %2902 = vmatprep.subr.mxu0 0.0
        %2903 = vmatpush1.msra.mxu0 0.0
        %2904 = vmatprep.subr.mxu0 0.0
        %2905 = vmatpush1.msra.mxu0 0.0
        %2906 = vmatprep.subr.mxu0 0.0
        %2907 = vmatpush1.msra.mxu0 0.0
        %2908 = vmatprep.subr.mxu0 0.0
        %2909 = vmatpush1.msra.mxu0 0.0
        %2910 = vmatprep.subr.mxu0 0.0
        %2911 = vmatpush1.msra.mxu0 0.0
        %2912 = vmatprep.subr.mxu0 0.0
        %2913 = vmatpush1.msra.mxu0 0.0
        %2914 = vmatprep.subr.mxu0 0.0
        %2915 = vmatpush1.msra.mxu0 0.0
        %2916 = vmatprep.subr.mxu0 0.0
        %2917 = vmatpush1.msra.mxu0 0.0
        %2918 = vmatprep.subr.mxu0 0.0
        %2919 = vmatpush1.msra.mxu0 %v2884
        %2920 = vmatprep.subr.mxu0 0.0
        %2921 = vmatpush1.msra.mxu0 %v2882
        %2922 = vmatprep.subr.mxu0 0.0
        %2923 = vmatpush2.msra.mxu0 0.0
        %2924 = vmatprep.subr.mxu0 0.0
        %2925 = vmatpush2.msra.mxu0 0.0
        %2926 = vmatprep.subr.mxu0 0.0
        %2927 = vmatpush2.msra.mxu0 0.0
        %2928 = vmatprep.subr.mxu0 0.0
        %2929 = vmatpush2.msra.mxu0 0.0
        %2930 = vmatprep.subr.mxu0 0.0
        %2931 = vmatpush2.msra.mxu0 0.0
        %2932 = vmatprep.subr.mxu0 0.0
        %2933 = vmatpush2.msra.mxu0 0.0
        %2934 = vmatprep.subr.mxu0 0.0
        %2935 = vmatpush2.msra.mxu0 0.0
        %2936 = vmatprep.subr.mxu0 0.0
        %2937 = vmatpush2.msra.mxu0 0.0
        %2938 = vmatprep.subr.mxu0 0.0
        %2939 = vmatpush2.msra.mxu0 0.0
        %2940 = vmatprep.subr.mxu0 0.0
        %2941 = vmatpush2.msra.mxu0 0.0
        %2942 = vmatprep.subr.mxu0 0.0
        %2943 = vmatpush2.msra.mxu0 0.0
        %2944 = vmatprep.subr.mxu0 0.0
        %2945 = vmatpush2.msra.mxu0 0.0
        %2946 = vmatprep.subr.mxu0 0.0
        %2947 = vmatpush2.msra.mxu0 0.0
        %2948 = vmatprep.subr.mxu0 0.0
        %2949 = vmatpush2.msra.mxu0 0.0
        %2950 = vmatprep.subr.mxu0 0.0
        %2951 = vmatpush2.msra.mxu0 0.0
        %2952 = vmatprep.subr.mxu0 0.0
        %2953 = vmatpush2.msra.mxu0 0.0
        %2954 = vmatprep.mubr.f32.mxu0 0.0
        %2955 = vmatmul.mubr.f32.gmra.mxu0 %v2888
        %v2956 = vpop.f32.mrf.mxu0
        %v2957 = vadd.f32 0.0, %v2956
        %v2958 = vpop.f32.mrf.mxu0
        %2959 = vdwg.mxu0
        %v2960 = vld [vmem:[#allocation16 + $0x8] sm:$0xff]
        %v2962 = vsel %vm1344, %v2957, 0
        %2964 = vmatprep.subr.mxu0 0.0
        %2965 = vmatpush1.msra.mxu0 0.0
        %2966 = vmatprep.subr.mxu0 0.0
        %2967 = vmatpush1.msra.mxu0 0.0
        %2968 = vmatprep.subr.mxu0 0.0
        %2969 = vmatpush1.msra.mxu0 0.0
        %2970 = vmatprep.subr.mxu0 0.0
        %2971 = vmatpush1.msra.mxu0 0.0
        %2972 = vmatprep.subr.mxu0 0.0
        %2973 = vmatpush1.msra.mxu0 0.0
        %2974 = vmatprep.subr.mxu0 0.0
        %2975 = vmatpush1.msra.mxu0 0.0
        %2976 = vmatprep.subr.mxu0 0.0
        %2977 = vmatpush1.msra.mxu0 0.0
        %2978 = vmatprep.subr.mxu0 0.0
        %2979 = vmatpush1.msra.mxu0 0.0
        %2980 = vmatprep.subr.mxu0 0.0
        %2981 = vmatpush1.msra.mxu0 0.0
        %2982 = vmatprep.subr.mxu0 0.0
        %2983 = vmatpush1.msra.mxu0 0.0
        %2984 = vmatprep.subr.mxu0 0.0
        %2985 = vmatpush1.msra.mxu0 0.0
        %2986 = vmatprep.subr.mxu0 0.0
        %2987 = vmatpush1.msra.mxu0 0.0
        %2988 = vmatprep.subr.mxu0 0.0
        %2989 = vmatpush1.msra.mxu0 0.0
        %2990 = vmatprep.subr.mxu0 0.0
        %2991 = vmatpush1.msra.mxu0 0.0
        %2992 = vmatprep.subr.mxu0 0.0
        %2993 = vmatpush1.msra.mxu0 0.0
        %2994 = vmatprep.subr.mxu0 0.0
        %2995 = vmatpush1.msra.mxu0 %v2960
        %2996 = vmatprep.subr.mxu0 0.0
        %2997 = vmatpush2.msra.mxu0 0.0
        %2998 = vmatprep.subr.mxu0 0.0
        %2999 = vmatpush2.msra.mxu0 0.0
        %3000 = vmatprep.subr.mxu0 0.0
        %3001 = vmatpush2.msra.mxu0 0.0
        %3002 = vmatprep.subr.mxu0 0.0
        %3003 = vmatpush2.msra.mxu0 0.0
        %3004 = vmatprep.subr.mxu0 0.0
        %3005 = vmatpush2.msra.mxu0 0.0
        %3006 = vmatprep.subr.mxu0 0.0
        %3007 = vmatpush2.msra.mxu0 0.0
        %3008 = vmatprep.subr.mxu0 0.0
        %3009 = vmatpush2.msra.mxu0 0.0
        %3010 = vmatprep.subr.mxu0 0.0
        %3011 = vmatpush2.msra.mxu0 0.0
        %3012 = vmatprep.subr.mxu0 0.0
        %3013 = vmatpush2.msra.mxu0 0.0
        %3014 = vmatprep.subr.mxu0 0.0
        %3015 = vmatpush2.msra.mxu0 0.0
        %3016 = vmatprep.subr.mxu0 0.0
        %3017 = vmatpush2.msra.mxu0 0.0
        %3018 = vmatprep.subr.mxu0 0.0
        %3019 = vmatpush2.msra.mxu0 0.0
        %3020 = vmatprep.subr.mxu0 0.0
        %3021 = vmatpush2.msra.mxu0 0.0
        %3022 = vmatprep.subr.mxu0 0.0
        %3023 = vmatpush2.msra.mxu0 0.0
        %3024 = vmatprep.subr.mxu0 0.0
        %3025 = vmatpush2.msra.mxu0 0.0
        %3026 = vmatprep.subr.mxu0 0.0
        %3027 = vmatpush2.msra.mxu0 0.0
        %3028 = vmatprep.mubr.f32.mxu0 0.0
        %3029 = vmatmul.mubr.f32.gmra.mxu0 %v2962
        %v3030 = vpop.f32.mrf.mxu0
        %v3031 = vadd.f32 0.0, %v3030
        %v3032 = vpop.f32.mrf.mxu0
        %3033 = vdwg.mxu0
        %v3035 = vsel %vm1344, %v2780, 0
        %3037 = vmatprep.subr.mxu0 0.0
        %3038 = vmatpush1.msra.mxu0 0.0
        %3039 = vmatprep.subr.mxu0 0.0
        %3040 = vmatpush1.msra.mxu0 0.0
        %3041 = vmatprep.subr.mxu0 0.0
        %3042 = vmatpush1.msra.mxu0 0.0
        %3043 = vmatprep.subr.mxu0 0.0
        %3044 = vmatpush1.msra.mxu0 0.0
        %3045 = vmatprep.subr.mxu0 0.0
        %3046 = vmatpush1.msra.mxu0 0.0
        %3047 = vmatprep.subr.mxu0 0.0
        %3048 = vmatpush1.msra.mxu0 0.0
        %3049 = vmatprep.subr.mxu0 0.0
        %3050 = vmatpush1.msra.mxu0 0.0
        %3051 = vmatprep.subr.mxu0 0.0
        %3052 = vmatpush1.msra.mxu0 0.0
        %3053 = vmatprep.subr.mxu0 0.0
        %3054 = vmatpush1.msra.mxu0 0.0
        %3055 = vmatprep.subr.mxu0 0.0
        %3056 = vmatpush1.msra.mxu0 0.0
        %3057 = vmatprep.subr.mxu0 0.0
        %3058 = vmatpush1.msra.mxu0 0.0
        %3059 = vmatprep.subr.mxu0 0.0
        %3060 = vmatpush1.msra.mxu0 0.0
        %3061 = vmatprep.subr.mxu0 0.0
        %3062 = vmatpush1.msra.mxu0 0.0
        %3063 = vmatprep.subr.mxu0 0.0
        %3064 = vmatpush1.msra.mxu0 0.0
        %3065 = vmatprep.subr.mxu0 0.0
        %3066 = vmatpush1.msra.mxu0 0.0
        %3067 = vmatprep.subr.mxu0 0.0
        %3068 = vmatpush1.msra.mxu0 %v2783
        %3069 = vmatprep.subr.mxu0 0.0
        %3070 = vmatpush2.msra.mxu0 0.0
        %3071 = vmatprep.subr.mxu0 0.0
        %3072 = vmatpush2.msra.mxu0 0.0
        %3073 = vmatprep.subr.mxu0 0.0
        %3074 = vmatpush2.msra.mxu0 0.0
        %3075 = vmatprep.subr.mxu0 0.0
        %3076 = vmatpush2.msra.mxu0 0.0
        %3077 = vmatprep.subr.mxu0 0.0
        %3078 = vmatpush2.msra.mxu0 0.0
        %3079 = vmatprep.subr.mxu0 0.0
        %3080 = vmatpush2.msra.mxu0 0.0
        %3081 = vmatprep.subr.mxu0 0.0
        %3082 = vmatpush2.msra.mxu0 0.0
        %3083 = vmatprep.subr.mxu0 0.0
        %3084 = vmatpush2.msra.mxu0 0.0
        %3085 = vmatprep.subr.mxu0 0.0
        %3086 = vmatpush2.msra.mxu0 0.0
        %3087 = vmatprep.subr.mxu0 0.0
        %3088 = vmatpush2.msra.mxu0 0.0
        %3089 = vmatprep.subr.mxu0 0.0
        %3090 = vmatpush2.msra.mxu0 0.0
        %3091 = vmatprep.subr.mxu0 0.0
        %3092 = vmatpush2.msra.mxu0 0.0
        %3093 = vmatprep.subr.mxu0 0.0
        %3094 = vmatpush2.msra.mxu0 0.0
        %3095 = vmatprep.subr.mxu0 0.0
        %3096 = vmatpush2.msra.mxu0 0.0
        %3097 = vmatprep.subr.mxu0 0.0
        %3098 = vmatpush2.msra.mxu0 0.0
        %3099 = vmatprep.subr.mxu0 0.0
        %3100 = vmatpush2.msra.mxu0 0.0
        %3101 = vmatprep.mubr.f32.mxu0 0.0
        %3102 = vmatmul.mubr.f32.gmra.mxu0 %v3035
        %v3103 = vpop.f32.mrf.mxu0
        %v3104 = vadd.f32 %v3031, %v3103
        %v3105 = vpop.f32.mrf.mxu0
        %3106 = vdwg.mxu0
        %3107 = vrot.lane.b32.xlu0 %v2435, 112
        %v3108 = vpop.permute.xlu0 %3107
        %3109 = vrot.lane.b32.xlu0 %v2522, 112
        %v3110 = vpop.permute.xlu0 %3109
        %3111 = vrot.lane.b32.xlu0 %v2527, 112
        %v3112 = vpop.permute.xlu0 %3111
        %v3113 = vsel %vm1344, %v3108, 0
        %v3115 = vsel %vm1344, %v3110, 0
        %v3117 = vsel %vm1344, %v3112, 0
        %3119 = vmatprep.subr.mxu0 0.0
        %3120 = vmatpush1.xpose.msra.mxu0 0.0
        %3121 = vmatprep.subr.mxu0 0.0
        %3122 = vmatpush1.xpose.msra.mxu0 0.0
        %3123 = vmatprep.subr.mxu0 0.0
        %3124 = vmatpush1.xpose.msra.mxu0 0.0
        %3125 = vmatprep.subr.mxu0 0.0
        %3126 = vmatpush1.xpose.msra.mxu0 0.0
        %3127 = vmatprep.subr.mxu0 0.0
        %3128 = vmatpush1.xpose.msra.mxu0 0.0
        %3129 = vmatprep.subr.mxu0 0.0
        %3130 = vmatpush1.xpose.msra.mxu0 0.0
        %3131 = vmatprep.subr.mxu0 0.0
        %3132 = vmatpush1.xpose.msra.mxu0 0.0
        %3133 = vmatprep.subr.mxu0 0.0
        %3134 = vmatpush1.xpose.msra.mxu0 0.0
        %3135 = vmatprep.subr.mxu0 0.0
        %3136 = vmatpush1.xpose.msra.mxu0 0.0
        %3137 = vmatprep.subr.mxu0 0.0
        %3138 = vmatpush1.xpose.msra.mxu0 0.0
        %3139 = vmatprep.subr.mxu0 0.0
        %3140 = vmatpush1.xpose.msra.mxu0 0.0
        %3141 = vmatprep.subr.mxu0 0.0
        %3142 = vmatpush1.xpose.msra.mxu0 0.0
        %3143 = vmatprep.subr.mxu0 0.0
        %3144 = vmatpush1.xpose.msra.mxu0 0.0
        %3145 = vmatprep.subr.mxu0 0.0
        %3146 = vmatpush1.xpose.msra.mxu0 0.0
        %3147 = vmatprep.subr.mxu0 0.0
        %3148 = vmatpush1.xpose.msra.mxu0 %v3117
        %3149 = vmatprep.subr.mxu0 0.0
        %3150 = vmatpush1.xpose.msra.mxu0 %v3115
        %3151 = vmatprep.subr.mxu0 0.0
        %3152 = vmatpush2.xpose.msra.mxu0 0.0
        %3153 = vmatprep.subr.mxu0 0.0
        %3154 = vmatpush2.xpose.msra.mxu0 0.0
        %3155 = vmatprep.subr.mxu0 0.0
        %3156 = vmatpush2.xpose.msra.mxu0 0.0
        %3157 = vmatprep.subr.mxu0 0.0
        %3158 = vmatpush2.xpose.msra.mxu0 0.0
        %3159 = vmatprep.subr.mxu0 0.0
        %3160 = vmatpush2.xpose.msra.mxu0 0.0
        %3161 = vmatprep.subr.mxu0 0.0
        %3162 = vmatpush2.xpose.msra.mxu0 0.0
        %3163 = vmatprep.subr.mxu0 0.0
        %3164 = vmatpush2.xpose.msra.mxu0 0.0
        %3165 = vmatprep.subr.mxu0 0.0
        %3166 = vmatpush2.xpose.msra.mxu0 0.0
        %3167 = vmatprep.subr.mxu0 0.0
        %3168 = vmatpush2.xpose.msra.mxu0 0.0
        %3169 = vmatprep.subr.mxu0 0.0
        %3170 = vmatpush2.xpose.msra.mxu0 0.0
        %3171 = vmatprep.subr.mxu0 0.0
        %3172 = vmatpush2.xpose.msra.mxu0 0.0
        %3173 = vmatprep.subr.mxu0 0.0
        %3174 = vmatpush2.xpose.msra.mxu0 0.0
        %3175 = vmatprep.subr.mxu0 0.0
        %3176 = vmatpush2.xpose.msra.mxu0 0.0
        %3177 = vmatprep.subr.mxu0 0.0
        %3178 = vmatpush2.xpose.msra.mxu0 0.0
        %3179 = vmatprep.subr.mxu0 0.0
        %3180 = vmatpush2.xpose.msra.mxu0 0.0
        %3181 = vmatprep.subr.mxu0 0.0
        %3182 = vmatpush2.xpose.msra.mxu0 0.0
        %3183 = vmatprep.mubr.f32.mxu0 0.0
        %3184 = vmatmul.mubr.f32.gmra.mxu0 %v3113
        %v3185 = vpop.f32.mrf.mxu0
        %v3186 = vadd.f32 0.0, %v3185
        %v3187 = vpop.f32.mrf.mxu0
        %3188 = vdwg.mxu0
        %v3189 = vmul.f32 %v3186, 0.35355338
        %v3190 = vadd.f32 %v3189, %v2616
        %v3191 = vsel %vm2698, %v3190, -inf
        %3192 = vmax.xlane.f32.xlu0 %v3191
        %v3193 = vpop.xlane.xlu0 %3192
        %v3194 = vsub.f32 %v3190, %v3193
        %v3195 = vmul.f32 %v3194, 1.442695
        %v3196 = vpow.pop %v3195
        %v3197 = vsel %vm2698, %v3196, 0.0
        %3198 = vadd.xlane.f32.xlu0 %v3197
        %v3199 = vpop.xlane.xlu0 %3198
        %v3200 = vrcp.pop %v3199
        %v3201 = vmul.f32 %v3196, %v3200
        %3202 = vrot.lane.b32.xlu0 %v2608, 112
        %v3203 = vpop.permute.xlu0 %3202
        %3204 = vrot.lane.b32.xlu0 %v2613, 112
        %v3205 = vpop.permute.xlu0 %3204
        %v3209 = vsel %vm2698, %v3201, 0
        %3211 = vmatprep.subr.mxu0 0.0
        %3212 = vmatpush1.msra.mxu0 0.0
        %3213 = vmatprep.subr.mxu0 0.0
        %3214 = vmatpush1.msra.mxu0 0.0
        %3215 = vmatprep.subr.mxu0 0.0
        %3216 = vmatpush1.msra.mxu0 0.0
        %3217 = vmatprep.subr.mxu0 0.0
        %3218 = vmatpush1.msra.mxu0 0.0
        %3219 = vmatprep.subr.mxu0 0.0
        %3220 = vmatpush1.msra.mxu0 0.0
        %3221 = vmatprep.subr.mxu0 0.0
        %3222 = vmatpush1.msra.mxu0 0.0
        %3223 = vmatprep.subr.mxu0 0.0
        %3224 = vmatpush1.msra.mxu0 0.0
        %3225 = vmatprep.subr.mxu0 0.0
        %3226 = vmatpush1.msra.mxu0 0.0
        %3227 = vmatprep.subr.mxu0 0.0
        %3228 = vmatpush1.msra.mxu0 0.0
        %3229 = vmatprep.subr.mxu0 0.0
        %3230 = vmatpush1.msra.mxu0 0.0
        %3231 = vmatprep.subr.mxu0 0.0
        %3232 = vmatpush1.msra.mxu0 0.0
        %3233 = vmatprep.subr.mxu0 0.0
        %3234 = vmatpush1.msra.mxu0 0.0
        %3235 = vmatprep.subr.mxu0 0.0
        %3236 = vmatpush1.msra.mxu0 0.0
        %3237 = vmatprep.subr.mxu0 0.0
        %3238 = vmatpush1.msra.mxu0 0.0
        %3239 = vmatprep.subr.mxu0 0.0
        %3240 = vmatpush1.msra.mxu0 %v3205
        %3241 = vmatprep.subr.mxu0 0.0
        %3242 = vmatpush1.msra.mxu0 %v3203
        %3243 = vmatprep.subr.mxu0 0.0
        %3244 = vmatpush2.msra.mxu0 0.0
        %3245 = vmatprep.subr.mxu0 0.0
        %3246 = vmatpush2.msra.mxu0 0.0
        %3247 = vmatprep.subr.mxu0 0.0
        %3248 = vmatpush2.msra.mxu0 0.0
        %3249 = vmatprep.subr.mxu0 0.0
        %3250 = vmatpush2.msra.mxu0 0.0
        %3251 = vmatprep.subr.mxu0 0.0
        %3252 = vmatpush2.msra.mxu0 0.0
        %3253 = vmatprep.subr.mxu0 0.0
        %3254 = vmatpush2.msra.mxu0 0.0
        %3255 = vmatprep.subr.mxu0 0.0
        %3256 = vmatpush2.msra.mxu0 0.0
        %3257 = vmatprep.subr.mxu0 0.0
        %3258 = vmatpush2.msra.mxu0 0.0
        %3259 = vmatprep.subr.mxu0 0.0
        %3260 = vmatpush2.msra.mxu0 0.0
        %3261 = vmatprep.subr.mxu0 0.0
        %3262 = vmatpush2.msra.mxu0 0.0
        %3263 = vmatprep.subr.mxu0 0.0
        %3264 = vmatpush2.msra.mxu0 0.0
        %3265 = vmatprep.subr.mxu0 0.0
        %3266 = vmatpush2.msra.mxu0 0.0
        %3267 = vmatprep.subr.mxu0 0.0
        %3268 = vmatpush2.msra.mxu0 0.0
        %3269 = vmatprep.subr.mxu0 0.0
        %3270 = vmatpush2.msra.mxu0 0.0
        %3271 = vmatprep.subr.mxu0 0.0
        %3272 = vmatpush2.msra.mxu0 0.0
        %3273 = vmatprep.subr.mxu0 0.0
        %3274 = vmatpush2.msra.mxu0 0.0
        %3275 = vmatprep.mubr.f32.mxu0 0.0
        %3276 = vmatmul.mubr.f32.gmra.mxu0 %v3209
        %v3277 = vpop.f32.mrf.mxu0
        %v3278 = vadd.f32 0.0, %v3277
        %v3279 = vpop.f32.mrf.mxu0
        %3280 = vdwg.mxu0
        %v3281 = vld [vmem:[#allocation16 + $0x10] sm:$0xff]
        %v3283 = vsel %vm1344, %v3278, 0
        %3285 = vmatprep.subr.mxu0 0.0
        %3286 = vmatpush1.msra.mxu0 0.0
        %3287 = vmatprep.subr.mxu0 0.0
        %3288 = vmatpush1.msra.mxu0 0.0
        %3289 = vmatprep.subr.mxu0 0.0
        %3290 = vmatpush1.msra.mxu0 0.0
        %3291 = vmatprep.subr.mxu0 0.0
        %3292 = vmatpush1.msra.mxu0 0.0
        %3293 = vmatprep.subr.mxu0 0.0
        %3294 = vmatpush1.msra.mxu0 0.0
        %3295 = vmatprep.subr.mxu0 0.0
        %3296 = vmatpush1.msra.mxu0 0.0
        %3297 = vmatprep.subr.mxu0 0.0
        %3298 = vmatpush1.msra.mxu0 0.0
        %3299 = vmatprep.subr.mxu0 0.0
        %3300 = vmatpush1.msra.mxu0 0.0
        %3301 = vmatprep.subr.mxu0 0.0
        %3302 = vmatpush1.msra.mxu0 0.0
        %3303 = vmatprep.subr.mxu0 0.0
        %3304 = vmatpush1.msra.mxu0 0.0
        %3305 = vmatprep.subr.mxu0 0.0
        %3306 = vmatpush1.msra.mxu0 0.0
        %3307 = vmatprep.subr.mxu0 0.0
        %3308 = vmatpush1.msra.mxu0 0.0
        %3309 = vmatprep.subr.mxu0 0.0
        %3310 = vmatpush1.msra.mxu0 0.0
        %3311 = vmatprep.subr.mxu0 0.0
        %3312 = vmatpush1.msra.mxu0 0.0
        %3313 = vmatprep.subr.mxu0 0.0
        %3314 = vmatpush1.msra.mxu0 0.0
        %3315 = vmatprep.subr.mxu0 0.0
        %3316 = vmatpush1.msra.mxu0 %v3281
        %3317 = vmatprep.subr.mxu0 0.0
        %3318 = vmatpush2.msra.mxu0 0.0
        %3319 = vmatprep.subr.mxu0 0.0
        %3320 = vmatpush2.msra.mxu0 0.0
        %3321 = vmatprep.subr.mxu0 0.0
        %3322 = vmatpush2.msra.mxu0 0.0
        %3323 = vmatprep.subr.mxu0 0.0
        %3324 = vmatpush2.msra.mxu0 0.0
        %3325 = vmatprep.subr.mxu0 0.0
        %3326 = vmatpush2.msra.mxu0 0.0
        %3327 = vmatprep.subr.mxu0 0.0
        %3328 = vmatpush2.msra.mxu0 0.0
        %3329 = vmatprep.subr.mxu0 0.0
        %3330 = vmatpush2.msra.mxu0 0.0
        %3331 = vmatprep.subr.mxu0 0.0
        %3332 = vmatpush2.msra.mxu0 0.0
        %3333 = vmatprep.subr.mxu0 0.0
        %3334 = vmatpush2.msra.mxu0 0.0
        %3335 = vmatprep.subr.mxu0 0.0
        %3336 = vmatpush2.msra.mxu0 0.0
        %3337 = vmatprep.subr.mxu0 0.0
        %3338 = vmatpush2.msra.mxu0 0.0
        %3339 = vmatprep.subr.mxu0 0.0
        %3340 = vmatpush2.msra.mxu0 0.0
        %3341 = vmatprep.subr.mxu0 0.0
        %3342 = vmatpush2.msra.mxu0 0.0
        %3343 = vmatprep.subr.mxu0 0.0
        %3344 = vmatpush2.msra.mxu0 0.0
        %3345 = vmatprep.subr.mxu0 0.0
        %3346 = vmatpush2.msra.mxu0 0.0
        %3347 = vmatprep.subr.mxu0 0.0
        %3348 = vmatpush2.msra.mxu0 0.0
        %3349 = vmatprep.mubr.f32.mxu0 0.0
        %3350 = vmatmul.mubr.f32.gmra.mxu0 %v3283
        %v3351 = vpop.f32.mrf.mxu0
        %v3352 = vadd.f32 0.0, %v3351
        %v3353 = vpop.f32.mrf.mxu0
        %3354 = vdwg.mxu0
        %v3355 = vadd.f32 %v3104, %v3352
        %3356 = vrot.lane.b32.xlu0 %v2435, 104
        %v3357 = vpop.permute.xlu0 %3356
        %3358 = vrot.lane.b32.xlu0 %v2522, 104
        %v3359 = vpop.permute.xlu0 %3358
        %3360 = vrot.lane.b32.xlu0 %v2527, 104
        %v3361 = vpop.permute.xlu0 %3360
        %v3362 = vsel %vm1344, %v3357, 0
        %v3364 = vsel %vm1344, %v3359, 0
        %v3366 = vsel %vm1344, %v3361, 0
        %3368 = vmatprep.subr.mxu0 0.0
        %3369 = vmatpush1.xpose.msra.mxu0 0.0
        %3370 = vmatprep.subr.mxu0 0.0
        %3371 = vmatpush1.xpose.msra.mxu0 0.0
        %3372 = vmatprep.subr.mxu0 0.0
        %3373 = vmatpush1.xpose.msra.mxu0 0.0
        %3374 = vmatprep.subr.mxu0 0.0
        %3375 = vmatpush1.xpose.msra.mxu0 0.0
        %3376 = vmatprep.subr.mxu0 0.0
        %3377 = vmatpush1.xpose.msra.mxu0 0.0
        %3378 = vmatprep.subr.mxu0 0.0
        %3379 = vmatpush1.xpose.msra.mxu0 0.0
        %3380 = vmatprep.subr.mxu0 0.0
        %3381 = vmatpush1.xpose.msra.mxu0 0.0
        %3382 = vmatprep.subr.mxu0 0.0
        %3383 = vmatpush1.xpose.msra.mxu0 0.0
        %3384 = vmatprep.subr.mxu0 0.0
        %3385 = vmatpush1.xpose.msra.mxu0 0.0
        %3386 = vmatprep.subr.mxu0 0.0
        %3387 = vmatpush1.xpose.msra.mxu0 0.0
        %3388 = vmatprep.subr.mxu0 0.0
        %3389 = vmatpush1.xpose.msra.mxu0 0.0
        %3390 = vmatprep.subr.mxu0 0.0
        %3391 = vmatpush1.xpose.msra.mxu0 0.0
        %3392 = vmatprep.subr.mxu0 0.0
        %3393 = vmatpush1.xpose.msra.mxu0 0.0
        %3394 = vmatprep.subr.mxu0 0.0
        %3395 = vmatpush1.xpose.msra.mxu0 0.0
        %3396 = vmatprep.subr.mxu0 0.0
        %3397 = vmatpush1.xpose.msra.mxu0 %v3366
        %3398 = vmatprep.subr.mxu0 0.0
        %3399 = vmatpush1.xpose.msra.mxu0 %v3364
        %3400 = vmatprep.subr.mxu0 0.0
        %3401 = vmatpush2.xpose.msra.mxu0 0.0
        %3402 = vmatprep.subr.mxu0 0.0
        %3403 = vmatpush2.xpose.msra.mxu0 0.0
        %3404 = vmatprep.subr.mxu0 0.0
        %3405 = vmatpush2.xpose.msra.mxu0 0.0
        %3406 = vmatprep.subr.mxu0 0.0
        %3407 = vmatpush2.xpose.msra.mxu0 0.0
        %3408 = vmatprep.subr.mxu0 0.0
        %3409 = vmatpush2.xpose.msra.mxu0 0.0
        %3410 = vmatprep.subr.mxu0 0.0
        %3411 = vmatpush2.xpose.msra.mxu0 0.0
        %3412 = vmatprep.subr.mxu0 0.0
        %3413 = vmatpush2.xpose.msra.mxu0 0.0
        %3414 = vmatprep.subr.mxu0 0.0
        %3415 = vmatpush2.xpose.msra.mxu0 0.0
        %3416 = vmatprep.subr.mxu0 0.0
        %3417 = vmatpush2.xpose.msra.mxu0 0.0
        %3418 = vmatprep.subr.mxu0 0.0
        %3419 = vmatpush2.xpose.msra.mxu0 0.0
        %3420 = vmatprep.subr.mxu0 0.0
        %3421 = vmatpush2.xpose.msra.mxu0 0.0
        %3422 = vmatprep.subr.mxu0 0.0
        %3423 = vmatpush2.xpose.msra.mxu0 0.0
        %3424 = vmatprep.subr.mxu0 0.0
        %3425 = vmatpush2.xpose.msra.mxu0 0.0
        %3426 = vmatprep.subr.mxu0 0.0
        %3427 = vmatpush2.xpose.msra.mxu0 0.0
        %3428 = vmatprep.subr.mxu0 0.0
        %3429 = vmatpush2.xpose.msra.mxu0 0.0
        %3430 = vmatprep.subr.mxu0 0.0
        %3431 = vmatpush2.xpose.msra.mxu0 0.0
        %3432 = vmatprep.mubr.f32.mxu0 0.0
        %3433 = vmatmul.mubr.f32.gmra.mxu0 %v3362
        %v3434 = vpop.f32.mrf.mxu0
        %v3435 = vadd.f32 0.0, %v3434
        %v3436 = vpop.f32.mrf.mxu0
        %3437 = vdwg.mxu0
        %v3438 = vmul.f32 %v3435, 0.35355338
        %v3439 = vadd.f32 %v3438, %v2616
        %v3440 = vsel %vm2698, %v3439, -inf
        %3441 = vmax.xlane.f32.xlu0 %v3440
        %v3442 = vpop.xlane.xlu0 %3441
        %v3443 = vsub.f32 %v3439, %v3442
        %v3444 = vmul.f32 %v3443, 1.442695
        %v3445 = vpow.pop %v3444
        %v3446 = vsel %vm2698, %v3445, 0.0
        %3447 = vadd.xlane.f32.xlu0 %v3446
        %v3448 = vpop.xlane.xlu0 %3447
        %v3449 = vrcp.pop %v3448
        %v3450 = vmul.f32 %v3445, %v3449
        %3451 = vrot.lane.b32.xlu0 %v2608, 104
        %v3452 = vpop.permute.xlu0 %3451
        %3453 = vrot.lane.b32.xlu0 %v2613, 104
        %v3454 = vpop.permute.xlu0 %3453
        %v3458 = vsel %vm2698, %v3450, 0
        %3460 = vmatprep.subr.mxu0 0.0
        %3461 = vmatpush1.msra.mxu0 0.0
        %3462 = vmatprep.subr.mxu0 0.0
        %3463 = vmatpush1.msra.mxu0 0.0
        %3464 = vmatprep.subr.mxu0 0.0
        %3465 = vmatpush1.msra.mxu0 0.0
        %3466 = vmatprep.subr.mxu0 0.0
        %3467 = vmatpush1.msra.mxu0 0.0
        %3468 = vmatprep.subr.mxu0 0.0
        %3469 = vmatpush1.msra.mxu0 0.0
        %3470 = vmatprep.subr.mxu0 0.0
        %3471 = vmatpush1.msra.mxu0 0.0
        %3472 = vmatprep.subr.mxu0 0.0
        %3473 = vmatpush1.msra.mxu0 0.0
        %3474 = vmatprep.subr.mxu0 0.0
        %3475 = vmatpush1.msra.mxu0 0.0
        %3476 = vmatprep.subr.mxu0 0.0
        %3477 = vmatpush1.msra.mxu0 0.0
        %3478 = vmatprep.subr.mxu0 0.0
        %3479 = vmatpush1.msra.mxu0 0.0
        %3480 = vmatprep.subr.mxu0 0.0
        %3481 = vmatpush1.msra.mxu0 0.0
        %3482 = vmatprep.subr.mxu0 0.0
        %3483 = vmatpush1.msra.mxu0 0.0
        %3484 = vmatprep.subr.mxu0 0.0
        %3485 = vmatpush1.msra.mxu0 0.0
        %3486 = vmatprep.subr.mxu0 0.0
        %3487 = vmatpush1.msra.mxu0 0.0
        %3488 = vmatprep.subr.mxu0 0.0
        %3489 = vmatpush1.msra.mxu0 %v3454
        %3490 = vmatprep.subr.mxu0 0.0
        %3491 = vmatpush1.msra.mxu0 %v3452
        %3492 = vmatprep.subr.mxu0 0.0
        %3493 = vmatpush2.msra.mxu0 0.0
        %3494 = vmatprep.subr.mxu0 0.0
        %3495 = vmatpush2.msra.mxu0 0.0
        %3496 = vmatprep.subr.mxu0 0.0
        %3497 = vmatpush2.msra.mxu0 0.0
        %3498 = vmatprep.subr.mxu0 0.0
        %3499 = vmatpush2.msra.mxu0 0.0
        %3500 = vmatprep.subr.mxu0 0.0
        %3501 = vmatpush2.msra.mxu0 0.0
        %3502 = vmatprep.subr.mxu0 0.0
        %3503 = vmatpush2.msra.mxu0 0.0
        %3504 = vmatprep.subr.mxu0 0.0
        %3505 = vmatpush2.msra.mxu0 0.0
        %3506 = vmatprep.subr.mxu0 0.0
        %3507 = vmatpush2.msra.mxu0 0.0
        %3508 = vmatprep.subr.mxu0 0.0
        %3509 = vmatpush2.msra.mxu0 0.0
        %3510 = vmatprep.subr.mxu0 0.0
        %3511 = vmatpush2.msra.mxu0 0.0
        %3512 = vmatprep.subr.mxu0 0.0
        %3513 = vmatpush2.msra.mxu0 0.0
        %3514 = vmatprep.subr.mxu0 0.0
        %3515 = vmatpush2.msra.mxu0 0.0
        %3516 = vmatprep.subr.mxu0 0.0
        %3517 = vmatpush2.msra.mxu0 0.0
        %3518 = vmatprep.subr.mxu0 0.0
        %3519 = vmatpush2.msra.mxu0 0.0
        %3520 = vmatprep.subr.mxu0 0.0
        %3521 = vmatpush2.msra.mxu0 0.0
        %3522 = vmatprep.subr.mxu0 0.0
        %3523 = vmatpush2.msra.mxu0 0.0
        %3524 = vmatprep.mubr.f32.mxu0 0.0
        %3525 = vmatmul.mubr.f32.gmra.mxu0 %v3458
        %v3526 = vpop.f32.mrf.mxu0
        %v3527 = vadd.f32 0.0, %v3526
        %v3528 = vpop.f32.mrf.mxu0
        %3529 = vdwg.mxu0
        %v3530 = vld [vmem:[#allocation16 + $0x18] sm:$0xff]
        %v3532 = vsel %vm1344, %v3527, 0
        %3534 = vmatprep.subr.mxu0 0.0
        %3535 = vmatpush1.msra.mxu0 0.0
        %3536 = vmatprep.subr.mxu0 0.0
        %3537 = vmatpush1.msra.mxu0 0.0
        %3538 = vmatprep.subr.mxu0 0.0
        %3539 = vmatpush1.msra.mxu0 0.0
        %3540 = vmatprep.subr.mxu0 0.0
        %3541 = vmatpush1.msra.mxu0 0.0
        %3542 = vmatprep.subr.mxu0 0.0
        %3543 = vmatpush1.msra.mxu0 0.0
        %3544 = vmatprep.subr.mxu0 0.0
        %3545 = vmatpush1.msra.mxu0 0.0
        %3546 = vmatprep.subr.mxu0 0.0
        %3547 = vmatpush1.msra.mxu0 0.0
        %3548 = vmatprep.subr.mxu0 0.0
        %3549 = vmatpush1.msra.mxu0 0.0
        %3550 = vmatprep.subr.mxu0 0.0
        %3551 = vmatpush1.msra.mxu0 0.0
        %3552 = vmatprep.subr.mxu0 0.0
        %3553 = vmatpush1.msra.mxu0 0.0
        %3554 = vmatprep.subr.mxu0 0.0
        %3555 = vmatpush1.msra.mxu0 0.0
        %3556 = vmatprep.subr.mxu0 0.0
        %3557 = vmatpush1.msra.mxu0 0.0
        %3558 = vmatprep.subr.mxu0 0.0
        %3559 = vmatpush1.msra.mxu0 0.0
        %3560 = vmatprep.subr.mxu0 0.0
        %3561 = vmatpush1.msra.mxu0 0.0
        %3562 = vmatprep.subr.mxu0 0.0
        %3563 = vmatpush1.msra.mxu0 0.0
        %3564 = vmatprep.subr.mxu0 0.0
        %3565 = vmatpush1.msra.mxu0 %v3530
        %3566 = vmatprep.subr.mxu0 0.0
        %3567 = vmatpush2.msra.mxu0 0.0
        %3568 = vmatprep.subr.mxu0 0.0
        %3569 = vmatpush2.msra.mxu0 0.0
        %3570 = vmatprep.subr.mxu0 0.0
        %3571 = vmatpush2.msra.mxu0 0.0
        %3572 = vmatprep.subr.mxu0 0.0
        %3573 = vmatpush2.msra.mxu0 0.0
        %3574 = vmatprep.subr.mxu0 0.0
        %3575 = vmatpush2.msra.mxu0 0.0
        %3576 = vmatprep.subr.mxu0 0.0
        %3577 = vmatpush2.msra.mxu0 0.0
        %3578 = vmatprep.subr.mxu0 0.0
        %3579 = vmatpush2.msra.mxu0 0.0
        %3580 = vmatprep.subr.mxu0 0.0
        %3581 = vmatpush2.msra.mxu0 0.0
        %3582 = vmatprep.subr.mxu0 0.0
        %3583 = vmatpush2.msra.mxu0 0.0
        %3584 = vmatprep.subr.mxu0 0.0
        %3585 = vmatpush2.msra.mxu0 0.0
        %3586 = vmatprep.subr.mxu0 0.0
        %3587 = vmatpush2.msra.mxu0 0.0
        %3588 = vmatprep.subr.mxu0 0.0
        %3589 = vmatpush2.msra.mxu0 0.0
        %3590 = vmatprep.subr.mxu0 0.0
        %3591 = vmatpush2.msra.mxu0 0.0
        %3592 = vmatprep.subr.mxu0 0.0
        %3593 = vmatpush2.msra.mxu0 0.0
        %3594 = vmatprep.subr.mxu0 0.0
        %3595 = vmatpush2.msra.mxu0 0.0
        %3596 = vmatprep.subr.mxu0 0.0
        %3597 = vmatpush2.msra.mxu0 0.0
        %3598 = vmatprep.mubr.f32.mxu0 0.0
        %3599 = vmatmul.mubr.f32.gmra.mxu0 %v3532
        %v3600 = vpop.f32.mrf.mxu0
        %v3601 = vadd.f32 0.0, %v3600
        %v3602 = vpop.f32.mrf.mxu0
        %3603 = vdwg.mxu0
        %v3604 = vadd.f32 %v3355, %v3601
        %v3605 = vld [vmem:[%s43] sm:$0x1]
        %v3607 = vlaneseq
        %v3608 = vshrl.u32 %v3607, 7
        %v3609 = vsub.s32 0, %v3608
        %v3610 = vrot.slane %v3605, %v3609
        %v3612 = vadd.f32 %v3604, %v3610
        %v3613 = vadd.f32 %v2353, %v3612
        %v3614 = vsel %vm1107, %v3613, 0.0
        %3615 = vadd.xlane.f32.xlu0 %v3614
        %v3616 = vpop.xlane.xlu0 %3615
        %v3617 = vmul.f32 %v3616, %v2319
        %v3618 = vsub.f32 %v3613, %v3617
        %v3619 = vmul.f32 %v3618, %v3618
        %v3620 = vsel %vm1107, %v3619, 0.0
        %3621 = vadd.xlane.f32.xlu0 %v3620
        %v3622 = vpop.xlane.xlu0 %3621
        %v3623 = vmul.f32 %v3622, %v2326
        %v3624 = vld [vmem:[%s45] sm:$0x1]
        %v3626 = vlaneseq
        %v3627 = vshrl.u32 %v3626, 7
        %v3628 = vsub.s32 0, %v3627
        %v3629 = vrot.slane %v3624, %v3628
        %v3631 = vmul.f32 %v3629, %v3618
        %v3632 = vrsqrt.pop %v3623
        %v3633 = vmul.f32 %v3623, %v3632
        %vm3634 = vcmp.eq.f32.partialorder %v3623, inf
        %v3635 = vsel %vm3634, %v3623, %v3633
        %vm3636 = vcmp.eq.f32.partialorder %v3623, 0.0
        %v3637 = vand.u32 %v3623, 2147483648
        %v3638 = vsel %vm3636, %v3637, %v3635
        %v3639 = vadd.f32 %v3638, 1e-06
        %v3640 = vrcp.pop %v3639
        %v3641 = vmul.f32 %v3631, %v3640
        %v3642 = vld [vmem:[%s47] sm:$0x1]
        %v3644 = vlaneseq
        %v3645 = vshrl.u32 %v3644, 7
        %v3646 = vsub.s32 0, %v3645
        %v3647 = vrot.slane %v3642, %v3646
        %v3649 = vadd.f32 %v3641, %v3647
        %v3650 = vld [vmem:[#allocation17] sm:$0xff]
        %v3651 = vld [vmem:[#allocation17 + $0x8] sm:$0xff]
        %v3652 = vld [vmem:[#allocation17 + $0x10] sm:$0xff]
        %v3653 = vld [vmem:[#allocation17 + $0x18] sm:$0xff]
        %v3654 = vld [vmem:[%s51] sm:$0x1]
        %v3656 = vlaneseq
        %v3657 = vshrl.u32 %v3656, 7
        %v3658 = vsub.s32 0, %v3657
        %v3659 = vrot.slane %v3654, %v3658
        %v3662 = vsel %vm1107, %v3649, 0
        %3664 = vmatprep.subr.mxu0 0.0
        %3665 = vmatpush1.msra.mxu0 0.0
        %3666 = vmatprep.subr.mxu0 0.0
        %3667 = vmatpush1.msra.mxu0 0.0
        %3668 = vmatprep.subr.mxu0 0.0
        %3669 = vmatpush1.msra.mxu0 0.0
        %3670 = vmatprep.subr.mxu0 0.0
        %3671 = vmatpush1.msra.mxu0 0.0
        %3672 = vmatprep.subr.mxu0 0.0
        %3673 = vmatpush1.msra.mxu0 0.0
        %3674 = vmatprep.subr.mxu0 0.0
        %3675 = vmatpush1.msra.mxu0 0.0
        %3676 = vmatprep.subr.mxu0 0.0
        %3677 = vmatpush1.msra.mxu0 0.0
        %3678 = vmatprep.subr.mxu0 0.0
        %3679 = vmatpush1.msra.mxu0 0.0
        %3680 = vmatprep.subr.mxu0 0.0
        %3681 = vmatpush1.msra.mxu0 0.0
        %3682 = vmatprep.subr.mxu0 0.0
        %3683 = vmatpush1.msra.mxu0 0.0
        %3684 = vmatprep.subr.mxu0 0.0
        %3685 = vmatpush1.msra.mxu0 0.0
        %3686 = vmatprep.subr.mxu0 0.0
        %3687 = vmatpush1.msra.mxu0 0.0
        %3688 = vmatprep.subr.mxu0 0.0
        %3689 = vmatpush1.msra.mxu0 %v3653
        %3690 = vmatprep.subr.mxu0 0.0
        %3691 = vmatpush1.msra.mxu0 %v3652
        %3692 = vmatprep.subr.mxu0 0.0
        %3693 = vmatpush1.msra.mxu0 %v3651
        %3694 = vmatprep.subr.mxu0 0.0
        %3695 = vmatpush1.msra.mxu0 %v3650
        %3696 = vmatprep.subr.mxu0 0.0
        %3697 = vmatpush2.msra.mxu0 0.0
        %3698 = vmatprep.subr.mxu0 0.0
        %3699 = vmatpush2.msra.mxu0 0.0
        %3700 = vmatprep.subr.mxu0 0.0
        %3701 = vmatpush2.msra.mxu0 0.0
        %3702 = vmatprep.subr.mxu0 0.0
        %3703 = vmatpush2.msra.mxu0 0.0
        %3704 = vmatprep.subr.mxu0 0.0
        %3705 = vmatpush2.msra.mxu0 0.0
        %3706 = vmatprep.subr.mxu0 0.0
        %3707 = vmatpush2.msra.mxu0 0.0
        %3708 = vmatprep.subr.mxu0 0.0
        %3709 = vmatpush2.msra.mxu0 0.0
        %3710 = vmatprep.subr.mxu0 0.0
        %3711 = vmatpush2.msra.mxu0 0.0
        %3712 = vmatprep.subr.mxu0 0.0
        %3713 = vmatpush2.msra.mxu0 0.0
        %3714 = vmatprep.subr.mxu0 0.0
        %3715 = vmatpush2.msra.mxu0 0.0
        %3716 = vmatprep.subr.mxu0 0.0
        %3717 = vmatpush2.msra.mxu0 0.0
        %3718 = vmatprep.subr.mxu0 0.0
        %3719 = vmatpush2.msra.mxu0 0.0
        %3720 = vmatprep.subr.mxu0 0.0
        %3721 = vmatpush2.msra.mxu0 0.0
        %3722 = vmatprep.subr.mxu0 0.0
        %3723 = vmatpush2.msra.mxu0 0.0
        %3724 = vmatprep.subr.mxu0 0.0
        %3725 = vmatpush2.msra.mxu0 0.0
        %3726 = vmatprep.subr.mxu0 0.0
        %3727 = vmatpush2.msra.mxu0 0.0
        %3728 = vmatprep.mubr.f32.mxu0 0.0
        %3729 = vmatmul.mubr.f32.gmra.mxu0 %v3662
        %v3730 = vpop.f32.mrf.mxu0
        %v3731 = vadd.f32 %v3659, %v3730
        %v3732 = vpop.f32.mrf.mxu0
        %3733 = vdwg.mxu0
        %v3734 = vmax.f32 %v3731, 0.0
        %v3735 = vld [vmem:[%s53] sm:$0xff]
        %v3736 = vld [vmem:[%s53 + $0x8] sm:$0xff]
        %v3737 = vld [vmem:[%s53 + $0x10] sm:$0xff]
        %v3738 = vld [vmem:[%s53 + $0x18] sm:$0xff]
        %v3739 = vld [vmem:[%s53 + $0x20] sm:$0xff]
        %v3740 = vld [vmem:[%s53 + $0x28] sm:$0xff]
        %v3741 = vld [vmem:[%s53 + $0x30] sm:$0xff]
        %v3742 = vld [vmem:[%s53 + $0x38] sm:$0xff]
        %v3743 = vld [vmem:[%s55] sm:$0x1]
        %v3745 = vlaneseq
        %v3746 = vshrl.u32 %v3745, 7
        %v3747 = vsub.s32 0, %v3746
        %v3748 = vrot.slane %v3743, %v3747
        %vm3750 = vcmask 523264
        %v3752 = vsel %vm3750, %v3734, 0
        %3754 = vmatprep.subr.mxu0 0.0
        %3755 = vmatpush1.msra.mxu0 0.0
        %3756 = vmatprep.subr.mxu0 0.0
        %3757 = vmatpush1.msra.mxu0 0.0
        %3758 = vmatprep.subr.mxu0 0.0
        %3759 = vmatpush1.msra.mxu0 0.0
        %3760 = vmatprep.subr.mxu0 0.0
        %3761 = vmatpush1.msra.mxu0 0.0
        %3762 = vmatprep.subr.mxu0 0.0
        %3763 = vmatpush1.msra.mxu0 0.0
        %3764 = vmatprep.subr.mxu0 0.0
        %3765 = vmatpush1.msra.mxu0 0.0
        %3766 = vmatprep.subr.mxu0 0.0
        %3767 = vmatpush1.msra.mxu0 0.0
        %3768 = vmatprep.subr.mxu0 0.0
        %3769 = vmatpush1.msra.mxu0 0.0
        %3770 = vmatprep.subr.mxu0 0.0
        %3771 = vmatpush1.msra.mxu0 %v3742
        %3772 = vmatprep.subr.mxu0 0.0
        %3773 = vmatpush1.msra.mxu0 %v3741
        %3774 = vmatprep.subr.mxu0 0.0
        %3775 = vmatpush1.msra.mxu0 %v3740
        %3776 = vmatprep.subr.mxu0 0.0
        %3777 = vmatpush1.msra.mxu0 %v3739
        %3778 = vmatprep.subr.mxu0 0.0
        %3779 = vmatpush1.msra.mxu0 %v3738
        %3780 = vmatprep.subr.mxu0 0.0
        %3781 = vmatpush1.msra.mxu0 %v3737
        %3782 = vmatprep.subr.mxu0 0.0
        %3783 = vmatpush1.msra.mxu0 %v3736
        %3784 = vmatprep.subr.mxu0 0.0
        %3785 = vmatpush1.msra.mxu0 %v3735
        %3786 = vmatprep.subr.mxu0 0.0
        %3787 = vmatpush2.msra.mxu0 0.0
        %3788 = vmatprep.subr.mxu0 0.0
        %3789 = vmatpush2.msra.mxu0 0.0
        %3790 = vmatprep.subr.mxu0 0.0
        %3791 = vmatpush2.msra.mxu0 0.0
        %3792 = vmatprep.subr.mxu0 0.0
        %3793 = vmatpush2.msra.mxu0 0.0
        %3794 = vmatprep.subr.mxu0 0.0
        %3795 = vmatpush2.msra.mxu0 0.0
        %3796 = vmatprep.subr.mxu0 0.0
        %3797 = vmatpush2.msra.mxu0 0.0
        %3798 = vmatprep.subr.mxu0 0.0
        %3799 = vmatpush2.msra.mxu0 0.0
        %3800 = vmatprep.subr.mxu0 0.0
        %3801 = vmatpush2.msra.mxu0 0.0
        %3802 = vmatprep.subr.mxu0 0.0
        %3803 = vmatpush2.msra.mxu0 0.0
        %3804 = vmatprep.subr.mxu0 0.0
        %3805 = vmatpush2.msra.mxu0 0.0
        %3806 = vmatprep.subr.mxu0 0.0
        %3807 = vmatpush2.msra.mxu0 0.0
        %3808 = vmatprep.subr.mxu0 0.0
        %3809 = vmatpush2.msra.mxu0 0.0
        %3810 = vmatprep.subr.mxu0 0.0
        %3811 = vmatpush2.msra.mxu0 0.0
        %3812 = vmatprep.subr.mxu0 0.0
        %3813 = vmatpush2.msra.mxu0 0.0
        %3814 = vmatprep.subr.mxu0 0.0
        %3815 = vmatpush2.msra.mxu0 0.0
        %3816 = vmatprep.subr.mxu0 0.0
        %3817 = vmatpush2.msra.mxu0 0.0
        %3818 = vmatprep.mubr.f32.mxu0 0.0
        %3819 = vmatmul.mubr.f32.gmra.mxu0 %v3752
        %v3820 = vpop.f32.mrf.mxu0
        %v3821 = vadd.f32 %v3748, %v3820
        %v3822 = vpop.f32.mrf.mxu0
        %3823 = vdwg.mxu0
        %v3824 = vadd.f32 %v3649, %v3821
        %v3825 = vsel %vm1107, %v3824, 0.0
        %3826 = vadd.xlane.f32.xlu0 %v3825
        %v3827 = vpop.xlane.xlu0 %3826
        %v3828 = vmul.f32 %v3827, %v2319
        %v3829 = vsub.f32 %v3824, %v3828
        %v3830 = vmul.f32 %v3829, %v3829
        %v3831 = vsel %vm1107, %v3830, 0.0
        %3832 = vadd.xlane.f32.xlu0 %v3831
        %v3833 = vpop.xlane.xlu0 %3832
        %v3834 = vmul.f32 %v3833, %v2326
        %v3835 = vld [vmem:[%s57] sm:$0x1]
        %v3837 = vlaneseq
        %v3838 = vshrl.u32 %v3837, 7
        %v3839 = vsub.s32 0, %v3838
        %v3840 = vrot.slane %v3835, %v3839
        %v3842 = vmul.f32 %v3840, %v3829
        %v3843 = vrsqrt.pop %v3834
        %v3844 = vmul.f32 %v3834, %v3843
        %vm3845 = vcmp.eq.f32.partialorder %v3834, inf
        %v3846 = vsel %vm3845, %v3834, %v3844
        %vm3847 = vcmp.eq.f32.partialorder %v3834, 0.0
        %v3848 = vand.u32 %v3834, 2147483648
        %v3849 = vsel %vm3847, %v3848, %v3846
        %v3850 = vadd.f32 %v3849, 1e-06
        %v3851 = vrcp.pop %v3850
        %v3852 = vmul.f32 %v3842, %v3851
        %v3853 = vld [vmem:[%s59] sm:$0x1]
        %v3855 = vlaneseq
        %v3856 = vshrl.u32 %v3855, 7
        %v3857 = vsub.s32 0, %v3856
        %v3858 = vrot.slane %v3853, %v3857
        %v3860 = vadd.f32 %v3852, %v3858
        %3861 = vst.msk [vmem:[%s1087] sm:$0xff] %vm1107, %v3860
        %s3862 = sand.u32 %s731, 1
        %s3863 = scalar_lea.sflag [#allocation4], %s3862
        %s3864 = sand.u32 %s731, 1
        %s3865 = smul.addr %s3864, 8
        %s3866 = scalar_lea.vmem [#allocation19], %s3865
        // Predicated region
        $region181: #{tpu_custom_call.1} parent=139 // pred_check
          %p3867 = pneg %p741
        $region182: #{tpu_custom_call.1} parent=139 // pred_check_branch
          %3869 = sbr.rel (%p3867) target = $region184
        $region183: #{tpu_custom_call.1} parent=139 // pred_region
          %s3871 = ssub.s32 128, 128
          %3872 = vsyncadd %s3863, %s3871
          %s3873 = smul.addr %s83, 128
          %s3874 = scalar_lea.hbm %s61, %s3873
          %s3876 = sshll.u32 %s3866, 4
          %s3877 = int_to_ptr.vmem [resolvable:$true] %s3876
          %3879 = dma.vmem_to_hbm [thread:$0]  %s3877, 128, %s3874, %s3863
        $region184: #{tpu_custom_call.1} parent=139 // pred_fallthru
          _
      $region140: #{tpu_custom_call.1} parent=5 // pred_fallthru
        _
      %p3880 = scmp.le.s32.totalorder 2, %s78
      // Predicated region
      $region185: #{tpu_custom_call.1} parent=5 // pred_check
        %p3881 = pneg %p3880
      $region186: #{tpu_custom_call.1} parent=5 // pred_check_branch
        %3883 = sbr.rel (%p3881) target = $region188
      $region187: #{tpu_custom_call.1} parent=5 // pred_region
        %s3884 = ssub.s32 %s78, 2
        // Predicated region
        $region189: #{tpu_custom_call.1} parent=187 // pred_check
          %p3885 = pneg %p747
        $region190: #{tpu_custom_call.1} parent=187 // pred_check_branch
          %3887 = sbr.rel (%p3885) target = $region192
        $region191: #{tpu_custom_call.1} parent=187 // pred_region
          %s3888 = sand.u32 %s732, 1
          %s3889 = scalar_lea.sflag [#allocation4], %s3888
          %s3890 = sand.u32 %s732, 1
          %s3891 = smul.addr %s3890, 8
          %s3892 = scalar_lea.vmem [#allocation19], %s3891
          %3893 = dma.done %s3889, 128
        $region192: #{tpu_custom_call.1} parent=187 // pred_fallthru
          _
      $region188: #{tpu_custom_call.1} parent=5 // pred_fallthru
        _
    $region6: #{tpu_custom_call.1} parent=1 // loop_footer
      %s82 = sadd.s32 1, %s78
    $region7: #{tpu_custom_call.1} parent=1 // loop_footer_branch
      %77 = sbr.rel target = $region3
    $region8: #{tpu_custom_call.1} parent=1 // loop_exit
      _
    %3894 = vsyncpa [#allocation3], 1
    %s3895 = scalar_lea.sflag [#allocation3], 1
    %3896 = vsyncpa %s3895, 1
    %3897 = vsyncpa [#allocation6], 1
    %3898 = vsyncpa [#allocation9], 1
    %3899 = vsyncpa [#allocation12], 1
    %3900 = vsyncpa [#allocation15], 1
    %3901 = vsyncpa [#allocation18], 1
    %3902 = vsyncpa [#allocation4], 1
    %s3903 = scalar_lea.sflag [#allocation4], 1
    %3904 = vsyncpa %s3903, 1

</llo_original>
